<compile_context>
chip_gen: v6e
topology: v6e:2x2x1
jax: 0.10.0
libtpu: 0.0.40
codegen_flags: <defaults>
</compile_context>

<pallas_src>
import functools

import jax
import jax.numpy as jnp
from jax.experimental import pallas as pl
from jax.experimental.pallas import tpu as pltpu


# ---------------------------------------------------------------------------
# Fixed LeNet-5 geometry (implied by Conv2d(3,6,5)/Conv2d(6,16,5)/Linear(400,.))
# ---------------------------------------------------------------------------
_K = 5                       # conv kernel size
_H1 = _W1 = 32               # input spatial size
_C0, _C1, _C2 = 3, 6, 16     # channels: input, conv1, conv2
_OH1 = _H1 - _K + 1          # 28  (conv1 output height)
_PH1 = _OH1 // 2             # 14  (pool1 output, also conv2 input size)
_OH2 = _PH1 - _K + 1         # 10  (conv2 output height)
_PH2 = _OH2 // 2             # 5   (pool2 output)
_F1, _F2, _F3 = 120, 84, 10  # FC sizes
_LANE = 128                  # lane-pad all activation/weight column dims


# ---------------------------------------------------------------------------
# The fused kernel: everything stays in VMEM.
# Activation layout everywhere: rows = (height-major, batch-minor),
#                               cols = (channel-major, width-minor), 128 lanes.
# ---------------------------------------------------------------------------
def _lenet5_kernel(a0_ref, t1_ref, br1_ref, t2_ref, br2_ref,
                   g1_ref, b1_ref, w2_ref, b2_ref, w3_ref, b3_ref,
                   out_ref, c1_ref, p1_ref, c2_ref, p2_ref, *, batch):
    f32 = jnp.float32
    bf16 = jnp.bfloat16

    # ----- stage 1: Conv2d(3,6,5) + AvgPool2d(2,2), fused --------------------
    # Width direction (conv kw + pool dw) is folded into the Toeplitz stack
    # t1[kh]; the kernel-row offset kh is a sliding row window of a0.
    acc = jnp.dot(a0_ref[pl.ds(0, _OH1 * batch), :].astype(bf16), t1_ref[0],
                  preferred_element_type=f32)
    for kh in range(1, _K):
        acc = acc + jnp.dot(
            a0_ref[pl.ds(kh * batch, _OH1 * batch), :].astype(bf16),
            t1_ref[kh], preferred_element_type=f32)
    c1_ref[...] = acc                                               # (28B, 128)
    # Height pooling = VPU add of adjacent height row-blocks (+ conv bias).
    for ph in range(_PH1):
        top = c1_ref[pl.ds((2 * ph) * batch, batch), :]
        bot = c1_ref[pl.ds((2 * ph + 1) * batch, batch), :]
        p1_ref[pl.ds(ph * batch, batch), :] = 0.5 * (top + bot) + br1_ref[...]

    # ----- stage 2: Conv2d(6,16,5) + AvgPool2d(2,2), fused -------------------
    acc = jnp.dot(p1_ref[pl.ds(0, _OH2 * batch), :].astype(bf16), t2_ref[0],
                  preferred_element_type=f32)
    for kh in range(1, _K):
        acc = acc + jnp.dot(
            p1_ref[pl.ds(kh * batch, _OH2 * batch), :].astype(bf16),
            t2_ref[kh], preferred_element_type=f32)
    c2_ref[...] = acc                                               # (10B, 128)
    for ph in range(_PH2):
        top = c2_ref[pl.ds((2 * ph) * batch, batch), :]
        bot = c2_ref[pl.ds((2 * ph + 1) * batch, batch), :]
        p2_ref[pl.ds(ph * batch, batch), :] = 0.5 * (top + bot) + br2_ref[...]

    # ----- FC head (all lane dims padded to 128) ------------------------------
    # fc1 consumes the (ph2, b) row blocks of p2 directly; the PyTorch
    # (c2, ph2, pw2) flatten order is baked into g1 by the wrapper.
    h = jnp.dot(p2_ref[pl.ds(0, batch), :].astype(bf16), g1_ref[0],
                preferred_element_type=f32)
    for ph in range(1, _PH2):
        h = h + jnp.dot(p2_ref[pl.ds(ph * batch, batch), :].astype(bf16),
                        g1_ref[ph], preferred_element_type=f32)
    h = jnp.maximum(h + b1_ref[...], 0.0)                           # ReLU
    h = jnp.maximum(jnp.dot(h.astype(bf16), w2_ref[...],
                            preferred_element_type=f32) + b2_ref[...], 0.0)
    out_ref[...] = (jnp.dot(h.astype(bf16), w3_ref[...],
                            preferred_element_type=f32) + b3_ref[...])


# ---------------------------------------------------------------------------
# One-time weight-side preprocessing (plain JAX on tiny tensors).
# Batch-size independent: no pooling matrices anymore.
# ---------------------------------------------------------------------------
def _conv_pool_toeplitz(wc, bc, w_in):
    """Fold Conv2d(k=5,s=1,p=0) + AvgPool2d(2,2) along the WIDTH axis into a
    per-kernel-row Toeplitz stack.

    Returns:
      t  : (k, Cin*w_in, Cout*pw) with
           t[kh][(ci, w), (co, pw)] = 0.5 * sum_{dw in {0,1}} wc[co, ci, kh, w-2*pw-dw]
      br : (1, Cout*pw) per-channel bias row (avg-pool of a constant = constant)
    """
    cout, cin, k, _ = wc.shape
    ow = w_in - k + 1
    pw = ow // 2
    wi = jnp.arange(w_in)[:, None, None]          # input column
    pj = jnp.arange(pw)[None, :, None]            # pooled output column
    kw = jnp.arange(k)[None, None, :]             # kernel column
    d = wi - 2 * pj - kw
    m = 0.5 * ((d == 0) | (d == 1)).astype(jnp.float32)            # (w_in, pw, k)
    t = jnp.einsum('wpq,oihq->hiwop', m, wc.astype(jnp.float32))   # (k,ci,w,co,pw)
    t = t.reshape(k, cin * w_in, cout * pw)
    br = jnp.repeat(bc.astype(jnp.float32), pw).reshape(1, cout * pw)
    return t, br


def _pad_stack(t):
    """Zero-pad a (k, rows, cols) stack to (k, 128, 128)."""
    k, r, c = t.shape
    return jnp.pad(t, ((0, 0), (0, _LANE - r), (0, _LANE - c)))


def precompute_lenet5_operands(params):
    """Build all kernel-side operands from the PyTorch-shaped parameters."""
    w1, b1, w2, b2, fw1, fb1, fw2, fb2, fw3, fb3 = params

    t1, br1 = _conv_pool_toeplitz(w1, b1, _W1)    # (5, 96, 84), (1, 84)
    t2, br2 = _conv_pool_toeplitz(w2, b2, _PH1)   # (5, 84, 80), (1, 80)
    t1p = _pad_stack(t1).astype(jnp.bfloat16)                      # (5,128,128)
    t2p = _pad_stack(t2).astype(jnp.bfloat16)                      # (5,128,128)
    br1p = jnp.pad(br1, ((0, 0), (0, _LANE - br1.shape[1]))).astype(jnp.float32)
    br2p = jnp.pad(br2, ((0, 0), (0, _LANE - br2.shape[1]))).astype(jnp.float32)

    # fc1: regroup (120, 400=(c2, ph2, pw2)) into per-ph2 blocks matching the
    # in-kernel activation layout rows=(ph2, b), cols=(c2, pw2); pad to 128.
    g1 = fw1.reshape(_F1, _C2, _PH2, _PH2)                          # (j,c2,ph2,pw2)
    g1 = g1.transpose(2, 1, 3, 0).reshape(_PH2, _C2 * _PH2, _F1)    # (5, 80, 120)
    g1p = _pad_stack(g1.astype(jnp.float32)).astype(jnp.bfloat16)   # (5,128,128)
    b1p = jnp.pad(fb1, (0, _LANE - _F1)).reshape(1, _LANE).astype(jnp.float32)

    w2p = jnp.pad(fw2.T, ((0, _LANE - _F1), (0, _LANE - _F2))).astype(jnp.bfloat16)
    b2p = jnp.pad(fb2, (0, _LANE - _F2)).reshape(1, _LANE).astype(jnp.float32)
    w3p = jnp.pad(fw3.T, ((0, _LANE - _F2), (0, 0))).astype(jnp.bfloat16)  # (128,10)
    b3p = fb3.reshape(1, _F3).astype(jnp.float32)

    return (t1p, br1p, t2p, br2p, g1p, b1p, w2p, b2p, w3p, b3p)


# ---------------------------------------------------------------------------
# Forward: one pallas_call for the whole network, gridded over batch blocks.
# ---------------------------------------------------------------------------
def lenet5_forward(x, operands, batch_tile=None):
    """x: (B, 3, 32, 32) float32 NCHW -> logits (B, 10)."""
    batch = x.shape[0]
    if batch_tile is None:
        # ~256 (h,batch) rows per block when the batch is large; single block
        # (latency-optimal) when it is small.  Sub-batch tiles must be a
        # multiple of 8 to satisfy the (8,128) BlockSpec rule on the output.
        batch_tile = 8 if (batch > 8 and batch % 8 == 0) else batch
    assert batch % batch_tile == 0
    nb = batch // batch_tile
    assert nb == 1 or batch_tile % 8 == 0

    (t1, br1, t2, br2, g1, b1p, w2p, b2p, w3p, b3p) = operands
    weight_args = (t1, br1, t2, br2, g1, b1p, w2p, b2p, w3p, b3p)

    # Repack NCHW -> per-block rows=(h, batch_tile), cols=(chan, w) padded to
    # 128 lanes.  (TODO(synk): fold into the kernel's input DMA path.)
    rows_in = _H1 * batch_tile
    a0 = x.astype(jnp.float32).reshape(nb, batch_tile, _C0, _H1, _W1)
    a0 = a0.transpose(0, 3, 1, 2, 4).reshape(nb * rows_in, _C0 * _W1)
    a0 = jnp.pad(a0, ((0, 0), (0, _LANE - _C0 * _W1)))

    def resident(a):
        zeros = (0,) * a.ndim
        return pl.BlockSpec(a.shape, lambda i, zeros=zeros: zeros)

    return pl.pallas_call(
        functools.partial(_lenet5_kernel, batch=batch_tile),
        out_shape=jax.ShapeDtypeStruct((batch, _F3), jnp.float32),
        grid=(nb,),
        in_specs=[pl.BlockSpec((rows_in, _LANE), lambda i: (i, 0))]
                 + [resident(a) for a in weight_args],
        out_specs=pl.BlockSpec((batch_tile, _F3), lambda i: (i, 0)),
        scratch_shapes=[
            pltpu.VMEM((_OH1 * batch_tile, _LANE), jnp.float32),   # conv1+wpool
            pltpu.VMEM((_PH1 * batch_tile, _LANE), jnp.float32),   # pool1 act
            pltpu.VMEM((_OH2 * batch_tile, _LANE), jnp.float32),   # conv2+wpool
            pltpu.VMEM((_PH2 * batch_tile, _LANE), jnp.float32),   # pool2 act
        ],
        compiler_params=pltpu.CompilerParams(
            dimension_semantics=("parallel",)),
    )(a0, *weight_args)


# ---------------------------------------------------------------------------
# Parameters with PyTorch nn.Module shapes (deterministic synthetic values).
# ---------------------------------------------------------------------------
def init_params(key):
    ks = jax.random.split(key, 10)
    f32 = jnp.float32
    w1 = jax.random.normal(ks[0], (6, 3, 5, 5), f32) * 0.1       # Conv2d(3, 6, 5)
    b1 = jax.random.normal(ks[1], (6,), f32) * 0.1
    w2 = jax.random.normal(ks[2], (16, 6, 5, 5), f32) * 0.1      # Conv2d(6, 16, 5)
    b2 = jax.random.normal(ks[3], (16,), f32) * 0.1
    fw1 = jax.random.normal(ks[4], (120, 400), f32) * 0.05       # Linear(400, 120)
    fb1 = jax.random.normal(ks[5], (120,), f32) * 0.05
    fw2 = jax.random.normal(ks[6], (84, 120), f32) * 0.05        # Linear(120, 84)
    fb2 = jax.random.normal(ks[7], (84,), f32) * 0.05
    fw3 = jax.random.normal(ks[8], (10, 84), f32) * 0.05         # Linear(84, 10)
    fb3 = jax.random.normal(ks[9], (10,), f32) * 0.05
    return (w1, b1, w2, b2, fw1, fb1, fw2, fb2, fw3, fb3)


if __name__ == "__main__":
    key = jax.random.PRNGKey(0)
    pkey, xkey = jax.random.split(key)
    params = init_params(pkey)

    # LeNet-5 input (NCHW, as in PyTorch): batch=2, 3 channels, 32x32
    x = jax.random.normal(xkey, (2, 3, 32, 32), jnp.float32)

    operands = precompute_lenet5_operands(params)   # batch-size independent
    logits = jax.jit(lenet5_forward)(x, operands)
    logits = jax.block_until_ready(logits)
    assert logits.shape == (2, 10), logits.shape
    assert logits.dtype == jnp.float32
    print("KERNEL_OK")
</pallas_src>

<mosaic_0001>
module attributes {stable_mosaic.version = 11 : i64} {
  func.func @_lenet5_kernel(%arg0: i32, %arg1: memref<64x128xf32, #tpu.memory_space<vmem>>, %arg2: memref<5x128x128xbf16, #tpu.memory_space<vmem>>, %arg3: memref<1x128xf32, #tpu.memory_space<vmem>>, %arg4: memref<5x128x128xbf16, #tpu.memory_space<vmem>>, %arg5: memref<1x128xf32, #tpu.memory_space<vmem>>, %arg6: memref<5x128x128xbf16, #tpu.memory_space<vmem>>, %arg7: memref<1x128xf32, #tpu.memory_space<vmem>>, %arg8: memref<128x128xbf16, #tpu.memory_space<vmem>>, %arg9: memref<1x128xf32, #tpu.memory_space<vmem>>, %arg10: memref<128x10xbf16, #tpu.memory_space<vmem>>, %arg11: memref<1x10xf32, #tpu.memory_space<vmem>>, %arg12: memref<2x10xf32, #tpu.memory_space<vmem>>, %arg13: memref<56x128xf32, #tpu.memory_space<vmem>>, %arg14: memref<28x128xf32, #tpu.memory_space<vmem>>, %arg15: memref<20x128xf32, #tpu.memory_space<vmem>>, %arg16: memref<10x128xf32, #tpu.memory_space<vmem>>) attributes {dimension_semantics = [#tpu.dimension_semantics<parallel>], iteration_bounds = array<i64: 1>, scalar_prefetch = 0 : i64, scratch_operands = 4 : i64, tpu.core_type = #tpu.core_type<tc>, window_params = [{transform_indices = @transform_0, window_bounds = array<i64: 64, 128>}, {pipeline_mode = #tpu.pipeline_mode<synchronous>, transform_indices = @transform_1, window_bounds = array<i64: 5, 128, 128>}, {pipeline_mode = #tpu.pipeline_mode<synchronous>, transform_indices = @transform_2, window_bounds = array<i64: 1, 128>}, {pipeline_mode = #tpu.pipeline_mode<synchronous>, transform_indices = @transform_3, window_bounds = array<i64: 5, 128, 128>}, {pipeline_mode = #tpu.pipeline_mode<synchronous>, transform_indices = @transform_4, window_bounds = array<i64: 1, 128>}, {pipeline_mode = #tpu.pipeline_mode<synchronous>, transform_indices = @transform_5, window_bounds = array<i64: 5, 128, 128>}, {pipeline_mode = #tpu.pipeline_mode<synchronous>, transform_indices = @transform_6, window_bounds = array<i64: 1, 128>}, {pipeline_mode = #tpu.pipeline_mode<synchronous>, transform_indices = @transform_7, window_bounds = array<i64: 128, 128>}, {pipeline_mode = #tpu.pipeline_mode<synchronous>, transform_indices = @transform_8, window_bounds = array<i64: 1, 128>}, {pipeline_mode = #tpu.pipeline_mode<synchronous>, transform_indices = @transform_9, window_bounds = array<i64: 128, 10>}, {pipeline_mode = #tpu.pipeline_mode<synchronous>, transform_indices = @transform_10, window_bounds = array<i64: 1, 10>}, {transform_indices = @transform_11, window_bounds = array<i64: 2, 10>}]} {
    %c0 = arith.constant 0 : index
    %c0_0 = arith.constant 0 : index
    %0 = vector.load %arg1[%c0, %c0_0] : memref<64x128xf32, #tpu.memory_space<vmem>>, vector<56x128xf32>
    %1 = arith.truncf %0 : vector<56x128xf32> to vector<56x128xbf16>
    %c0_1 = arith.constant 0 : index
    %c0_2 = arith.constant 0 : index
    %c0_3 = arith.constant 0 : index
    %2 = vector.load %arg2[%c0_1, %c0_2, %c0_3] : memref<5x128x128xbf16, #tpu.memory_space<vmem>>, vector<1x128x128xbf16>
    %3 = vector.shape_cast %2 : vector<1x128x128xbf16> to vector<128x128xbf16>
    %cst = arith.constant dense<0.000000e+00> : vector<56x128xf32>
    %4 = tpu.matmul %1, %3, %cst {dimension_numbers = #tpu.dot_dimension_numbers<[1], [0], [0], [1], [0, 0, 1, 1], [], []>} : vector<56x128xbf16>, vector<128x128xbf16>, vector<56x128xf32> -> vector<56x128xf32>
    %c2 = arith.constant 2 : index
    %c0_4 = arith.constant 0 : index
    %5 = vector.load %arg1[%c2, %c0_4] : memref<64x128xf32, #tpu.memory_space<vmem>>, vector<56x128xf32>
    %6 = arith.truncf %5 : vector<56x128xf32> to vector<56x128xbf16>
    %c1 = arith.constant 1 : index
    %c0_5 = arith.constant 0 : index
    %c0_6 = arith.constant 0 : index
    %7 = vector.load %arg2[%c1, %c0_5, %c0_6] : memref<5x128x128xbf16, #tpu.memory_space<vmem>>, vector<1x128x128xbf16>
    %8 = vector.shape_cast %7 : vector<1x128x128xbf16> to vector<128x128xbf16>
    %cst_7 = arith.constant dense<0.000000e+00> : vector<56x128xf32>
    %9 = tpu.matmul %6, %8, %cst_7 {dimension_numbers = #tpu.dot_dimension_numbers<[1], [0], [0], [1], [0, 0, 1, 1], [], []>} : vector<56x128xbf16>, vector<128x128xbf16>, vector<56x128xf32> -> vector<56x128xf32>
    %10 = arith.addf %4, %9 : vector<56x128xf32>
    %c4 = arith.constant 4 : index
    %c0_8 = arith.constant 0 : index
    %11 = vector.load %arg1[%c4, %c0_8] : memref<64x128xf32, #tpu.memory_space<vmem>>, vector<56x128xf32>
    %12 = arith.truncf %11 : vector<56x128xf32> to vector<56x128xbf16>
    %c2_9 = arith.constant 2 : index
    %c0_10 = arith.constant 0 : index
    %c0_11 = arith.constant 0 : index
    %13 = vector.load %arg2[%c2_9, %c0_10, %c0_11] : memref<5x128x128xbf16, #tpu.memory_space<vmem>>, vector<1x128x128xbf16>
    %14 = vector.shape_cast %13 : vector<1x128x128xbf16> to vector<128x128xbf16>
    %cst_12 = arith.constant dense<0.000000e+00> : vector<56x128xf32>
    %15 = tpu.matmul %12, %14, %cst_12 {dimension_numbers = #tpu.dot_dimension_numbers<[1], [0], [0], [1], [0, 0, 1, 1], [], []>} : vector<56x128xbf16>, vector<128x128xbf16>, vector<56x128xf32> -> vector<56x128xf32>
    %16 = arith.addf %10, %15 : vector<56x128xf32>
    %c6 = arith.constant 6 : index
    %c0_13 = arith.constant 0 : index
    %17 = vector.load %arg1[%c6, %c0_13] : memref<64x128xf32, #tpu.memory_space<vmem>>, vector<56x128xf32>
    %18 = arith.truncf %17 : vector<56x128xf32> to vector<56x128xbf16>
    %c3 = arith.constant 3 : index
    %c0_14 = arith.constant 0 : index
    %c0_15 = arith.constant 0 : index
    %19 = vector.load %arg2[%c3, %c0_14, %c0_15] : memref<5x128x128xbf16, #tpu.memory_space<vmem>>, vector<1x128x128xbf16>
    %20 = vector.shape_cast %19 : vector<1x128x128xbf16> to vector<128x128xbf16>
    %cst_16 = arith.constant dense<0.000000e+00> : vector<56x128xf32>
    %21 = tpu.matmul %18, %20, %cst_16 {dimension_numbers = #tpu.dot_dimension_numbers<[1], [0], [0], [1], [0, 0, 1, 1], [], []>} : vector<56x128xbf16>, vector<128x128xbf16>, vector<56x128xf32> -> vector<56x128xf32>
    %22 = arith.addf %16, %21 : vector<56x128xf32>
    %c8 = arith.constant 8 : index
    %c0_17 = arith.constant 0 : index
    %23 = vector.load %arg1[%c8, %c0_17] : memref<64x128xf32, #tpu.memory_space<vmem>>, vector<56x128xf32>
    %24 = arith.truncf %23 : vector<56x128xf32> to vector<56x128xbf16>
    %c4_18 = arith.constant 4 : index
    %c0_19 = arith.constant 0 : index
    %c0_20 = arith.constant 0 : index
    %25 = vector.load %arg2[%c4_18, %c0_19, %c0_20] : memref<5x128x128xbf16, #tpu.memory_space<vmem>>, vector<1x128x128xbf16>
    %26 = vector.shape_cast %25 : vector<1x128x128xbf16> to vector<128x128xbf16>
    %cst_21 = arith.constant dense<0.000000e+00> : vector<56x128xf32>
    %27 = tpu.matmul %24, %26, %cst_21 {dimension_numbers = #tpu.dot_dimension_numbers<[1], [0], [0], [1], [0, 0, 1, 1], [], []>} : vector<56x128xbf16>, vector<128x128xbf16>, vector<56x128xf32> -> vector<56x128xf32>
    %28 = arith.addf %22, %27 : vector<56x128xf32>
    %c0_22 = arith.constant 0 : index
    %c0_23 = arith.constant 0 : index
    %29 = vector.load %arg13[%c0_22, %c0_23] : memref<56x128xf32, #tpu.memory_space<vmem>>, vector<56x128xf32>
    tpu.vector_store %arg13[%c0_22, %c0_23], %28 {strides = array<i32>} : memref<56x128xf32, #tpu.memory_space<vmem>>, vector<56x128xf32>,
    %c0_24 = arith.constant 0 : index
    %c0_25 = arith.constant 0 : index
    %30 = vector.load %arg13[%c0_24, %c0_25] : memref<56x128xf32, #tpu.memory_space<vmem>>, vector<2x128xf32>
    %c2_26 = arith.constant 2 : index
    %c0_27 = arith.constant 0 : index
    %31 = vector.load %arg13[%c2_26, %c0_27] : memref<56x128xf32, #tpu.memory_space<vmem>>, vector<2x128xf32>
    %32 = arith.addf %30, %31 : vector<2x128xf32>
    %cst_28 = arith.constant 5.000000e-01 : f32
    %33 = vector.broadcast %cst_28 : f32 to vector<2x128xf32>
    %34 = arith.mulf %33, %32 : vector<2x128xf32>
    %c0_29 = arith.constant 0 : index
    %c0_30 = arith.constant 0 : index
    %35 = vector.load %arg3[%c0_29, %c0_30] : memref<1x128xf32, #tpu.memory_space<vmem>>, vector<1x128xf32>
    %36 = vector.broadcast %35 : vector<1x128xf32> to vector<2x128xf32>
    %37 = arith.addf %34, %36 : vector<2x128xf32>
    %c0_31 = arith.constant 0 : index
    %c0_32 = arith.constant 0 : index
    %38 = vector.load %arg14[%c0_31, %c0_32] : memref<28x128xf32, #tpu.memory_space<vmem>>, vector<2x128xf32>
    tpu.vector_store %arg14[%c0_31, %c0_32], %37 {strides = array<i32>} : memref<28x128xf32, #tpu.memory_space<vmem>>, vector<2x128xf32>,
    %c4_33 = arith.constant 4 : index
    %c0_34 = arith.constant 0 : index
    %39 = vector.load %arg13[%c4_33, %c0_34] : memref<56x128xf32, #tpu.memory_space<vmem>>, vector<2x128xf32>
    %c6_35 = arith.constant 6 : index
    %c0_36 = arith.constant 0 : index
    %40 = vector.load %arg13[%c6_35, %c0_36] : memref<56x128xf32, #tpu.memory_space<vmem>>, vector<2x128xf32>
    %41 = arith.addf %39, %40 : vector<2x128xf32>
    %cst_37 = arith.constant 5.000000e-01 : f32
    %42 = vector.broadcast %cst_37 : f32 to vector<2x128xf32>
    %43 = arith.mulf %42, %41 : vector<2x128xf32>
    %c0_38 = arith.constant 0 : index
    %c0_39 = arith.constant 0 : index
    %44 = vector.load %arg3[%c0_38, %c0_39] : memref<1x128xf32, #tpu.memory_space<vmem>>, vector<1x128xf32>
    %45 = vector.broadcast %44 : vector<1x128xf32> to vector<2x128xf32>
    %46 = arith.addf %43, %45 : vector<2x128xf32>
    %c2_40 = arith.constant 2 : index
    %c0_41 = arith.constant 0 : index
    %47 = vector.load %arg14[%c2_40, %c0_41] : memref<28x128xf32, #tpu.memory_space<vmem>>, vector<2x128xf32>
    tpu.vector_store %arg14[%c2_40, %c0_41], %46 {strides = array<i32>} : memref<28x128xf32, #tpu.memory_space<vmem>>, vector<2x128xf32>,
    %c8_42 = arith.constant 8 : index
    %c0_43 = arith.constant 0 : index
    %48 = vector.load %arg13[%c8_42, %c0_43] : memref<56x128xf32, #tpu.memory_space<vmem>>, vector<2x128xf32>
    %c10 = arith.constant 10 : index
    %c0_44 = arith.constant 0 : index
    %49 = vector.load %arg13[%c10, %c0_44] : memref<56x128xf32, #tpu.memory_space<vmem>>, vector<2x128xf32>
    %50 = arith.addf %48, %49 : vector<2x128xf32>
    %cst_45 = arith.constant 5.000000e-01 : f32
    %51 = vector.broadcast %cst_45 : f32 to vector<2x128xf32>
    %52 = arith.mulf %51, %50 : vector<2x128xf32>
    %c0_46 = arith.constant 0 : index
    %c0_47 = arith.constant 0 : index
    %53 = vector.load %arg3[%c0_46, %c0_47] : memref<1x128xf32, #tpu.memory_space<vmem>>, vector<1x128xf32>
    %54 = vector.broadcast %53 : vector<1x128xf32> to vector<2x128xf32>
    %55 = arith.addf %52, %54 : vector<2x128xf32>
    %c4_48 = arith.constant 4 : index
    %c0_49 = arith.constant 0 : index
    %56 = vector.load %arg14[%c4_48, %c0_49] : memref<28x128xf32, #tpu.memory_space<vmem>>, vector<2x128xf32>
    tpu.vector_store %arg14[%c4_48, %c0_49], %55 {strides = array<i32>} : memref<28x128xf32, #tpu.memory_space<vmem>>, vector<2x128xf32>,
    %c12 = arith.constant 12 : index
    %c0_50 = arith.constant 0 : index
    %57 = vector.load %arg13[%c12, %c0_50] : memref<56x128xf32, #tpu.memory_space<vmem>>, vector<2x128xf32>
    %c14 = arith.constant 14 : index
    %c0_51 = arith.constant 0 : index
    %58 = vector.load %arg13[%c14, %c0_51] : memref<56x128xf32, #tpu.memory_space<vmem>>, vector<2x128xf32>
    %59 = arith.addf %57, %58 : vector<2x128xf32>
    %cst_52 = arith.constant 5.000000e-01 : f32
    %60 = vector.broadcast %cst_52 : f32 to vector<2x128xf32>
    %61 = arith.mulf %60, %59 : vector<2x128xf32>
    %c0_53 = arith.constant 0 : index
    %c0_54 = arith.constant 0 : index
    %62 = vector.load %arg3[%c0_53, %c0_54] : memref<1x128xf32, #tpu.memory_space<vmem>>, vector<1x128xf32>
    %63 = vector.broadcast %62 : vector<1x128xf32> to vector<2x128xf32>
    %64 = arith.addf %61, %63 : vector<2x128xf32>
    %c6_55 = arith.constant 6 : index
    %c0_56 = arith.constant 0 : index
    %65 = vector.load %arg14[%c6_55, %c0_56] : memref<28x128xf32, #tpu.memory_space<vmem>>, vector<2x128xf32>
    tpu.vector_store %arg14[%c6_55, %c0_56], %64 {strides = array<i32>} : memref<28x128xf32, #tpu.memory_space<vmem>>, vector<2x128xf32>,
    %c16 = arith.constant 16 : index
    %c0_57 = arith.constant 0 : index
    %66 = vector.load %arg13[%c16, %c0_57] : memref<56x128xf32, #tpu.memory_space<vmem>>, vector<2x128xf32>
    %c18 = arith.constant 18 : index
    %c0_58 = arith.constant 0 : index
    %67 = vector.load %arg13[%c18, %c0_58] : memref<56x128xf32, #tpu.memory_space<vmem>>, vector<2x128xf32>
    %68 = arith.addf %66, %67 : vector<2x128xf32>
    %cst_59 = arith.constant 5.000000e-01 : f32
    %69 = vector.broadcast %cst_59 : f32 to vector<2x128xf32>
    %70 = arith.mulf %69, %68 : vector<2x128xf32>
    %c0_60 = arith.constant 0 : index
    %c0_61 = arith.constant 0 : index
    %71 = vector.load %arg3[%c0_60, %c0_61] : memref<1x128xf32, #tpu.memory_space<vmem>>, vector<1x128xf32>
    %72 = vector.broadcast %71 : vector<1x128xf32> to vector<2x128xf32>
    %73 = arith.addf %70, %72 : vector<2x128xf32>
    %c8_62 = arith.constant 8 : index
    %c0_63 = arith.constant 0 : index
    %74 = vector.load %arg14[%c8_62, %c0_63] : memref<28x128xf32, #tpu.memory_space<vmem>>, vector<2x128xf32>
    tpu.vector_store %arg14[%c8_62, %c0_63], %73 {strides = array<i32>} : memref<28x128xf32, #tpu.memory_space<vmem>>, vector<2x128xf32>,
    %c20 = arith.constant 20 : index
    %c0_64 = arith.constant 0 : index
    %75 = vector.load %arg13[%c20, %c0_64] : memref<56x128xf32, #tpu.memory_space<vmem>>, vector<2x128xf32>
    %c22 = arith.constant 22 : index
    %c0_65 = arith.constant 0 : index
    %76 = vector.load %arg13[%c22, %c0_65] : memref<56x128xf32, #tpu.memory_space<vmem>>, vector<2x128xf32>
    %77 = arith.addf %75, %76 : vector<2x128xf32>
    %cst_66 = arith.constant 5.000000e-01 : f32
    %78 = vector.broadcast %cst_66 : f32 to vector<2x128xf32>
    %79 = arith.mulf %78, %77 : vector<2x128xf32>
    %c0_67 = arith.constant 0 : index
    %c0_68 = arith.constant 0 : index
    %80 = vector.load %arg3[%c0_67, %c0_68] : memref<1x128xf32, #tpu.memory_space<vmem>>, vector<1x128xf32>
    %81 = vector.broadcast %80 : vector<1x128xf32> to vector<2x128xf32>
    %82 = arith.addf %79, %81 : vector<2x128xf32>
    %c10_69 = arith.constant 10 : index
    %c0_70 = arith.constant 0 : index
    %83 = vector.load %arg14[%c10_69, %c0_70] : memref<28x128xf32, #tpu.memory_space<vmem>>, vector<2x128xf32>
    tpu.vector_store %arg14[%c10_69, %c0_70], %82 {strides = array<i32>} : memref<28x128xf32, #tpu.memory_space<vmem>>, vector<2x128xf32>,
    %c24 = arith.constant 24 : index
    %c0_71 = arith.constant 0 : index
    %84 = vector.load %arg13[%c24, %c0_71] : memref<56x128xf32, #tpu.memory_space<vmem>>, vector<2x128xf32>
    %c26 = arith.constant 26 : index
    %c0_72 = arith.constant 0 : index
    %85 = vector.load %arg13[%c26, %c0_72] : memref<56x128xf32, #tpu.memory_space<vmem>>, vector<2x128xf32>
    %86 = arith.addf %84, %85 : vector<2x128xf32>
    %cst_73 = arith.constant 5.000000e-01 : f32
    %87 = vector.broadcast %cst_73 : f32 to vector<2x128xf32>
    %88 = arith.mulf %87, %86 : vector<2x128xf32>
    %c0_74 = arith.constant 0 : index
    %c0_75 = arith.constant 0 : index
    %89 = vector.load %arg3[%c0_74, %c0_75] : memref<1x128xf32, #tpu.memory_space<vmem>>, vector<1x128xf32>
    %90 = vector.broadcast %89 : vector<1x128xf32> to vector<2x128xf32>
    %91 = arith.addf %88, %90 : vector<2x128xf32>
    %c12_76 = arith.constant 12 : index
    %c0_77 = arith.constant 0 : index
    %92 = vector.load %arg14[%c12_76, %c0_77] : memref<28x128xf32, #tpu.memory_space<vmem>>, vector<2x128xf32>
    tpu.vector_store %arg14[%c12_76, %c0_77], %91 {strides = array<i32>} : memref<28x128xf32, #tpu.memory_space<vmem>>, vector<2x128xf32>,
    %c28 = arith.constant 28 : index
    %c0_78 = arith.constant 0 : index
    %93 = vector.load %arg13[%c28, %c0_78] : memref<56x128xf32, #tpu.memory_space<vmem>>, vector<2x128xf32>
    %c30 = arith.constant 30 : index
    %c0_79 = arith.constant 0 : index
    %94 = vector.load %arg13[%c30, %c0_79] : memref<56x128xf32, #tpu.memory_space<vmem>>, vector<2x128xf32>
    %95 = arith.addf %93, %94 : vector<2x128xf32>
    %cst_80 = arith.constant 5.000000e-01 : f32
    %96 = vector.broadcast %cst_80 : f32 to vector<2x128xf32>
    %97 = arith.mulf %96, %95 : vector<2x128xf32>
    %c0_81 = arith.constant 0 : index
    %c0_82 = arith.constant 0 : index
    %98 = vector.load %arg3[%c0_81, %c0_82] : memref<1x128xf32, #tpu.memory_space<vmem>>, vector<1x128xf32>
    %99 = vector.broadcast %98 : vector<1x128xf32> to vector<2x128xf32>
    %100 = arith.addf %97, %99 : vector<2x128xf32>
    %c14_83 = arith.constant 14 : index
    %c0_84 = arith.constant 0 : index
    %101 = vector.load %arg14[%c14_83, %c0_84] : memref<28x128xf32, #tpu.memory_space<vmem>>, vector<2x128xf32>
    tpu.vector_store %arg14[%c14_83, %c0_84], %100 {strides = array<i32>} : memref<28x128xf32, #tpu.memory_space<vmem>>, vector<2x128xf32>,
    %c32 = arith.constant 32 : index
    %c0_85 = arith.constant 0 : index
    %102 = vector.load %arg13[%c32, %c0_85] : memref<56x128xf32, #tpu.memory_space<vmem>>, vector<2x128xf32>
    %c34 = arith.constant 34 : index
    %c0_86 = arith.constant 0 : index
    %103 = vector.load %arg13[%c34, %c0_86] : memref<56x128xf32, #tpu.memory_space<vmem>>, vector<2x128xf32>
    %104 = arith.addf %102, %103 : vector<2x128xf32>
    %cst_87 = arith.constant 5.000000e-01 : f32
    %105 = vector.broadcast %cst_87 : f32 to vector<2x128xf32>
    %106 = arith.mulf %105, %104 : vector<2x128xf32>
    %c0_88 = arith.constant 0 : index
    %c0_89 = arith.constant 0 : index
    %107 = vector.load %arg3[%c0_88, %c0_89] : memref<1x128xf32, #tpu.memory_space<vmem>>, vector<1x128xf32>
    %108 = vector.broadcast %107 : vector<1x128xf32> to vector<2x128xf32>
    %109 = arith.addf %106, %108 : vector<2x128xf32>
    %c16_90 = arith.constant 16 : index
    %c0_91 = arith.constant 0 : index
    %110 = vector.load %arg14[%c16_90, %c0_91] : memref<28x128xf32, #tpu.memory_space<vmem>>, vector<2x128xf32>
    tpu.vector_store %arg14[%c16_90, %c0_91], %109 {strides = array<i32>} : memref<28x128xf32, #tpu.memory_space<vmem>>, vector<2x128xf32>,
    %c36 = arith.constant 36 : index
    %c0_92 = arith.constant 0 : index
    %111 = vector.load %arg13[%c36, %c0_92] : memref<56x128xf32, #tpu.memory_space<vmem>>, vector<2x128xf32>
    %c38 = arith.constant 38 : index
    %c0_93 = arith.constant 0 : index
    %112 = vector.load %arg13[%c38, %c0_93] : memref<56x128xf32, #tpu.memory_space<vmem>>, vector<2x128xf32>
    %113 = arith.addf %111, %112 : vector<2x128xf32>
    %cst_94 = arith.constant 5.000000e-01 : f32
    %114 = vector.broadcast %cst_94 : f32 to vector<2x128xf32>
    %115 = arith.mulf %114, %113 : vector<2x128xf32>
    %c0_95 = arith.constant 0 : index
    %c0_96 = arith.constant 0 : index
    %116 = vector.load %arg3[%c0_95, %c0_96] : memref<1x128xf32, #tpu.memory_space<vmem>>, vector<1x128xf32>
    %117 = vector.broadcast %116 : vector<1x128xf32> to vector<2x128xf32>
    %118 = arith.addf %115, %117 : vector<2x128xf32>
    %c18_97 = arith.constant 18 : index
    %c0_98 = arith.constant 0 : index
    %119 = vector.load %arg14[%c18_97, %c0_98] : memref<28x128xf32, #tpu.memory_space<vmem>>, vector<2x128xf32>
    tpu.vector_store %arg14[%c18_97, %c0_98], %118 {strides = array<i32>} : memref<28x128xf32, #tpu.memory_space<vmem>>, vector<2x128xf32>,
    %c40 = arith.constant 40 : index
    %c0_99 = arith.constant 0 : index
    %120 = vector.load %arg13[%c40, %c0_99] : memref<56x128xf32, #tpu.memory_space<vmem>>, vector<2x128xf32>
    %c42 = arith.constant 42 : index
    %c0_100 = arith.constant 0 : index
    %121 = vector.load %arg13[%c42, %c0_100] : memref<56x128xf32, #tpu.memory_space<vmem>>, vector<2x128xf32>
    %122 = arith.addf %120, %121 : vector<2x128xf32>
    %cst_101 = arith.constant 5.000000e-01 : f32
    %123 = vector.broadcast %cst_101 : f32 to vector<2x128xf32>
    %124 = arith.mulf %123, %122 : vector<2x128xf32>
    %c0_102 = arith.constant 0 : index
    %c0_103 = arith.constant 0 : index
    %125 = vector.load %arg3[%c0_102, %c0_103] : memref<1x128xf32, #tpu.memory_space<vmem>>, vector<1x128xf32>
    %126 = vector.broadcast %125 : vector<1x128xf32> to vector<2x128xf32>
    %127 = arith.addf %124, %126 : vector<2x128xf32>
    %c20_104 = arith.constant 20 : index
    %c0_105 = arith.constant 0 : index
    %128 = vector.load %arg14[%c20_104, %c0_105] : memref<28x128xf32, #tpu.memory_space<vmem>>, vector<2x128xf32>
    tpu.vector_store %arg14[%c20_104, %c0_105], %127 {strides = array<i32>} : memref<28x128xf32, #tpu.memory_space<vmem>>, vector<2x128xf32>,
    %c44 = arith.constant 44 : index
    %c0_106 = arith.constant 0 : index
    %129 = vector.load %arg13[%c44, %c0_106] : memref<56x128xf32, #tpu.memory_space<vmem>>, vector<2x128xf32>
    %c46 = arith.constant 46 : index
    %c0_107 = arith.constant 0 : index
    %130 = vector.load %arg13[%c46, %c0_107] : memref<56x128xf32, #tpu.memory_space<vmem>>, vector<2x128xf32>
    %131 = arith.addf %129, %130 : vector<2x128xf32>
    %cst_108 = arith.constant 5.000000e-01 : f32
    %132 = vector.broadcast %cst_108 : f32 to vector<2x128xf32>
    %133 = arith.mulf %132, %131 : vector<2x128xf32>
    %c0_109 = arith.constant 0 : index
    %c0_110 = arith.constant 0 : index
    %134 = vector.load %arg3[%c0_109, %c0_110] : memref<1x128xf32, #tpu.memory_space<vmem>>, vector<1x128xf32>
    %135 = vector.broadcast %134 : vector<1x128xf32> to vector<2x128xf32>
    %136 = arith.addf %133, %135 : vector<2x128xf32>
    %c22_111 = arith.constant 22 : index
    %c0_112 = arith.constant 0 : index
    %137 = vector.load %arg14[%c22_111, %c0_112] : memref<28x128xf32, #tpu.memory_space<vmem>>, vector<2x128xf32>
    tpu.vector_store %arg14[%c22_111, %c0_112], %136 {strides = array<i32>} : memref<28x128xf32, #tpu.memory_space<vmem>>, vector<2x128xf32>,
    %c48 = arith.constant 48 : index
    %c0_113 = arith.constant 0 : index
    %138 = vector.load %arg13[%c48, %c0_113] : memref<56x128xf32, #tpu.memory_space<vmem>>, vector<2x128xf32>
    %c50 = arith.constant 50 : index
    %c0_114 = arith.constant 0 : index
    %139 = vector.load %arg13[%c50, %c0_114] : memref<56x128xf32, #tpu.memory_space<vmem>>, vector<2x128xf32>
    %140 = arith.addf %138, %139 : vector<2x128xf32>
    %cst_115 = arith.constant 5.000000e-01 : f32
    %141 = vector.broadcast %cst_115 : f32 to vector<2x128xf32>
    %142 = arith.mulf %141, %140 : vector<2x128xf32>
    %c0_116 = arith.constant 0 : index
    %c0_117 = arith.constant 0 : index
    %143 = vector.load %arg3[%c0_116, %c0_117] : memref<1x128xf32, #tpu.memory_space<vmem>>, vector<1x128xf32>
    %144 = vector.broadcast %143 : vector<1x128xf32> to vector<2x128xf32>
    %145 = arith.addf %142, %144 : vector<2x128xf32>
    %c24_118 = arith.constant 24 : index
    %c0_119 = arith.constant 0 : index
    %146 = vector.load %arg14[%c24_118, %c0_119] : memref<28x128xf32, #tpu.memory_space<vmem>>, vector<2x128xf32>
    tpu.vector_store %arg14[%c24_118, %c0_119], %145 {strides = array<i32>} : memref<28x128xf32, #tpu.memory_space<vmem>>, vector<2x128xf32>,
    %c52 = arith.constant 52 : index
    %c0_120 = arith.constant 0 : index
    %147 = vector.load %arg13[%c52, %c0_120] : memref<56x128xf32, #tpu.memory_space<vmem>>, vector<2x128xf32>
    %c54 = arith.constant 54 : index
    %c0_121 = arith.constant 0 : index
    %148 = vector.load %arg13[%c54, %c0_121] : memref<56x128xf32, #tpu.memory_space<vmem>>, vector<2x128xf32>
    %149 = arith.addf %147, %148 : vector<2x128xf32>
    %cst_122 = arith.constant 5.000000e-01 : f32
    %150 = vector.broadcast %cst_122 : f32 to vector<2x128xf32>
    %151 = arith.mulf %150, %149 : vector<2x128xf32>
    %c0_123 = arith.constant 0 : index
    %c0_124 = arith.constant 0 : index
    %152 = vector.load %arg3[%c0_123, %c0_124] : memref<1x128xf32, #tpu.memory_space<vmem>>, vector<1x128xf32>
    %153 = vector.broadcast %152 : vector<1x128xf32> to vector<2x128xf32>
    %154 = arith.addf %151, %153 : vector<2x128xf32>
    %c26_125 = arith.constant 26 : index
    %c0_126 = arith.constant 0 : index
    %155 = vector.load %arg14[%c26_125, %c0_126] : memref<28x128xf32, #tpu.memory_space<vmem>>, vector<2x128xf32>
    tpu.vector_store %arg14[%c26_125, %c0_126], %154 {strides = array<i32>} : memref<28x128xf32, #tpu.memory_space<vmem>>, vector<2x128xf32>,
    %c0_127 = arith.constant 0 : index
    %c0_128 = arith.constant 0 : index
    %156 = vector.load %arg14[%c0_127, %c0_128] : memref<28x128xf32, #tpu.memory_space<vmem>>, vector<20x128xf32>
    %157 = arith.truncf %156 : vector<20x128xf32> to vector<20x128xbf16>
    %c0_129 = arith.constant 0 : index
    %c0_130 = arith.constant 0 : index
    %c0_131 = arith.constant 0 : index
    %158 = vector.load %arg4[%c0_129, %c0_130, %c0_131] : memref<5x128x128xbf16, #tpu.memory_space<vmem>>, vector<1x128x128xbf16>
    %159 = vector.shape_cast %158 : vector<1x128x128xbf16> to vector<128x128xbf16>
    %cst_132 = arith.constant dense<0.000000e+00> : vector<20x128xf32>
    %160 = tpu.matmul %157, %159, %cst_132 {dimension_numbers = #tpu.dot_dimension_numbers<[1], [0], [0], [1], [0, 0, 1, 1], [], []>} : vector<20x128xbf16>, vector<128x128xbf16>, vector<20x128xf32> -> vector<20x128xf32>
    %c2_133 = arith.constant 2 : index
    %c0_134 = arith.constant 0 : index
    %161 = vector.load %arg14[%c2_133, %c0_134] : memref<28x128xf32, #tpu.memory_space<vmem>>, vector<20x128xf32>
    %162 = arith.truncf %161 : vector<20x128xf32> to vector<20x128xbf16>
    %c1_135 = arith.constant 1 : index
    %c0_136 = arith.constant 0 : index
    %c0_137 = arith.constant 0 : index
    %163 = vector.load %arg4[%c1_135, %c0_136, %c0_137] : memref<5x128x128xbf16, #tpu.memory_space<vmem>>, vector<1x128x128xbf16>
    %164 = vector.shape_cast %163 : vector<1x128x128xbf16> to vector<128x128xbf16>
    %cst_138 = arith.constant dense<0.000000e+00> : vector<20x128xf32>
    %165 = tpu.matmul %162, %164, %cst_138 {dimension_numbers = #tpu.dot_dimension_numbers<[1], [0], [0], [1], [0, 0, 1, 1], [], []>} : vector<20x128xbf16>, vector<128x128xbf16>, vector<20x128xf32> -> vector<20x128xf32>
    %166 = arith.addf %160, %165 : vector<20x128xf32>
    %c4_139 = arith.constant 4 : index
    %c0_140 = arith.constant 0 : index
    %167 = vector.load %arg14[%c4_139, %c0_140] : memref<28x128xf32, #tpu.memory_space<vmem>>, vector<20x128xf32>
    %168 = arith.truncf %167 : vector<20x128xf32> to vector<20x128xbf16>
    %c2_141 = arith.constant 2 : index
    %c0_142 = arith.constant 0 : index
    %c0_143 = arith.constant 0 : index
    %169 = vector.load %arg4[%c2_141, %c0_142, %c0_143] : memref<5x128x128xbf16, #tpu.memory_space<vmem>>, vector<1x128x128xbf16>
    %170 = vector.shape_cast %169 : vector<1x128x128xbf16> to vector<128x128xbf16>
    %cst_144 = arith.constant dense<0.000000e+00> : vector<20x128xf32>
    %171 = tpu.matmul %168, %170, %cst_144 {dimension_numbers = #tpu.dot_dimension_numbers<[1], [0], [0], [1], [0, 0, 1, 1], [], []>} : vector<20x128xbf16>, vector<128x128xbf16>, vector<20x128xf32> -> vector<20x128xf32>
    %172 = arith.addf %166, %171 : vector<20x128xf32>
    %c6_145 = arith.constant 6 : index
    %c0_146 = arith.constant 0 : index
    %173 = vector.load %arg14[%c6_145, %c0_146] : memref<28x128xf32, #tpu.memory_space<vmem>>, vector<20x128xf32>
    %174 = arith.truncf %173 : vector<20x128xf32> to vector<20x128xbf16>
    %c3_147 = arith.constant 3 : index
    %c0_148 = arith.constant 0 : index
    %c0_149 = arith.constant 0 : index
    %175 = vector.load %arg4[%c3_147, %c0_148, %c0_149] : memref<5x128x128xbf16, #tpu.memory_space<vmem>>, vector<1x128x128xbf16>
    %176 = vector.shape_cast %175 : vector<1x128x128xbf16> to vector<128x128xbf16>
    %cst_150 = arith.constant dense<0.000000e+00> : vector<20x128xf32>
    %177 = tpu.matmul %174, %176, %cst_150 {dimension_numbers = #tpu.dot_dimension_numbers<[1], [0], [0], [1], [0, 0, 1, 1], [], []>} : vector<20x128xbf16>, vector<128x128xbf16>, vector<20x128xf32> -> vector<20x128xf32>
    %178 = arith.addf %172, %177 : vector<20x128xf32>
    %c8_151 = arith.constant 8 : index
    %c0_152 = arith.constant 0 : index
    %179 = vector.load %arg14[%c8_151, %c0_152] : memref<28x128xf32, #tpu.memory_space<vmem>>, vector<20x128xf32>
    %180 = arith.truncf %179 : vector<20x128xf32> to vector<20x128xbf16>
    %c4_153 = arith.constant 4 : index
    %c0_154 = arith.constant 0 : index
    %c0_155 = arith.constant 0 : index
    %181 = vector.load %arg4[%c4_153, %c0_154, %c0_155] : memref<5x128x128xbf16, #tpu.memory_space<vmem>>, vector<1x128x128xbf16>
    %182 = vector.shape_cast %181 : vector<1x128x128xbf16> to vector<128x128xbf16>
    %cst_156 = arith.constant dense<0.000000e+00> : vector<20x128xf32>
    %183 = tpu.matmul %180, %182, %cst_156 {dimension_numbers = #tpu.dot_dimension_numbers<[1], [0], [0], [1], [0, 0, 1, 1], [], []>} : vector<20x128xbf16>, vector<128x128xbf16>, vector<20x128xf32> -> vector<20x128xf32>
    %184 = arith.addf %178, %183 : vector<20x128xf32>
    %c0_157 = arith.constant 0 : index
    %c0_158 = arith.constant 0 : index
    %185 = vector.load %arg15[%c0_157, %c0_158] : memref<20x128xf32, #tpu.memory_space<vmem>>, vector<20x128xf32>
    tpu.vector_store %arg15[%c0_157, %c0_158], %184 {strides = array<i32>} : memref<20x128xf32, #tpu.memory_space<vmem>>, vector<20x128xf32>,
    %c0_159 = arith.constant 0 : index
    %c0_160 = arith.constant 0 : index
    %186 = vector.load %arg15[%c0_159, %c0_160] : memref<20x128xf32, #tpu.memory_space<vmem>>, vector<2x128xf32>
    %c2_161 = arith.constant 2 : index
    %c0_162 = arith.constant 0 : index
    %187 = vector.load %arg15[%c2_161, %c0_162] : memref<20x128xf32, #tpu.memory_space<vmem>>, vector<2x128xf32>
    %188 = arith.addf %186, %187 : vector<2x128xf32>
    %cst_163 = arith.constant 5.000000e-01 : f32
    %189 = vector.broadcast %cst_163 : f32 to vector<2x128xf32>
    %190 = arith.mulf %189, %188 : vector<2x128xf32>
    %c0_164 = arith.constant 0 : index
    %c0_165 = arith.constant 0 : index
    %191 = vector.load %arg5[%c0_164, %c0_165] : memref<1x128xf32, #tpu.memory_space<vmem>>, vector<1x128xf32>
    %192 = vector.broadcast %191 : vector<1x128xf32> to vector<2x128xf32>
    %193 = arith.addf %190, %192 : vector<2x128xf32>
    %c0_166 = arith.constant 0 : index
    %c0_167 = arith.constant 0 : index
    %194 = vector.load %arg16[%c0_166, %c0_167] : memref<10x128xf32, #tpu.memory_space<vmem>>, vector<2x128xf32>
    tpu.vector_store %arg16[%c0_166, %c0_167], %193 {strides = array<i32>} : memref<10x128xf32, #tpu.memory_space<vmem>>, vector<2x128xf32>,
    %c4_168 = arith.constant 4 : index
    %c0_169 = arith.constant 0 : index
    %195 = vector.load %arg15[%c4_168, %c0_169] : memref<20x128xf32, #tpu.memory_space<vmem>>, vector<2x128xf32>
    %c6_170 = arith.constant 6 : index
    %c0_171 = arith.constant 0 : index
    %196 = vector.load %arg15[%c6_170, %c0_171] : memref<20x128xf32, #tpu.memory_space<vmem>>, vector<2x128xf32>
    %197 = arith.addf %195, %196 : vector<2x128xf32>
    %cst_172 = arith.constant 5.000000e-01 : f32
    %198 = vector.broadcast %cst_172 : f32 to vector<2x128xf32>
    %199 = arith.mulf %198, %197 : vector<2x128xf32>
    %c0_173 = arith.constant 0 : index
    %c0_174 = arith.constant 0 : index
    %200 = vector.load %arg5[%c0_173, %c0_174] : memref<1x128xf32, #tpu.memory_space<vmem>>, vector<1x128xf32>
    %201 = vector.broadcast %200 : vector<1x128xf32> to vector<2x128xf32>
    %202 = arith.addf %199, %201 : vector<2x128xf32>
    %c2_175 = arith.constant 2 : index
    %c0_176 = arith.constant 0 : index
    %203 = vector.load %arg16[%c2_175, %c0_176] : memref<10x128xf32, #tpu.memory_space<vmem>>, vector<2x128xf32>
    tpu.vector_store %arg16[%c2_175, %c0_176], %202 {strides = array<i32>} : memref<10x128xf32, #tpu.memory_space<vmem>>, vector<2x128xf32>,
    %c8_177 = arith.constant 8 : index
    %c0_178 = arith.constant 0 : index
    %204 = vector.load %arg15[%c8_177, %c0_178] : memref<20x128xf32, #tpu.memory_space<vmem>>, vector<2x128xf32>
    %c10_179 = arith.constant 10 : index
    %c0_180 = arith.constant 0 : index
    %205 = vector.load %arg15[%c10_179, %c0_180] : memref<20x128xf32, #tpu.memory_space<vmem>>, vector<2x128xf32>
    %206 = arith.addf %204, %205 : vector<2x128xf32>
    %cst_181 = arith.constant 5.000000e-01 : f32
    %207 = vector.broadcast %cst_181 : f32 to vector<2x128xf32>
    %208 = arith.mulf %207, %206 : vector<2x128xf32>
    %c0_182 = arith.constant 0 : index
    %c0_183 = arith.constant 0 : index
    %209 = vector.load %arg5[%c0_182, %c0_183] : memref<1x128xf32, #tpu.memory_space<vmem>>, vector<1x128xf32>
    %210 = vector.broadcast %209 : vector<1x128xf32> to vector<2x128xf32>
    %211 = arith.addf %208, %210 : vector<2x128xf32>
    %c4_184 = arith.constant 4 : index
    %c0_185 = arith.constant 0 : index
    %212 = vector.load %arg16[%c4_184, %c0_185] : memref<10x128xf32, #tpu.memory_space<vmem>>, vector<2x128xf32>
    tpu.vector_store %arg16[%c4_184, %c0_185], %211 {strides = array<i32>} : memref<10x128xf32, #tpu.memory_space<vmem>>, vector<2x128xf32>,
    %c12_186 = arith.constant 12 : index
    %c0_187 = arith.constant 0 : index
    %213 = vector.load %arg15[%c12_186, %c0_187] : memref<20x128xf32, #tpu.memory_space<vmem>>, vector<2x128xf32>
    %c14_188 = arith.constant 14 : index
    %c0_189 = arith.constant 0 : index
    %214 = vector.load %arg15[%c14_188, %c0_189] : memref<20x128xf32, #tpu.memory_space<vmem>>, vector<2x128xf32>
    %215 = arith.addf %213, %214 : vector<2x128xf32>
    %cst_190 = arith.constant 5.000000e-01 : f32
    %216 = vector.broadcast %cst_190 : f32 to vector<2x128xf32>
    %217 = arith.mulf %216, %215 : vector<2x128xf32>
    %c0_191 = arith.constant 0 : index
    %c0_192 = arith.constant 0 : index
    %218 = vector.load %arg5[%c0_191, %c0_192] : memref<1x128xf32, #tpu.memory_space<vmem>>, vector<1x128xf32>
    %219 = vector.broadcast %218 : vector<1x128xf32> to vector<2x128xf32>
    %220 = arith.addf %217, %219 : vector<2x128xf32>
    %c6_193 = arith.constant 6 : index
    %c0_194 = arith.constant 0 : index
    %221 = vector.load %arg16[%c6_193, %c0_194] : memref<10x128xf32, #tpu.memory_space<vmem>>, vector<2x128xf32>
    tpu.vector_store %arg16[%c6_193, %c0_194], %220 {strides = array<i32>} : memref<10x128xf32, #tpu.memory_space<vmem>>, vector<2x128xf32>,
    %c16_195 = arith.constant 16 : index
    %c0_196 = arith.constant 0 : index
    %222 = vector.load %arg15[%c16_195, %c0_196] : memref<20x128xf32, #tpu.memory_space<vmem>>, vector<2x128xf32>
    %c18_197 = arith.constant 18 : index
    %c0_198 = arith.constant 0 : index
    %223 = vector.load %arg15[%c18_197, %c0_198] : memref<20x128xf32, #tpu.memory_space<vmem>>, vector<2x128xf32>
    %224 = arith.addf %222, %223 : vector<2x128xf32>
    %cst_199 = arith.constant 5.000000e-01 : f32
    %225 = vector.broadcast %cst_199 : f32 to vector<2x128xf32>
    %226 = arith.mulf %225, %224 : vector<2x128xf32>
    %c0_200 = arith.constant 0 : index
    %c0_201 = arith.constant 0 : index
    %227 = vector.load %arg5[%c0_200, %c0_201] : memref<1x128xf32, #tpu.memory_space<vmem>>, vector<1x128xf32>
    %228 = vector.broadcast %227 : vector<1x128xf32> to vector<2x128xf32>
    %229 = arith.addf %226, %228 : vector<2x128xf32>
    %c8_202 = arith.constant 8 : index
    %c0_203 = arith.constant 0 : index
    %230 = vector.load %arg16[%c8_202, %c0_203] : memref<10x128xf32, #tpu.memory_space<vmem>>, vector<2x128xf32>
    tpu.vector_store %arg16[%c8_202, %c0_203], %229 {strides = array<i32>} : memref<10x128xf32, #tpu.memory_space<vmem>>, vector<2x128xf32>,
    %c0_204 = arith.constant 0 : index
    %c0_205 = arith.constant 0 : index
    %231 = vector.load %arg16[%c0_204, %c0_205] : memref<10x128xf32, #tpu.memory_space<vmem>>, vector<2x128xf32>
    %232 = arith.truncf %231 : vector<2x128xf32> to vector<2x128xbf16>
    %c0_206 = arith.constant 0 : index
    %c0_207 = arith.constant 0 : index
    %c0_208 = arith.constant 0 : index
    %233 = vector.load %arg6[%c0_206, %c0_207, %c0_208] : memref<5x128x128xbf16, #tpu.memory_space<vmem>>, vector<1x128x128xbf16>
    %234 = vector.shape_cast %233 : vector<1x128x128xbf16> to vector<128x128xbf16>
    %cst_209 = arith.constant dense<0.000000e+00> : vector<2x128xf32>
    %235 = tpu.matmul %232, %234, %cst_209 {dimension_numbers = #tpu.dot_dimension_numbers<[1], [0], [0], [1], [0, 0, 1, 1], [], []>} : vector<2x128xbf16>, vector<128x128xbf16>, vector<2x128xf32> -> vector<2x128xf32>
    %c2_210 = arith.constant 2 : index
    %c0_211 = arith.constant 0 : index
    %236 = vector.load %arg16[%c2_210, %c0_211] : memref<10x128xf32, #tpu.memory_space<vmem>>, vector<2x128xf32>
    %237 = arith.truncf %236 : vector<2x128xf32> to vector<2x128xbf16>
    %c1_212 = arith.constant 1 : index
    %c0_213 = arith.constant 0 : index
    %c0_214 = arith.constant 0 : index
    %238 = vector.load %arg6[%c1_212, %c0_213, %c0_214] : memref<5x128x128xbf16, #tpu.memory_space<vmem>>, vector<1x128x128xbf16>
    %239 = vector.shape_cast %238 : vector<1x128x128xbf16> to vector<128x128xbf16>
    %cst_215 = arith.constant dense<0.000000e+00> : vector<2x128xf32>
    %240 = tpu.matmul %237, %239, %cst_215 {dimension_numbers = #tpu.dot_dimension_numbers<[1], [0], [0], [1], [0, 0, 1, 1], [], []>} : vector<2x128xbf16>, vector<128x128xbf16>, vector<2x128xf32> -> vector<2x128xf32>
    %241 = arith.addf %235, %240 : vector<2x128xf32>
    %c4_216 = arith.constant 4 : index
    %c0_217 = arith.constant 0 : index
    %242 = vector.load %arg16[%c4_216, %c0_217] : memref<10x128xf32, #tpu.memory_space<vmem>>, vector<2x128xf32>
    %243 = arith.truncf %242 : vector<2x128xf32> to vector<2x128xbf16>
    %c2_218 = arith.constant 2 : index
    %c0_219 = arith.constant 0 : index
    %c0_220 = arith.constant 0 : index
    %244 = vector.load %arg6[%c2_218, %c0_219, %c0_220] : memref<5x128x128xbf16, #tpu.memory_space<vmem>>, vector<1x128x128xbf16>
    %245 = vector.shape_cast %244 : vector<1x128x128xbf16> to vector<128x128xbf16>
    %cst_221 = arith.constant dense<0.000000e+00> : vector<2x128xf32>
    %246 = tpu.matmul %243, %245, %cst_221 {dimension_numbers = #tpu.dot_dimension_numbers<[1], [0], [0], [1], [0, 0, 1, 1], [], []>} : vector<2x128xbf16>, vector<128x128xbf16>, vector<2x128xf32> -> vector<2x128xf32>
    %247 = arith.addf %241, %246 : vector<2x128xf32>
    %c6_222 = arith.constant 6 : index
    %c0_223 = arith.constant 0 : index
    %248 = vector.load %arg16[%c6_222, %c0_223] : memref<10x128xf32, #tpu.memory_space<vmem>>, vector<2x128xf32>
    %249 = arith.truncf %248 : vector<2x128xf32> to vector<2x128xbf16>
    %c3_224 = arith.constant 3 : index
    %c0_225 = arith.constant 0 : index
    %c0_226 = arith.constant 0 : index
    %250 = vector.load %arg6[%c3_224, %c0_225, %c0_226] : memref<5x128x128xbf16, #tpu.memory_space<vmem>>, vector<1x128x128xbf16>
    %251 = vector.shape_cast %250 : vector<1x128x128xbf16> to vector<128x128xbf16>
    %cst_227 = arith.constant dense<0.000000e+00> : vector<2x128xf32>
    %252 = tpu.matmul %249, %251, %cst_227 {dimension_numbers = #tpu.dot_dimension_numbers<[1], [0], [0], [1], [0, 0, 1, 1], [], []>} : vector<2x128xbf16>, vector<128x128xbf16>, vector<2x128xf32> -> vector<2x128xf32>
    %253 = arith.addf %247, %252 : vector<2x128xf32>
    %c8_228 = arith.constant 8 : index
    %c0_229 = arith.constant 0 : index
    %254 = vector.load %arg16[%c8_228, %c0_229] : memref<10x128xf32, #tpu.memory_space<vmem>>, vector<2x128xf32>
    %255 = arith.truncf %254 : vector<2x128xf32> to vector<2x128xbf16>
    %c4_230 = arith.constant 4 : index
    %c0_231 = arith.constant 0 : index
    %c0_232 = arith.constant 0 : index
    %256 = vector.load %arg6[%c4_230, %c0_231, %c0_232] : memref<5x128x128xbf16, #tpu.memory_space<vmem>>, vector<1x128x128xbf16>
    %257 = vector.shape_cast %256 : vector<1x128x128xbf16> to vector<128x128xbf16>
    %cst_233 = arith.constant dense<0.000000e+00> : vector<2x128xf32>
    %258 = tpu.matmul %255, %257, %cst_233 {dimension_numbers = #tpu.dot_dimension_numbers<[1], [0], [0], [1], [0, 0, 1, 1], [], []>} : vector<2x128xbf16>, vector<128x128xbf16>, vector<2x128xf32> -> vector<2x128xf32>
    %259 = arith.addf %253, %258 : vector<2x128xf32>
    %c0_234 = arith.constant 0 : index
    %c0_235 = arith.constant 0 : index
    %260 = vector.load %arg7[%c0_234, %c0_235] : memref<1x128xf32, #tpu.memory_space<vmem>>, vector<1x128xf32>
    %261 = vector.broadcast %260 : vector<1x128xf32> to vector<2x128xf32>
    %262 = arith.addf %259, %261 : vector<2x128xf32>
    %cst_236 = arith.constant 0.000000e+00 : f32
    %263 = vector.broadcast %cst_236 : f32 to vector<2x128xf32>
    %264 = arith.maximumf %262, %263 : vector<2x128xf32>
    %265 = arith.truncf %264 : vector<2x128xf32> to vector<2x128xbf16>
    %c0_237 = arith.constant 0 : index
    %c0_238 = arith.constant 0 : index
    %266 = vector.load %arg8[%c0_237, %c0_238] : memref<128x128xbf16, #tpu.memory_space<vmem>>, vector<128x128xbf16>
    %cst_239 = arith.constant dense<0.000000e+00> : vector<2x128xf32>
    %267 = tpu.matmul %265, %266, %cst_239 {dimension_numbers = #tpu.dot_dimension_numbers<[1], [0], [0], [1], [0, 0, 1, 1], [], []>} : vector<2x128xbf16>, vector<128x128xbf16>, vector<2x128xf32> -> vector<2x128xf32>
    %c0_240 = arith.constant 0 : index
    %c0_241 = arith.constant 0 : index
    %268 = vector.load %arg9[%c0_240, %c0_241] : memref<1x128xf32, #tpu.memory_space<vmem>>, vector<1x128xf32>
    %269 = vector.broadcast %268 : vector<1x128xf32> to vector<2x128xf32>
    %270 = arith.addf %267, %269 : vector<2x128xf32>
    %cst_242 = arith.constant 0.000000e+00 : f32
    %271 = vector.broadcast %cst_242 : f32 to vector<2x128xf32>
    %272 = arith.maximumf %270, %271 : vector<2x128xf32>
    %273 = arith.truncf %272 : vector<2x128xf32> to vector<2x128xbf16>
    %c0_243 = arith.constant 0 : index
    %c0_244 = arith.constant 0 : index
    %274 = vector.load %arg10[%c0_243, %c0_244] : memref<128x10xbf16, #tpu.memory_space<vmem>>, vector<128x10xbf16>
    %cst_245 = arith.constant dense<0.000000e+00> : vector<2x10xf32>
    %275 = tpu.matmul %273, %274, %cst_245 {dimension_numbers = #tpu.dot_dimension_numbers<[1], [0], [0], [1], [0, 0, 1, 1], [], []>} : vector<2x128xbf16>, vector<128x10xbf16>, vector<2x10xf32> -> vector<2x10xf32>
    %c0_246 = arith.constant 0 : index
    %c0_247 = arith.constant 0 : index
    %276 = vector.load %arg11[%c0_246, %c0_247] : memref<1x10xf32, #tpu.memory_space<vmem>>, vector<1x10xf32>
    %277 = vector.broadcast %276 : vector<1x10xf32> to vector<2x10xf32>
    %278 = arith.addf %275, %277 : vector<2x10xf32>
    %c0_248 = arith.constant 0 : index
    %c0_249 = arith.constant 0 : index
    %279 = vector.load %arg12[%c0_248, %c0_249] : memref<2x10xf32, #tpu.memory_space<vmem>>, vector<2x10xf32>
    tpu.vector_store %arg12[%c0_248, %c0_249], %278 {strides = array<i32>} : memref<2x10xf32, #tpu.memory_space<vmem>>, vector<2x10xf32>,
    return
  }
  func.func @transform_0(%arg0: i32) -> (i32, i32) {
    %c0_i32 = arith.constant 0 : i32
    %c0_i32_0 = arith.constant 0 : i32
    return %arg0, %c0_i32 : i32, i32
  }
  func.func @transform_1(%arg0: i32) -> (i32, i32, i32) {
    %c0_i32 = arith.constant 0 : i32
    %c0_i32_0 = arith.constant 0 : i32
    %c0_i32_1 = arith.constant 0 : i32
    %c0_i32_2 = arith.constant 0 : i32
    return %c0_i32, %c0_i32_0, %c0_i32_1 : i32, i32, i32
  }
  func.func @transform_2(%arg0: i32) -> (i32, i32) {
    %c0_i32 = arith.constant 0 : i32
    %c0_i32_0 = arith.constant 0 : i32
    %c0_i32_1 = arith.constant 0 : i32
    return %c0_i32, %c0_i32_0 : i32, i32
  }
  func.func @transform_3(%arg0: i32) -> (i32, i32, i32) {
    %c0_i32 = arith.constant 0 : i32
    %c0_i32_0 = arith.constant 0 : i32
    %c0_i32_1 = arith.constant 0 : i32
    %c0_i32_2 = arith.constant 0 : i32
    return %c0_i32, %c0_i32_0, %c0_i32_1 : i32, i32, i32
  }
  func.func @transform_4(%arg0: i32) -> (i32, i32) {
    %c0_i32 = arith.constant 0 : i32
    %c0_i32_0 = arith.constant 0 : i32
    %c0_i32_1 = arith.constant 0 : i32
    return %c0_i32, %c0_i32_0 : i32, i32
  }
  func.func @transform_5(%arg0: i32) -> (i32, i32, i32) {
    %c0_i32 = arith.constant 0 : i32
    %c0_i32_0 = arith.constant 0 : i32
    %c0_i32_1 = arith.constant 0 : i32
    %c0_i32_2 = arith.constant 0 : i32
    return %c0_i32, %c0_i32_0, %c0_i32_1 : i32, i32, i32
  }
  func.func @transform_6(%arg0: i32) -> (i32, i32) {
    %c0_i32 = arith.constant 0 : i32
    %c0_i32_0 = arith.constant 0 : i32
    %c0_i32_1 = arith.constant 0 : i32
    return %c0_i32, %c0_i32_0 : i32, i32
  }
  func.func @transform_7(%arg0: i32) -> (i32, i32) {
    %c0_i32 = arith.constant 0 : i32
    %c0_i32_0 = arith.constant 0 : i32
    %c0_i32_1 = arith.constant 0 : i32
    return %c0_i32, %c0_i32_0 : i32, i32
  }
  func.func @transform_8(%arg0: i32) -> (i32, i32) {
    %c0_i32 = arith.constant 0 : i32
    %c0_i32_0 = arith.constant 0 : i32
    %c0_i32_1 = arith.constant 0 : i32
    return %c0_i32, %c0_i32_0 : i32, i32
  }
  func.func @transform_9(%arg0: i32) -> (i32, i32) {
    %c0_i32 = arith.constant 0 : i32
    %c0_i32_0 = arith.constant 0 : i32
    %c0_i32_1 = arith.constant 0 : i32
    return %c0_i32, %c0_i32_0 : i32, i32
  }
  func.func @transform_10(%arg0: i32) -> (i32, i32) {
    %c0_i32 = arith.constant 0 : i32
    %c0_i32_0 = arith.constant 0 : i32
    %c0_i32_1 = arith.constant 0 : i32
    return %c0_i32, %c0_i32_0 : i32, i32
  }
  func.func @transform_11(%arg0: i32) -> (i32, i32) {
    %c0_i32 = arith.constant 0 : i32
    %c0_i32_0 = arith.constant 0 : i32
    return %arg0, %c0_i32 : i32, i32
  }
}

</mosaic_0001>

<llo_original>
// kernel: lenet5_forward.1
$region0: #{lenet5_forward.1}
  #allocation0 [shape = 'u32[]', space=smem, size = 0x4, offset = 0x4, fixed_abs, tag = 'smem constant byte address 0x4 - core index']
  #allocation1 [shape = 'u32[144,128]{1,0:T(1,128)}', space=vmem, size = 0x12000, scoped, tag = 'internal scratch']
  #allocation2 [shape = 'f32[56,128]{1,0:T(8,128)}', space=vmem, size = 0x7000, scoped, tag = 'scratch operand']
  #allocation3 [shape = 'f32[28,128]{1,0:T(8,128)}', space=vmem, size = 0x4000, scoped, tag = 'scratch operand']
  #allocation4 [shape = 'f32[20,128]{1,0:T(8,128)}', space=vmem, size = 0x3000, scoped, tag = 'scratch operand']
  #allocation5 [shape = 'f32[10,128]{1,0:T(8,128)}', space=vmem, size = 0x2000, scoped, tag = 'scratch operand']
  %s0 = inlined_call_operand.vmem [shape: f32[64,128], index: 0, kind: input, shape index: {}]
  %s1 = inlined_call_operand.vmem [shape: bf16[5,128,128], index: 1, kind: input, shape index: {}]
  %s2 = inlined_call_operand.vmem [shape: f32[1,128], index: 2, kind: input, shape index: {}]
  %s3 = inlined_call_operand.vmem [shape: bf16[5,128,128], index: 3, kind: input, shape index: {}]
  %s4 = inlined_call_operand.vmem [shape: f32[1,128], index: 4, kind: input, shape index: {}]
  %s5 = inlined_call_operand.vmem [shape: bf16[5,128,128], index: 5, kind: input, shape index: {}]
  %s6 = inlined_call_operand.hbm [shape: f32[1,128], index: 6, kind: input, shape index: {}]
  %s7 = inlined_call_operand.hbm [shape: bf16[128,128], index: 7, kind: input, shape index: {}]
  %s8 = inlined_call_operand.hbm [shape: f32[1,128], index: 8, kind: input, shape index: {}]
  %s9 = inlined_call_operand.vmem [shape: bf16[128,10], index: 9, kind: input, shape index: {}]
  %s10 = inlined_call_operand.hbm [shape: f32[1,10], index: 10, kind: input, shape index: {}]
  %s11 = inlined_call_operand.hbm [shape: f32[2,10], index: 11, kind: output, shape index: {}]
  %s12 = sld [smem:[#allocation0]]
  $region70: #{lenet5_forward.1} parent=0
    _
  %s14 = ssub.s32 1, %s12
  %s15 = scalar_select 0, %s14, %s12
  $region1: #{lenet5_forward.1} parent=0
    #allocation6 [shape = 'u8[512]{0}', space=vmem, size = 0x400, scoped, tag = 'input window, operand 6, single buffered']
    #allocation7 [shape = 's32[1]{0}', space=sflag, size = 0x4, scoped, tag = 'scoped memory for lenet5_forward.1']
    #allocation8 [shape = 's32[1]{0}', space=sflag, size = 0x4, scoped, tag = 'scoped memory for lenet5_forward.1']
    #allocation9 [shape = 'u8[32768]{0}', space=vmem, size = 0x8000, scoped, tag = 'input window, operand 7, single buffered']
    #allocation10 [shape = 's32[1]{0}', space=sflag, size = 0x4, scoped, tag = 'scoped memory for lenet5_forward.1']
    #allocation11 [shape = 'u8[512]{0}', space=vmem, size = 0x400, scoped, tag = 'input window, operand 8, single buffered']
    #allocation12 [shape = 'u8[512]{0}', space=vmem, size = 0x400, scoped, tag = 'input window, operand 10, single buffered']
    #allocation13 [shape = 's32[1]{0}', space=sflag, size = 0x4, scoped, tag = 'scoped memory for lenet5_forward.1']
    #allocation14 [shape = 'u8[1024]{0}', space=vmem, size = 0x400, scoped, tag = 'output window, operand 0, single buffered']
    %16 = vsyncpa [#allocation7], 0
    %17 = vsyncpa [#allocation10], 0
    %18 = vsyncpa [#allocation13], 0
    %19 = vsyncpa [#allocation8], 0
    // Predicated region
    $region2: #{lenet5_forward.1} parent=1 // pred_check
      _
    $region3: #{lenet5_forward.1} parent=1 // pred_check_branch
      %21 = sbr.rel (0) target = $region5
    $region4: #{lenet5_forward.1} parent=1 // pred_region
      _
    $region5: #{lenet5_forward.1} parent=1 // pred_fallthru
      _
    // Predicated region
    $region6: #{lenet5_forward.1} parent=1 // pred_check
      _
    $region7: #{lenet5_forward.1} parent=1 // pred_check_branch
      %23 = sbr.rel (0) target = $region9
    $region8: #{lenet5_forward.1} parent=1 // pred_region
      _
    $region9: #{lenet5_forward.1} parent=1 // pred_fallthru
      _
    // Predicated region
    $region10: #{lenet5_forward.1} parent=1 // pred_check
      _
    $region11: #{lenet5_forward.1} parent=1 // pred_check_branch
      %25 = sbr.rel (0) target = $region13
    $region12: #{lenet5_forward.1} parent=1 // pred_region
      _
    $region13: #{lenet5_forward.1} parent=1 // pred_fallthru
      _
    // Predicated region
    $region14: #{lenet5_forward.1} parent=1 // pred_check
      _
    $region15: #{lenet5_forward.1} parent=1 // pred_check_branch
      %27 = sbr.rel (0) target = $region17
    $region16: #{lenet5_forward.1} parent=1 // pred_region
      _
    $region17: #{lenet5_forward.1} parent=1 // pred_fallthru
      _
    // Predicated region
    $region18: #{lenet5_forward.1} parent=1 // pred_check
      _
    $region19: #{lenet5_forward.1} parent=1 // pred_check_branch
      %29 = sbr.rel (0) target = $region21
    $region20: #{lenet5_forward.1} parent=1 // pred_region
      _
    $region21: #{lenet5_forward.1} parent=1 // pred_fallthru
      _
    // Predicated region
    $region22: #{lenet5_forward.1} parent=1 // pred_check
      _
    $region23: #{lenet5_forward.1} parent=1 // pred_check_branch
      %31 = sbr.rel (0) target = $region25
    $region24: #{lenet5_forward.1} parent=1 // pred_region
      _
    $region25: #{lenet5_forward.1} parent=1 // pred_fallthru
      _
    // Predicated region
    $region26: #{lenet5_forward.1} parent=1 // pred_check
      _
    $region27: #{lenet5_forward.1} parent=1 // pred_check_branch
      %33 = sbr.rel (0) target = $region29
    $region28: #{lenet5_forward.1} parent=1 // pred_region
      %s35 = ssub.s32 16, 16
      %36 = vsyncadd [#allocation7], %s35
      %s38 = sshll.u32 [#allocation6], 4
      %s39 = int_to_ptr.vmem [resolvable:$true] %s38
      %41 = dma.hbm_to_vmem [thread:$0]  %s6, 16, %s39, [#allocation7]
    $region29: #{lenet5_forward.1} parent=1 // pred_fallthru
      _
    // Predicated region
    $region30: #{lenet5_forward.1} parent=1 // pred_check
      _
    $region31: #{lenet5_forward.1} parent=1 // pred_check_branch
      %43 = sbr.rel (0) target = $region33
    $region32: #{lenet5_forward.1} parent=1 // pred_region
      %s45 = ssub.s32 1024, 1024
      %46 = vsyncadd [#allocation10], %s45
      %s47 = sshll.u32 [#allocation9], 4
      %s48 = int_to_ptr.vmem [resolvable:$true] %s47
      %53 = dma.hbm_to_vmem [thread:$0]  %s7, 1024, %s48, [#allocation10], 64, 64, 4
    $region33: #{lenet5_forward.1} parent=1 // pred_fallthru
      _
    // Predicated region
    $region34: #{lenet5_forward.1} parent=1 // pred_check
      _
    $region35: #{lenet5_forward.1} parent=1 // pred_check_branch
      %55 = sbr.rel (0) target = $region37
    $region36: #{lenet5_forward.1} parent=1 // pred_region
      %s57 = ssub.s32 16, 16
      %58 = vsyncadd [#allocation10], %s57
      %s60 = sshll.u32 [#allocation11], 4
      %s61 = int_to_ptr.vmem [resolvable:$true] %s60
      %63 = dma.hbm_to_vmem [thread:$0]  %s8, 16, %s61, [#allocation10]
    $region37: #{lenet5_forward.1} parent=1 // pred_fallthru
      _
    // Predicated region
    $region38: #{lenet5_forward.1} parent=1 // pred_check
      _
    $region39: #{lenet5_forward.1} parent=1 // pred_check_branch
      %65 = sbr.rel (0) target = $region41
    $region40: #{lenet5_forward.1} parent=1 // pred_region
      _
    $region41: #{lenet5_forward.1} parent=1 // pred_fallthru
      _
    // Predicated region
    $region42: #{lenet5_forward.1} parent=1 // pred_check
      _
    $region43: #{lenet5_forward.1} parent=1 // pred_check_branch
      %67 = sbr.rel (0) target = $region45
    $region44: #{lenet5_forward.1} parent=1 // pred_region
      %s69 = ssub.s32 16, 16
      %70 = vsyncadd [#allocation13], %s69
      %s72 = sshll.u32 [#allocation12], 4
      %s73 = int_to_ptr.vmem [resolvable:$true] %s72
      %75 = dma.hbm_to_vmem [thread:$0]  %s10, 16, %s73, [#allocation13]
    $region45: #{lenet5_forward.1} parent=1 // pred_fallthru
      _
    // Predicated region
    $region46: #{lenet5_forward.1} parent=1 // pred_check
      _
    $region47: #{lenet5_forward.1} parent=1 // pred_check_branch
      %77 = sbr.rel (0) target = $region49
    $region48: #{lenet5_forward.1} parent=1 // pred_region
      %78 = dma.done [#allocation7], 16
    $region49: #{lenet5_forward.1} parent=1 // pred_fallthru
      _
    // Predicated region
    $region50: #{lenet5_forward.1} parent=1 // pred_check
      _
    $region51: #{lenet5_forward.1} parent=1 // pred_check_branch
      %80 = sbr.rel (0) target = $region53
    $region52: #{lenet5_forward.1} parent=1 // pred_region
      %81 = dma.done [#allocation10], 1024
    $region53: #{lenet5_forward.1} parent=1 // pred_fallthru
      _
    // Predicated region
    $region54: #{lenet5_forward.1} parent=1 // pred_check
      _
    $region55: #{lenet5_forward.1} parent=1 // pred_check_branch
      %83 = sbr.rel (0) target = $region57
    $region56: #{lenet5_forward.1} parent=1 // pred_region
      %84 = dma.done [#allocation10], 16
    $region57: #{lenet5_forward.1} parent=1 // pred_fallthru
      _
    // Predicated region
    $region58: #{lenet5_forward.1} parent=1 // pred_check
      _
    $region59: #{lenet5_forward.1} parent=1 // pred_check_branch
      %86 = sbr.rel (0) target = $region61
    $region60: #{lenet5_forward.1} parent=1 // pred_region
      %87 = dma.done [#allocation13], 16
    $region61: #{lenet5_forward.1} parent=1 // pred_fallthru
      _
    %v89 = vld [vmem:[%s0] sm:$0xff]
    %v90 = vld [vmem:[%s0 + $0x8] sm:$0xff]
    %v91 = vld [vmem:[%s0 + $0x10] sm:$0xff]
    %v92 = vld [vmem:[%s0 + $0x18] sm:$0xff]
    %v93 = vld [vmem:[%s0 + $0x20] sm:$0xff]
    %v94 = vld [vmem:[%s0 + $0x28] sm:$0xff]
    %v95 = vld [vmem:[%s0 + $0x30] sm:$0xff]
    %v96 = vpack.c.bf16 %v90, %v89
    %v97 = vpack.c.bf16 %v92, %v91
    %v98 = vpack.c.bf16 %v94, %v93
    %v99 = vpack.c.bf16 %v95, %v95
    %v100 = vld [vmem:[%s1] sm:$0xf]
    %v101 = vld [vmem:[%s1 + $0x4] sm:$0xf]
    %v102 = vld [vmem:[%s1 + $0x8] sm:$0xf]
    %v103 = vld [vmem:[%s1 + $0xc] sm:$0xf]
    %v104 = vld [vmem:[%s1 + $0x10] sm:$0xf]
    %v105 = vld [vmem:[%s1 + $0x14] sm:$0xf]
    %v106 = vld [vmem:[%s1 + $0x18] sm:$0xf]
    %v107 = vld [vmem:[%s1 + $0x1c] sm:$0xf]
    %v108 = vld [vmem:[%s1 + $0x20] sm:$0xf]
    %v109 = vld [vmem:[%s1 + $0x24] sm:$0xf]
    %v110 = vld [vmem:[%s1 + $0x28] sm:$0xf]
    %v111 = vld [vmem:[%s1 + $0x2c] sm:$0xf]
    %v112 = vld [vmem:[%s1 + $0x30] sm:$0xf]
    %v113 = vld [vmem:[%s1 + $0x34] sm:$0xf]
    %v114 = vld [vmem:[%s1 + $0x38] sm:$0xf]
    %v115 = vld [vmem:[%s1 + $0x3c] sm:$0xf]
    %v116 = vld [vmem:[%s0 + $0x2] sm:$0xff]
    %v117 = vld [vmem:[%s0 + $0xa] sm:$0xff]
    %v118 = vld [vmem:[%s0 + $0x12] sm:$0xff]
    %v119 = vld [vmem:[%s0 + $0x1a] sm:$0xff]
    %v120 = vld [vmem:[%s0 + $0x22] sm:$0xff]
    %v121 = vld [vmem:[%s0 + $0x2a] sm:$0xff]
    %v122 = vld [vmem:[%s0 + $0x32] sm:$0xff]
    %v123 = vpack.c.bf16 %v117, %v116
    %v124 = vpack.c.bf16 %v119, %v118
    %v125 = vpack.c.bf16 %v121, %v120
    %v126 = vpack.c.bf16 %v122, %v122
    %s127 = scalar_lea.vmem %s1, 64
    %v128 = vld [vmem:[%s127] sm:$0xf]
    %v129 = vld [vmem:[%s127 + $0x4] sm:$0xf]
    %v130 = vld [vmem:[%s127 + $0x8] sm:$0xf]
    %v131 = vld [vmem:[%s127 + $0xc] sm:$0xf]
    %v132 = vld [vmem:[%s127 + $0x10] sm:$0xf]
    %v133 = vld [vmem:[%s127 + $0x14] sm:$0xf]
    %v134 = vld [vmem:[%s127 + $0x18] sm:$0xf]
    %v135 = vld [vmem:[%s127 + $0x1c] sm:$0xf]
    %v136 = vld [vmem:[%s127 + $0x20] sm:$0xf]
    %v137 = vld [vmem:[%s127 + $0x24] sm:$0xf]
    %v138 = vld [vmem:[%s127 + $0x28] sm:$0xf]
    %v139 = vld [vmem:[%s127 + $0x2c] sm:$0xf]
    %v140 = vld [vmem:[%s127 + $0x30] sm:$0xf]
    %v141 = vld [vmem:[%s127 + $0x34] sm:$0xf]
    %v142 = vld [vmem:[%s127 + $0x38] sm:$0xf]
    %v143 = vld [vmem:[%s127 + $0x3c] sm:$0xf]
    %v160 = vunpack.c.l.b16 %v128
    %v161 = vunpack.c.l.b16 %v129
    %v162 = vunpack.c.l.b16 %v130
    %v163 = vunpack.c.l.b16 %v131
    %v164 = vunpack.c.l.b16 %v132
    %v165 = vunpack.c.l.b16 %v133
    %v166 = vunpack.c.l.b16 %v134
    %v167 = vunpack.c.l.b16 %v135
    %v168 = vunpack.c.l.b16 %v136
    %v169 = vunpack.c.l.b16 %v137
    %v170 = vunpack.c.l.b16 %v138
    %v171 = vunpack.c.l.b16 %v139
    %v172 = vunpack.c.l.b16 %v140
    %v173 = vunpack.c.l.b16 %v141
    %v174 = vunpack.c.l.b16 %v142
    %v175 = vunpack.c.l.b16 %v143
    %v176 = vpack.c.b16 %v161, %v160
    %v177 = vpack.c.b16 %v163, %v162
    %v178 = vpack.c.b16 %v165, %v164
    %v179 = vpack.c.b16 %v167, %v166
    %v180 = vpack.c.b16 %v169, %v168
    %v181 = vpack.c.b16 %v171, %v170
    %v182 = vpack.c.b16 %v173, %v172
    %v183 = vpack.c.b16 %v175, %v174
    %192 = vmatprep.subr.bf16.mxu0 0
    %193 = vmatpush1.bf16.msra.mxu0 %v183
    %194 = vmatprep.subr.bf16.mxu0 0
    %195 = vmatpush1.bf16.msra.mxu0 %v182
    %196 = vmatprep.subr.bf16.mxu0 0
    %197 = vmatpush1.bf16.msra.mxu0 %v181
    %198 = vmatprep.subr.bf16.mxu0 0
    %199 = vmatpush1.bf16.msra.mxu0 %v180
    %200 = vmatprep.subr.bf16.mxu0 0
    %201 = vmatpush1.bf16.msra.mxu0 %v179
    %202 = vmatprep.subr.bf16.mxu0 0
    %203 = vmatpush1.bf16.msra.mxu0 %v178
    %204 = vmatprep.subr.bf16.mxu0 0
    %205 = vmatpush1.bf16.msra.mxu0 %v177
    %206 = vmatprep.subr.bf16.mxu0 0
    %207 = vmatpush1.bf16.msra.mxu0 %v176
    %208 = vmatprep.subr.bf16.mxu0 0
    %209 = vmatpush2.bf16.msra.mxu0 0
    %210 = vmatprep.subr.bf16.mxu0 0
    %211 = vmatpush2.bf16.msra.mxu0 0
    %212 = vmatprep.subr.bf16.mxu0 0
    %213 = vmatpush2.bf16.msra.mxu0 0
    %214 = vmatprep.subr.bf16.mxu0 0
    %215 = vmatpush2.bf16.msra.mxu0 0
    %216 = vmatprep.subr.bf16.mxu0 0
    %217 = vmatpush2.bf16.msra.mxu0 0
    %218 = vmatprep.subr.bf16.mxu0 0
    %219 = vmatpush2.bf16.msra.mxu0 0
    %220 = vmatprep.subr.bf16.mxu0 0
    %221 = vmatpush2.bf16.msra.mxu0 0
    %222 = vmatprep.subr.bf16.mxu0 0
    %223 = vmatpush2.bf16.msra.mxu0 0
    %224 = vmatprep.mubr.bf16.mxu0 0
    %225 = vmatmul.mubr.bf16.gmra.mxu0 %v123
    %v226 = vpop.f32.mrf.mxu0
    %v227 = vadd.f32 0.0, %v226
    %v228 = vpop.f32.mrf.mxu0
    %v229 = vpop.f32.mrf.mxu0
    %v230 = vadd.f32 0.0, %v229
    %v231 = vpop.f32.mrf.mxu0
    %232 = vmatprep.mubr.bf16.mxu0 0
    %233 = vmatmul.mubr.bf16.gmra.mxu0 %v124
    %v234 = vpop.f32.mrf.mxu0
    %v235 = vadd.f32 0.0, %v234
    %v236 = vpop.f32.mrf.mxu0
    %v237 = vpop.f32.mrf.mxu0
    %v238 = vadd.f32 0.0, %v237
    %v239 = vpop.f32.mrf.mxu0
    %240 = vmatprep.mubr.bf16.mxu0 0
    %241 = vmatmul.mubr.bf16.gmra.mxu0 %v125
    %v242 = vpop.f32.mrf.mxu0
    %v243 = vadd.f32 0.0, %v242
    %v244 = vpop.f32.mrf.mxu0
    %v245 = vpop.f32.mrf.mxu0
    %v246 = vadd.f32 0.0, %v245
    %v247 = vpop.f32.mrf.mxu0
    %248 = vmatprep.mubr.bf16.mxu0 0
    %249 = vmatmul.mubr.bf16.gmra.mxu0 %v126
    %v250 = vpop.f32.mrf.mxu0
    %v251 = vadd.f32 0.0, %v250
    %v252 = vpop.f32.mrf.mxu0
    %v253 = vpop.f32.mrf.mxu0
    %v254 = vpop.f32.mrf.mxu0
    %255 = vdwg.mxu0
    %v272 = vunpack.c.l.b16 %v100
    %v273 = vunpack.c.l.b16 %v101
    %v274 = vunpack.c.l.b16 %v102
    %v275 = vunpack.c.l.b16 %v103
    %v276 = vunpack.c.l.b16 %v104
    %v277 = vunpack.c.l.b16 %v105
    %v278 = vunpack.c.l.b16 %v106
    %v279 = vunpack.c.l.b16 %v107
    %v280 = vunpack.c.l.b16 %v108
    %v281 = vunpack.c.l.b16 %v109
    %v282 = vunpack.c.l.b16 %v110
    %v283 = vunpack.c.l.b16 %v111
    %v284 = vunpack.c.l.b16 %v112
    %v285 = vunpack.c.l.b16 %v113
    %v286 = vunpack.c.l.b16 %v114
    %v287 = vunpack.c.l.b16 %v115
    %v288 = vpack.c.b16 %v273, %v272
    %v289 = vpack.c.b16 %v275, %v274
    %v290 = vpack.c.b16 %v277, %v276
    %v291 = vpack.c.b16 %v279, %v278
    %v292 = vpack.c.b16 %v281, %v280
    %v293 = vpack.c.b16 %v283, %v282
    %v294 = vpack.c.b16 %v285, %v284
    %v295 = vpack.c.b16 %v287, %v286
    %304 = vmatprep.subr.bf16.mxu0 0
    %305 = vmatpush1.bf16.msra.mxu0 %v295
    %306 = vmatprep.subr.bf16.mxu0 0
    %307 = vmatpush1.bf16.msra.mxu0 %v294
    %308 = vmatprep.subr.bf16.mxu0 0
    %309 = vmatpush1.bf16.msra.mxu0 %v293
    %310 = vmatprep.subr.bf16.mxu0 0
    %311 = vmatpush1.bf16.msra.mxu0 %v292
    %312 = vmatprep.subr.bf16.mxu0 0
    %313 = vmatpush1.bf16.msra.mxu0 %v291
    %314 = vmatprep.subr.bf16.mxu0 0
    %315 = vmatpush1.bf16.msra.mxu0 %v290
    %316 = vmatprep.subr.bf16.mxu0 0
    %317 = vmatpush1.bf16.msra.mxu0 %v289
    %318 = vmatprep.subr.bf16.mxu0 0
    %319 = vmatpush1.bf16.msra.mxu0 %v288
    %320 = vmatprep.subr.bf16.mxu0 0
    %321 = vmatpush2.bf16.msra.mxu0 0
    %322 = vmatprep.subr.bf16.mxu0 0
    %323 = vmatpush2.bf16.msra.mxu0 0
    %324 = vmatprep.subr.bf16.mxu0 0
    %325 = vmatpush2.bf16.msra.mxu0 0
    %326 = vmatprep.subr.bf16.mxu0 0
    %327 = vmatpush2.bf16.msra.mxu0 0
    %328 = vmatprep.subr.bf16.mxu0 0
    %329 = vmatpush2.bf16.msra.mxu0 0
    %330 = vmatprep.subr.bf16.mxu0 0
    %331 = vmatpush2.bf16.msra.mxu0 0
    %332 = vmatprep.subr.bf16.mxu0 0
    %333 = vmatpush2.bf16.msra.mxu0 0
    %334 = vmatprep.subr.bf16.mxu0 0
    %335 = vmatpush2.bf16.msra.mxu0 0
    %336 = vmatprep.mubr.bf16.mxu0 0
    %337 = vmatmul.mubr.bf16.gmra.mxu0 %v96
    %v338 = vpop.f32.mrf.mxu0
    %v339 = vadd.f32 %v227, %v338
    %v340 = vpop.f32.mrf.mxu0
    %v341 = vpop.f32.mrf.mxu0
    %v342 = vadd.f32 %v230, %v341
    %v343 = vpop.f32.mrf.mxu0
    %344 = vmatprep.mubr.bf16.mxu0 0
    %345 = vmatmul.mubr.bf16.gmra.mxu0 %v97
    %v346 = vpop.f32.mrf.mxu0
    %v347 = vadd.f32 %v235, %v346
    %v348 = vpop.f32.mrf.mxu0
    %v349 = vpop.f32.mrf.mxu0
    %v350 = vadd.f32 %v238, %v349
    %v351 = vpop.f32.mrf.mxu0
    %352 = vmatprep.mubr.bf16.mxu0 0
    %353 = vmatmul.mubr.bf16.gmra.mxu0 %v98
    %v354 = vpop.f32.mrf.mxu0
    %v355 = vadd.f32 %v243, %v354
    %v356 = vpop.f32.mrf.mxu0
    %v357 = vpop.f32.mrf.mxu0
    %v358 = vadd.f32 %v246, %v357
    %v359 = vpop.f32.mrf.mxu0
    %360 = vmatprep.mubr.bf16.mxu0 0
    %361 = vmatmul.mubr.bf16.gmra.mxu0 %v99
    %v362 = vpop.f32.mrf.mxu0
    %v363 = vadd.f32 %v251, %v362
    %v364 = vpop.f32.mrf.mxu0
    %v365 = vpop.f32.mrf.mxu0
    %v366 = vpop.f32.mrf.mxu0
    %367 = vdwg.mxu0
    %v368 = vld [vmem:[%s0 + $0x4] sm:$0xff]
    %v369 = vld [vmem:[%s0 + $0xc] sm:$0xff]
    %v370 = vld [vmem:[%s0 + $0x14] sm:$0xff]
    %v371 = vld [vmem:[%s0 + $0x1c] sm:$0xff]
    %v372 = vld [vmem:[%s0 + $0x24] sm:$0xff]
    %v373 = vld [vmem:[%s0 + $0x2c] sm:$0xff]
    %v374 = vld [vmem:[%s0 + $0x34] sm:$0xff]
    %v375 = vpack.c.bf16 %v369, %v368
    %v376 = vpack.c.bf16 %v371, %v370
    %v377 = vpack.c.bf16 %v373, %v372
    %v378 = vpack.c.bf16 %v374, %v374
    %s379 = scalar_lea.vmem %s1, 128
    %v380 = vld [vmem:[%s379] sm:$0xf]
    %v381 = vld [vmem:[%s379 + $0x4] sm:$0xf]
    %v382 = vld [vmem:[%s379 + $0x8] sm:$0xf]
    %v383 = vld [vmem:[%s379 + $0xc] sm:$0xf]
    %v384 = vld [vmem:[%s379 + $0x10] sm:$0xf]
    %v385 = vld [vmem:[%s379 + $0x14] sm:$0xf]
    %v386 = vld [vmem:[%s379 + $0x18] sm:$0xf]
    %v387 = vld [vmem:[%s379 + $0x1c] sm:$0xf]
    %v388 = vld [vmem:[%s379 + $0x20] sm:$0xf]
    %v389 = vld [vmem:[%s379 + $0x24] sm:$0xf]
    %v390 = vld [vmem:[%s379 + $0x28] sm:$0xf]
    %v391 = vld [vmem:[%s379 + $0x2c] sm:$0xf]
    %v392 = vld [vmem:[%s379 + $0x30] sm:$0xf]
    %v393 = vld [vmem:[%s379 + $0x34] sm:$0xf]
    %v394 = vld [vmem:[%s379 + $0x38] sm:$0xf]
    %v395 = vld [vmem:[%s379 + $0x3c] sm:$0xf]
    %v412 = vunpack.c.l.b16 %v380
    %v413 = vunpack.c.l.b16 %v381
    %v414 = vunpack.c.l.b16 %v382
    %v415 = vunpack.c.l.b16 %v383
    %v416 = vunpack.c.l.b16 %v384
    %v417 = vunpack.c.l.b16 %v385
    %v418 = vunpack.c.l.b16 %v386
    %v419 = vunpack.c.l.b16 %v387
    %v420 = vunpack.c.l.b16 %v388
    %v421 = vunpack.c.l.b16 %v389
    %v422 = vunpack.c.l.b16 %v390
    %v423 = vunpack.c.l.b16 %v391
    %v424 = vunpack.c.l.b16 %v392
    %v425 = vunpack.c.l.b16 %v393
    %v426 = vunpack.c.l.b16 %v394
    %v427 = vunpack.c.l.b16 %v395
    %v428 = vpack.c.b16 %v413, %v412
    %v429 = vpack.c.b16 %v415, %v414
    %v430 = vpack.c.b16 %v417, %v416
    %v431 = vpack.c.b16 %v419, %v418
    %v432 = vpack.c.b16 %v421, %v420
    %v433 = vpack.c.b16 %v423, %v422
    %v434 = vpack.c.b16 %v425, %v424
    %v435 = vpack.c.b16 %v427, %v426
    %444 = vmatprep.subr.bf16.mxu0 0
    %445 = vmatpush1.bf16.msra.mxu0 %v435
    %446 = vmatprep.subr.bf16.mxu0 0
    %447 = vmatpush1.bf16.msra.mxu0 %v434
    %448 = vmatprep.subr.bf16.mxu0 0
    %449 = vmatpush1.bf16.msra.mxu0 %v433
    %450 = vmatprep.subr.bf16.mxu0 0
    %451 = vmatpush1.bf16.msra.mxu0 %v432
    %452 = vmatprep.subr.bf16.mxu0 0
    %453 = vmatpush1.bf16.msra.mxu0 %v431
    %454 = vmatprep.subr.bf16.mxu0 0
    %455 = vmatpush1.bf16.msra.mxu0 %v430
    %456 = vmatprep.subr.bf16.mxu0 0
    %457 = vmatpush1.bf16.msra.mxu0 %v429
    %458 = vmatprep.subr.bf16.mxu0 0
    %459 = vmatpush1.bf16.msra.mxu0 %v428
    %460 = vmatprep.subr.bf16.mxu0 0
    %461 = vmatpush2.bf16.msra.mxu0 0
    %462 = vmatprep.subr.bf16.mxu0 0
    %463 = vmatpush2.bf16.msra.mxu0 0
    %464 = vmatprep.subr.bf16.mxu0 0
    %465 = vmatpush2.bf16.msra.mxu0 0
    %466 = vmatprep.subr.bf16.mxu0 0
    %467 = vmatpush2.bf16.msra.mxu0 0
    %468 = vmatprep.subr.bf16.mxu0 0
    %469 = vmatpush2.bf16.msra.mxu0 0
    %470 = vmatprep.subr.bf16.mxu0 0
    %471 = vmatpush2.bf16.msra.mxu0 0
    %472 = vmatprep.subr.bf16.mxu0 0
    %473 = vmatpush2.bf16.msra.mxu0 0
    %474 = vmatprep.subr.bf16.mxu0 0
    %475 = vmatpush2.bf16.msra.mxu0 0
    %476 = vmatprep.mubr.bf16.mxu0 0
    %477 = vmatmul.mubr.bf16.gmra.mxu0 %v375
    %v478 = vpop.f32.mrf.mxu0
    %v479 = vadd.f32 0.0, %v478
    %v480 = vpop.f32.mrf.mxu0
    %v481 = vpop.f32.mrf.mxu0
    %v482 = vadd.f32 0.0, %v481
    %v483 = vpop.f32.mrf.mxu0
    %484 = vmatprep.mubr.bf16.mxu0 0
    %485 = vmatmul.mubr.bf16.gmra.mxu0 %v376
    %v486 = vpop.f32.mrf.mxu0
    %v487 = vadd.f32 0.0, %v486
    %v488 = vpop.f32.mrf.mxu0
    %v489 = vpop.f32.mrf.mxu0
    %v490 = vadd.f32 0.0, %v489
    %v491 = vpop.f32.mrf.mxu0
    %492 = vmatprep.mubr.bf16.mxu0 0
    %493 = vmatmul.mubr.bf16.gmra.mxu0 %v377
    %v494 = vpop.f32.mrf.mxu0
    %v495 = vadd.f32 0.0, %v494
    %v496 = vpop.f32.mrf.mxu0
    %v497 = vpop.f32.mrf.mxu0
    %v498 = vadd.f32 0.0, %v497
    %v499 = vpop.f32.mrf.mxu0
    %500 = vmatprep.mubr.bf16.mxu0 0
    %501 = vmatmul.mubr.bf16.gmra.mxu0 %v378
    %v502 = vpop.f32.mrf.mxu0
    %v503 = vadd.f32 0.0, %v502
    %v504 = vpop.f32.mrf.mxu0
    %v505 = vpop.f32.mrf.mxu0
    %v506 = vpop.f32.mrf.mxu0
    %507 = vdwg.mxu0
    %v508 = vadd.f32 %v339, %v479
    %v509 = vadd.f32 %v342, %v482
    %v510 = vadd.f32 %v347, %v487
    %v511 = vadd.f32 %v350, %v490
    %v512 = vadd.f32 %v355, %v495
    %v513 = vadd.f32 %v358, %v498
    %v514 = vadd.f32 %v363, %v503
    %v515 = vld [vmem:[%s0 + $0x6] sm:$0xff]
    %v516 = vld [vmem:[%s0 + $0xe] sm:$0xff]
    %v517 = vld [vmem:[%s0 + $0x16] sm:$0xff]
    %v518 = vld [vmem:[%s0 + $0x1e] sm:$0xff]
    %v519 = vld [vmem:[%s0 + $0x26] sm:$0xff]
    %v520 = vld [vmem:[%s0 + $0x2e] sm:$0xff]
    %v521 = vld [vmem:[%s0 + $0x36] sm:$0xff]
    %v522 = vpack.c.bf16 %v516, %v515
    %v523 = vpack.c.bf16 %v518, %v517
    %v524 = vpack.c.bf16 %v520, %v519
    %v525 = vpack.c.bf16 %v521, %v521
    %s526 = scalar_lea.vmem %s1, 192
    %v527 = vld [vmem:[%s526] sm:$0xf]
    %v528 = vld [vmem:[%s526 + $0x4] sm:$0xf]
    %v529 = vld [vmem:[%s526 + $0x8] sm:$0xf]
    %v530 = vld [vmem:[%s526 + $0xc] sm:$0xf]
    %v531 = vld [vmem:[%s526 + $0x10] sm:$0xf]
    %v532 = vld [vmem:[%s526 + $0x14] sm:$0xf]
    %v533 = vld [vmem:[%s526 + $0x18] sm:$0xf]
    %v534 = vld [vmem:[%s526 + $0x1c] sm:$0xf]
    %v535 = vld [vmem:[%s526 + $0x20] sm:$0xf]
    %v536 = vld [vmem:[%s526 + $0x24] sm:$0xf]
    %v537 = vld [vmem:[%s526 + $0x28] sm:$0xf]
    %v538 = vld [vmem:[%s526 + $0x2c] sm:$0xf]
    %v539 = vld [vmem:[%s526 + $0x30] sm:$0xf]
    %v540 = vld [vmem:[%s526 + $0x34] sm:$0xf]
    %v541 = vld [vmem:[%s526 + $0x38] sm:$0xf]
    %v542 = vld [vmem:[%s526 + $0x3c] sm:$0xf]
    %v559 = vunpack.c.l.b16 %v527
    %v560 = vunpack.c.l.b16 %v528
    %v561 = vunpack.c.l.b16 %v529
    %v562 = vunpack.c.l.b16 %v530
    %v563 = vunpack.c.l.b16 %v531
    %v564 = vunpack.c.l.b16 %v532
    %v565 = vunpack.c.l.b16 %v533
    %v566 = vunpack.c.l.b16 %v534
    %v567 = vunpack.c.l.b16 %v535
    %v568 = vunpack.c.l.b16 %v536
    %v569 = vunpack.c.l.b16 %v537
    %v570 = vunpack.c.l.b16 %v538
    %v571 = vunpack.c.l.b16 %v539
    %v572 = vunpack.c.l.b16 %v540
    %v573 = vunpack.c.l.b16 %v541
    %v574 = vunpack.c.l.b16 %v542
    %v575 = vpack.c.b16 %v560, %v559
    %v576 = vpack.c.b16 %v562, %v561
    %v577 = vpack.c.b16 %v564, %v563
    %v578 = vpack.c.b16 %v566, %v565
    %v579 = vpack.c.b16 %v568, %v567
    %v580 = vpack.c.b16 %v570, %v569
    %v581 = vpack.c.b16 %v572, %v571
    %v582 = vpack.c.b16 %v574, %v573
    %591 = vmatprep.subr.bf16.mxu0 0
    %592 = vmatpush1.bf16.msra.mxu0 %v582
    %593 = vmatprep.subr.bf16.mxu0 0
    %594 = vmatpush1.bf16.msra.mxu0 %v581
    %595 = vmatprep.subr.bf16.mxu0 0
    %596 = vmatpush1.bf16.msra.mxu0 %v580
    %597 = vmatprep.subr.bf16.mxu0 0
    %598 = vmatpush1.bf16.msra.mxu0 %v579
    %599 = vmatprep.subr.bf16.mxu0 0
    %600 = vmatpush1.bf16.msra.mxu0 %v578
    %601 = vmatprep.subr.bf16.mxu0 0
    %602 = vmatpush1.bf16.msra.mxu0 %v577
    %603 = vmatprep.subr.bf16.mxu0 0
    %604 = vmatpush1.bf16.msra.mxu0 %v576
    %605 = vmatprep.subr.bf16.mxu0 0
    %606 = vmatpush1.bf16.msra.mxu0 %v575
    %607 = vmatprep.subr.bf16.mxu0 0
    %608 = vmatpush2.bf16.msra.mxu0 0
    %609 = vmatprep.subr.bf16.mxu0 0
    %610 = vmatpush2.bf16.msra.mxu0 0
    %611 = vmatprep.subr.bf16.mxu0 0
    %612 = vmatpush2.bf16.msra.mxu0 0
    %613 = vmatprep.subr.bf16.mxu0 0
    %614 = vmatpush2.bf16.msra.mxu0 0
    %615 = vmatprep.subr.bf16.mxu0 0
    %616 = vmatpush2.bf16.msra.mxu0 0
    %617 = vmatprep.subr.bf16.mxu0 0
    %618 = vmatpush2.bf16.msra.mxu0 0
    %619 = vmatprep.subr.bf16.mxu0 0
    %620 = vmatpush2.bf16.msra.mxu0 0
    %621 = vmatprep.subr.bf16.mxu0 0
    %622 = vmatpush2.bf16.msra.mxu0 0
    %623 = vmatprep.mubr.bf16.mxu0 0
    %624 = vmatmul.mubr.bf16.gmra.mxu0 %v522
    %v625 = vpop.f32.mrf.mxu0
    %v626 = vadd.f32 0.0, %v625
    %v627 = vpop.f32.mrf.mxu0
    %v628 = vpop.f32.mrf.mxu0
    %v629 = vadd.f32 0.0, %v628
    %v630 = vpop.f32.mrf.mxu0
    %631 = vmatprep.mubr.bf16.mxu0 0
    %632 = vmatmul.mubr.bf16.gmra.mxu0 %v523
    %v633 = vpop.f32.mrf.mxu0
    %v634 = vadd.f32 0.0, %v633
    %v635 = vpop.f32.mrf.mxu0
    %v636 = vpop.f32.mrf.mxu0
    %v637 = vadd.f32 0.0, %v636
    %v638 = vpop.f32.mrf.mxu0
    %639 = vmatprep.mubr.bf16.mxu0 0
    %640 = vmatmul.mubr.bf16.gmra.mxu0 %v524
    %v641 = vpop.f32.mrf.mxu0
    %v642 = vadd.f32 0.0, %v641
    %v643 = vpop.f32.mrf.mxu0
    %v644 = vpop.f32.mrf.mxu0
    %v645 = vadd.f32 0.0, %v644
    %v646 = vpop.f32.mrf.mxu0
    %647 = vmatprep.mubr.bf16.mxu0 0
    %648 = vmatmul.mubr.bf16.gmra.mxu0 %v525
    %v649 = vpop.f32.mrf.mxu0
    %v650 = vadd.f32 0.0, %v649
    %v651 = vpop.f32.mrf.mxu0
    %v652 = vpop.f32.mrf.mxu0
    %v653 = vpop.f32.mrf.mxu0
    %654 = vdwg.mxu0
    %v655 = vadd.f32 %v508, %v626
    %v656 = vadd.f32 %v509, %v629
    %v657 = vadd.f32 %v510, %v634
    %v658 = vadd.f32 %v511, %v637
    %v659 = vadd.f32 %v512, %v642
    %v660 = vadd.f32 %v513, %v645
    %v661 = vadd.f32 %v514, %v650
    %v662 = vld [vmem:[%s0 + $0x8] sm:$0xff]
    %v663 = vld [vmem:[%s0 + $0x10] sm:$0xff]
    %v664 = vld [vmem:[%s0 + $0x18] sm:$0xff]
    %v665 = vld [vmem:[%s0 + $0x20] sm:$0xff]
    %v666 = vld [vmem:[%s0 + $0x28] sm:$0xff]
    %v667 = vld [vmem:[%s0 + $0x30] sm:$0xff]
    %v668 = vld [vmem:[%s0 + $0x38] sm:$0xff]
    %v669 = vpack.c.bf16 %v663, %v662
    %v670 = vpack.c.bf16 %v665, %v664
    %v671 = vpack.c.bf16 %v667, %v666
    %v672 = vpack.c.bf16 %v668, %v668
    %s673 = scalar_lea.vmem %s1, 256
    %v674 = vld [vmem:[%s673] sm:$0xf]
    %v675 = vld [vmem:[%s673 + $0x4] sm:$0xf]
    %v676 = vld [vmem:[%s673 + $0x8] sm:$0xf]
    %v677 = vld [vmem:[%s673 + $0xc] sm:$0xf]
    %v678 = vld [vmem:[%s673 + $0x10] sm:$0xf]
    %v679 = vld [vmem:[%s673 + $0x14] sm:$0xf]
    %v680 = vld [vmem:[%s673 + $0x18] sm:$0xf]
    %v681 = vld [vmem:[%s673 + $0x1c] sm:$0xf]
    %v682 = vld [vmem:[%s673 + $0x20] sm:$0xf]
    %v683 = vld [vmem:[%s673 + $0x24] sm:$0xf]
    %v684 = vld [vmem:[%s673 + $0x28] sm:$0xf]
    %v685 = vld [vmem:[%s673 + $0x2c] sm:$0xf]
    %v686 = vld [vmem:[%s673 + $0x30] sm:$0xf]
    %v687 = vld [vmem:[%s673 + $0x34] sm:$0xf]
    %v688 = vld [vmem:[%s673 + $0x38] sm:$0xf]
    %v689 = vld [vmem:[%s673 + $0x3c] sm:$0xf]
    %v706 = vunpack.c.l.b16 %v674
    %v707 = vunpack.c.l.b16 %v675
    %v708 = vunpack.c.l.b16 %v676
    %v709 = vunpack.c.l.b16 %v677
    %v710 = vunpack.c.l.b16 %v678
    %v711 = vunpack.c.l.b16 %v679
    %v712 = vunpack.c.l.b16 %v680
    %v713 = vunpack.c.l.b16 %v681
    %v714 = vunpack.c.l.b16 %v682
    %v715 = vunpack.c.l.b16 %v683
    %v716 = vunpack.c.l.b16 %v684
    %v717 = vunpack.c.l.b16 %v685
    %v718 = vunpack.c.l.b16 %v686
    %v719 = vunpack.c.l.b16 %v687
    %v720 = vunpack.c.l.b16 %v688
    %v721 = vunpack.c.l.b16 %v689
    %v722 = vpack.c.b16 %v707, %v706
    %v723 = vpack.c.b16 %v709, %v708
    %v724 = vpack.c.b16 %v711, %v710
    %v725 = vpack.c.b16 %v713, %v712
    %v726 = vpack.c.b16 %v715, %v714
    %v727 = vpack.c.b16 %v717, %v716
    %v728 = vpack.c.b16 %v719, %v718
    %v729 = vpack.c.b16 %v721, %v720
    %738 = vmatprep.subr.bf16.mxu0 0
    %739 = vmatpush1.bf16.msra.mxu0 %v729
    %740 = vmatprep.subr.bf16.mxu0 0
    %741 = vmatpush1.bf16.msra.mxu0 %v728
    %742 = vmatprep.subr.bf16.mxu0 0
    %743 = vmatpush1.bf16.msra.mxu0 %v727
    %744 = vmatprep.subr.bf16.mxu0 0
    %745 = vmatpush1.bf16.msra.mxu0 %v726
    %746 = vmatprep.subr.bf16.mxu0 0
    %747 = vmatpush1.bf16.msra.mxu0 %v725
    %748 = vmatprep.subr.bf16.mxu0 0
    %749 = vmatpush1.bf16.msra.mxu0 %v724
    %750 = vmatprep.subr.bf16.mxu0 0
    %751 = vmatpush1.bf16.msra.mxu0 %v723
    %752 = vmatprep.subr.bf16.mxu0 0
    %753 = vmatpush1.bf16.msra.mxu0 %v722
    %754 = vmatprep.subr.bf16.mxu0 0
    %755 = vmatpush2.bf16.msra.mxu0 0
    %756 = vmatprep.subr.bf16.mxu0 0
    %757 = vmatpush2.bf16.msra.mxu0 0
    %758 = vmatprep.subr.bf16.mxu0 0
    %759 = vmatpush2.bf16.msra.mxu0 0
    %760 = vmatprep.subr.bf16.mxu0 0
    %761 = vmatpush2.bf16.msra.mxu0 0
    %762 = vmatprep.subr.bf16.mxu0 0
    %763 = vmatpush2.bf16.msra.mxu0 0
    %764 = vmatprep.subr.bf16.mxu0 0
    %765 = vmatpush2.bf16.msra.mxu0 0
    %766 = vmatprep.subr.bf16.mxu0 0
    %767 = vmatpush2.bf16.msra.mxu0 0
    %768 = vmatprep.subr.bf16.mxu0 0
    %769 = vmatpush2.bf16.msra.mxu0 0
    %770 = vmatprep.mubr.bf16.mxu0 0
    %771 = vmatmul.mubr.bf16.gmra.mxu0 %v669
    %v772 = vpop.f32.mrf.mxu0
    %v773 = vadd.f32 0.0, %v772
    %v774 = vpop.f32.mrf.mxu0
    %v775 = vpop.f32.mrf.mxu0
    %v776 = vadd.f32 0.0, %v775
    %v777 = vpop.f32.mrf.mxu0
    %778 = vmatprep.mubr.bf16.mxu0 0
    %779 = vmatmul.mubr.bf16.gmra.mxu0 %v670
    %v780 = vpop.f32.mrf.mxu0
    %v781 = vadd.f32 0.0, %v780
    %v782 = vpop.f32.mrf.mxu0
    %v783 = vpop.f32.mrf.mxu0
    %v784 = vadd.f32 0.0, %v783
    %v785 = vpop.f32.mrf.mxu0
    %786 = vmatprep.mubr.bf16.mxu0 0
    %787 = vmatmul.mubr.bf16.gmra.mxu0 %v671
    %v788 = vpop.f32.mrf.mxu0
    %v789 = vadd.f32 0.0, %v788
    %v790 = vpop.f32.mrf.mxu0
    %v791 = vpop.f32.mrf.mxu0
    %v792 = vadd.f32 0.0, %v791
    %v793 = vpop.f32.mrf.mxu0
    %794 = vmatprep.mubr.bf16.mxu0 0
    %795 = vmatmul.mubr.bf16.gmra.mxu0 %v672
    %v796 = vpop.f32.mrf.mxu0
    %v797 = vadd.f32 0.0, %v796
    %v798 = vpop.f32.mrf.mxu0
    %v799 = vpop.f32.mrf.mxu0
    %v800 = vpop.f32.mrf.mxu0
    %801 = vdwg.mxu0
    %v802 = vadd.f32 %v655, %v773
    %v803 = vadd.f32 %v656, %v776
    %v804 = vadd.f32 %v657, %v781
    %v805 = vadd.f32 %v658, %v784
    %v806 = vadd.f32 %v659, %v789
    %v807 = vadd.f32 %v660, %v792
    %v808 = vadd.f32 %v661, %v797
    %809 = vst [vmem:[#allocation2] sm:$0xff] %v802
    %810 = vst [vmem:[#allocation2 + $0x8] sm:$0xff] %v803
    %811 = vst [vmem:[#allocation2 + $0x10] sm:$0xff] %v804
    %812 = vst [vmem:[#allocation2 + $0x18] sm:$0xff] %v805
    %813 = vst [vmem:[#allocation2 + $0x20] sm:$0xff] %v806
    %814 = vst [vmem:[#allocation2 + $0x28] sm:$0xff] %v807
    %815 = vst [vmem:[#allocation2 + $0x30] sm:$0xff] %v808
    %v816 = vld [vmem:[#allocation2] sm:$0x3]
    %v817 = vld [vmem:[#allocation2 + $0x2] sm:$0x3]
    %v818 = vadd.f32 %v816, %v817
    %v819 = vmul.f32 %v818, 0.5
    %v820 = vld [vmem:[%s2] sm:$0x1]
    %v822 = vlaneseq
    %v823 = vshrl.u32 %v822, 7
    %v824 = vsub.s32 0, %v823
    %v825 = vrot.slane %v820, %v824
    %v827 = vadd.f32 %v819, %v825
    %828 = vst [vmem:[#allocation3] sm:$0x3] %v827
    %v829 = vld [vmem:[#allocation2 + $0x4] sm:$0x3]
    %v830 = vld [vmem:[#allocation2 + $0x6] sm:$0x3]
    %v831 = vadd.f32 %v829, %v830
    %v832 = vmul.f32 %v831, 0.5
    %v833 = vld [vmem:[%s2] sm:$0x1]
    %v835 = vlaneseq
    %v836 = vshrl.u32 %v835, 7
    %v837 = vsub.s32 0, %v836
    %v838 = vrot.slane %v833, %v837
    %v840 = vadd.f32 %v832, %v838
    %841 = vst [vmem:[#allocation3 + $0x2] sm:$0x3] %v840
    %v842 = vld [vmem:[#allocation2 + $0x8] sm:$0x3]
    %v843 = vld [vmem:[#allocation2 + $0xa] sm:$0x3]
    %v844 = vadd.f32 %v842, %v843
    %v845 = vmul.f32 %v844, 0.5
    %v846 = vld [vmem:[%s2] sm:$0x1]
    %v848 = vlaneseq
    %v849 = vshrl.u32 %v848, 7
    %v850 = vsub.s32 0, %v849
    %v851 = vrot.slane %v846, %v850
    %v853 = vadd.f32 %v845, %v851
    %854 = vst [vmem:[#allocation3 + $0x4] sm:$0x3] %v853
    %v855 = vld [vmem:[#allocation2 + $0xc] sm:$0x3]
    %v856 = vld [vmem:[#allocation2 + $0xe] sm:$0x3]
    %v857 = vadd.f32 %v855, %v856
    %v858 = vmul.f32 %v857, 0.5
    %v859 = vld [vmem:[%s2] sm:$0x1]
    %v861 = vlaneseq
    %v862 = vshrl.u32 %v861, 7
    %v863 = vsub.s32 0, %v862
    %v864 = vrot.slane %v859, %v863
    %v866 = vadd.f32 %v858, %v864
    %867 = vst [vmem:[#allocation3 + $0x6] sm:$0x3] %v866
    %v868 = vld [vmem:[#allocation2 + $0x10] sm:$0x3]
    %v869 = vld [vmem:[#allocation2 + $0x12] sm:$0x3]
    %v870 = vadd.f32 %v868, %v869
    %v871 = vmul.f32 %v870, 0.5
    %v872 = vld [vmem:[%s2] sm:$0x1]
    %v874 = vlaneseq
    %v875 = vshrl.u32 %v874, 7
    %v876 = vsub.s32 0, %v875
    %v877 = vrot.slane %v872, %v876
    %v879 = vadd.f32 %v871, %v877
    %880 = vst [vmem:[#allocation3 + $0x8] sm:$0x3] %v879
    %v881 = vld [vmem:[#allocation2 + $0x14] sm:$0x3]
    %v882 = vld [vmem:[#allocation2 + $0x16] sm:$0x3]
    %v883 = vadd.f32 %v881, %v882
    %v884 = vmul.f32 %v883, 0.5
    %v885 = vld [vmem:[%s2] sm:$0x1]
    %v887 = vlaneseq
    %v888 = vshrl.u32 %v887, 7
    %v889 = vsub.s32 0, %v888
    %v890 = vrot.slane %v885, %v889
    %v892 = vadd.f32 %v884, %v890
    %893 = vst [vmem:[#allocation3 + $0xa] sm:$0x3] %v892
    %v894 = vld [vmem:[#allocation2 + $0x18] sm:$0x3]
    %v895 = vld [vmem:[#allocation2 + $0x1a] sm:$0x3]
    %v896 = vadd.f32 %v894, %v895
    %v897 = vmul.f32 %v896, 0.5
    %v898 = vld [vmem:[%s2] sm:$0x1]
    %v900 = vlaneseq
    %v901 = vshrl.u32 %v900, 7
    %v902 = vsub.s32 0, %v901
    %v903 = vrot.slane %v898, %v902
    %v905 = vadd.f32 %v897, %v903
    %906 = vst [vmem:[#allocation3 + $0xc] sm:$0x3] %v905
    %v907 = vld [vmem:[#allocation2 + $0x1c] sm:$0x3]
    %v908 = vld [vmem:[#allocation2 + $0x1e] sm:$0x3]
    %v909 = vadd.f32 %v907, %v908
    %v910 = vmul.f32 %v909, 0.5
    %v911 = vld [vmem:[%s2] sm:$0x1]
    %v913 = vlaneseq
    %v914 = vshrl.u32 %v913, 7
    %v915 = vsub.s32 0, %v914
    %v916 = vrot.slane %v911, %v915
    %v918 = vadd.f32 %v910, %v916
    %919 = vst [vmem:[#allocation3 + $0xe] sm:$0x3] %v918
    %v920 = vld [vmem:[#allocation2 + $0x20] sm:$0x3]
    %v921 = vld [vmem:[#allocation2 + $0x22] sm:$0x3]
    %v922 = vadd.f32 %v920, %v921
    %v923 = vmul.f32 %v922, 0.5
    %v924 = vld [vmem:[%s2] sm:$0x1]
    %v926 = vlaneseq
    %v927 = vshrl.u32 %v926, 7
    %v928 = vsub.s32 0, %v927
    %v929 = vrot.slane %v924, %v928
    %v931 = vadd.f32 %v923, %v929
    %932 = vst [vmem:[#allocation3 + $0x10] sm:$0x3] %v931
    %v933 = vld [vmem:[#allocation2 + $0x24] sm:$0x3]
    %v934 = vld [vmem:[#allocation2 + $0x26] sm:$0x3]
    %v935 = vadd.f32 %v933, %v934
    %v936 = vmul.f32 %v935, 0.5
    %v937 = vld [vmem:[%s2] sm:$0x1]
    %v939 = vlaneseq
    %v940 = vshrl.u32 %v939, 7
    %v941 = vsub.s32 0, %v940
    %v942 = vrot.slane %v937, %v941
    %v944 = vadd.f32 %v936, %v942
    %945 = vst [vmem:[#allocation3 + $0x12] sm:$0x3] %v944
    %v946 = vld [vmem:[#allocation2 + $0x28] sm:$0x3]
    %v947 = vld [vmem:[#allocation2 + $0x2a] sm:$0x3]
    %v948 = vadd.f32 %v946, %v947
    %v949 = vmul.f32 %v948, 0.5
    %v950 = vld [vmem:[%s2] sm:$0x1]
    %v952 = vlaneseq
    %v953 = vshrl.u32 %v952, 7
    %v954 = vsub.s32 0, %v953
    %v955 = vrot.slane %v950, %v954
    %v957 = vadd.f32 %v949, %v955
    %958 = vst [vmem:[#allocation3 + $0x14] sm:$0x3] %v957
    %v959 = vld [vmem:[#allocation2 + $0x2c] sm:$0x3]
    %v960 = vld [vmem:[#allocation2 + $0x2e] sm:$0x3]
    %v961 = vadd.f32 %v959, %v960
    %v962 = vmul.f32 %v961, 0.5
    %v963 = vld [vmem:[%s2] sm:$0x1]
    %v965 = vlaneseq
    %v966 = vshrl.u32 %v965, 7
    %v967 = vsub.s32 0, %v966
    %v968 = vrot.slane %v963, %v967
    %v970 = vadd.f32 %v962, %v968
    %971 = vst [vmem:[#allocation3 + $0x16] sm:$0x3] %v970
    %v972 = vld [vmem:[#allocation2 + $0x30] sm:$0x3]
    %v973 = vld [vmem:[#allocation2 + $0x32] sm:$0x3]
    %v974 = vadd.f32 %v972, %v973
    %v975 = vmul.f32 %v974, 0.5
    %v976 = vld [vmem:[%s2] sm:$0x1]
    %v978 = vlaneseq
    %v979 = vshrl.u32 %v978, 7
    %v980 = vsub.s32 0, %v979
    %v981 = vrot.slane %v976, %v980
    %v983 = vadd.f32 %v975, %v981
    %984 = vst [vmem:[#allocation3 + $0x18] sm:$0x3] %v983
    %v985 = vld [vmem:[#allocation2 + $0x34] sm:$0x3]
    %v986 = vld [vmem:[#allocation2 + $0x36] sm:$0x3]
    %v987 = vadd.f32 %v985, %v986
    %v988 = vmul.f32 %v987, 0.5
    %v989 = vld [vmem:[%s2] sm:$0x1]
    %v991 = vlaneseq
    %v992 = vshrl.u32 %v991, 7
    %v993 = vsub.s32 0, %v992
    %v994 = vrot.slane %v989, %v993
    %v996 = vadd.f32 %v988, %v994
    %997 = vst [vmem:[#allocation3 + $0x1a] sm:$0x3] %v996
    %v998 = vld [vmem:[#allocation3] sm:$0xff]
    %v999 = vld [vmem:[#allocation3 + $0x8] sm:$0xff]
    %v1000 = vld [vmem:[#allocation3 + $0x10] sm:$0xf]
    %v1001 = vpack.c.bf16 %v999, %v998
    %v1002 = vpack.c.bf16 %v1000, %v1000
    %v1003 = vld [vmem:[%s3] sm:$0xf]
    %v1004 = vld [vmem:[%s3 + $0x4] sm:$0xf]
    %v1005 = vld [vmem:[%s3 + $0x8] sm:$0xf]
    %v1006 = vld [vmem:[%s3 + $0xc] sm:$0xf]
    %v1007 = vld [vmem:[%s3 + $0x10] sm:$0xf]
    %v1008 = vld [vmem:[%s3 + $0x14] sm:$0xf]
    %v1009 = vld [vmem:[%s3 + $0x18] sm:$0xf]
    %v1010 = vld [vmem:[%s3 + $0x1c] sm:$0xf]
    %v1011 = vld [vmem:[%s3 + $0x20] sm:$0xf]
    %v1012 = vld [vmem:[%s3 + $0x24] sm:$0xf]
    %v1013 = vld [vmem:[%s3 + $0x28] sm:$0xf]
    %v1014 = vld [vmem:[%s3 + $0x2c] sm:$0xf]
    %v1015 = vld [vmem:[%s3 + $0x30] sm:$0xf]
    %v1016 = vld [vmem:[%s3 + $0x34] sm:$0xf]
    %v1017 = vld [vmem:[%s3 + $0x38] sm:$0xf]
    %v1018 = vld [vmem:[%s3 + $0x3c] sm:$0xf]
    %v1019 = vld [vmem:[#allocation3 + $0x2] sm:$0xff]
    %v1020 = vld [vmem:[#allocation3 + $0xa] sm:$0xff]
    %v1021 = vld [vmem:[#allocation3 + $0x12] sm:$0xf]
    %v1022 = vpack.c.bf16 %v1020, %v1019
    %v1023 = vpack.c.bf16 %v1021, %v1021
    %s1024 = scalar_lea.vmem %s3, 64
    %v1025 = vld [vmem:[%s1024] sm:$0xf]
    %v1026 = vld [vmem:[%s1024 + $0x4] sm:$0xf]
    %v1027 = vld [vmem:[%s1024 + $0x8] sm:$0xf]
    %v1028 = vld [vmem:[%s1024 + $0xc] sm:$0xf]
    %v1029 = vld [vmem:[%s1024 + $0x10] sm:$0xf]
    %v1030 = vld [vmem:[%s1024 + $0x14] sm:$0xf]
    %v1031 = vld [vmem:[%s1024 + $0x18] sm:$0xf]
    %v1032 = vld [vmem:[%s1024 + $0x1c] sm:$0xf]
    %v1033 = vld [vmem:[%s1024 + $0x20] sm:$0xf]
    %v1034 = vld [vmem:[%s1024 + $0x24] sm:$0xf]
    %v1035 = vld [vmem:[%s1024 + $0x28] sm:$0xf]
    %v1036 = vld [vmem:[%s1024 + $0x2c] sm:$0xf]
    %v1037 = vld [vmem:[%s1024 + $0x30] sm:$0xf]
    %v1038 = vld [vmem:[%s1024 + $0x34] sm:$0xf]
    %v1039 = vld [vmem:[%s1024 + $0x38] sm:$0xf]
    %v1040 = vld [vmem:[%s1024 + $0x3c] sm:$0xf]
    %v1057 = vunpack.c.l.b16 %v1025
    %v1058 = vunpack.c.l.b16 %v1026
    %v1059 = vunpack.c.l.b16 %v1027
    %v1060 = vunpack.c.l.b16 %v1028
    %v1061 = vunpack.c.l.b16 %v1029
    %v1062 = vunpack.c.l.b16 %v1030
    %v1063 = vunpack.c.l.b16 %v1031
    %v1064 = vunpack.c.l.b16 %v1032
    %v1065 = vunpack.c.l.b16 %v1033
    %v1066 = vunpack.c.l.b16 %v1034
    %v1067 = vunpack.c.l.b16 %v1035
    %v1068 = vunpack.c.l.b16 %v1036
    %v1069 = vunpack.c.l.b16 %v1037
    %v1070 = vunpack.c.l.b16 %v1038
    %v1071 = vunpack.c.l.b16 %v1039
    %v1072 = vunpack.c.l.b16 %v1040
    %v1073 = vpack.c.b16 %v1058, %v1057
    %v1074 = vpack.c.b16 %v1060, %v1059
    %v1075 = vpack.c.b16 %v1062, %v1061
    %v1076 = vpack.c.b16 %v1064, %v1063
    %v1077 = vpack.c.b16 %v1066, %v1065
    %v1078 = vpack.c.b16 %v1068, %v1067
    %v1079 = vpack.c.b16 %v1070, %v1069
    %v1080 = vpack.c.b16 %v1072, %v1071
    %1089 = vmatprep.subr.bf16.mxu0 0
    %1090 = vmatpush1.bf16.msra.mxu0 %v1080
    %1091 = vmatprep.subr.bf16.mxu0 0
    %1092 = vmatpush1.bf16.msra.mxu0 %v1079
    %1093 = vmatprep.subr.bf16.mxu0 0
    %1094 = vmatpush1.bf16.msra.mxu0 %v1078
    %1095 = vmatprep.subr.bf16.mxu0 0
    %1096 = vmatpush1.bf16.msra.mxu0 %v1077
    %1097 = vmatprep.subr.bf16.mxu0 0
    %1098 = vmatpush1.bf16.msra.mxu0 %v1076
    %1099 = vmatprep.subr.bf16.mxu0 0
    %1100 = vmatpush1.bf16.msra.mxu0 %v1075
    %1101 = vmatprep.subr.bf16.mxu0 0
    %1102 = vmatpush1.bf16.msra.mxu0 %v1074
    %1103 = vmatprep.subr.bf16.mxu0 0
    %1104 = vmatpush1.bf16.msra.mxu0 %v1073
    %1105 = vmatprep.subr.bf16.mxu0 0
    %1106 = vmatpush2.bf16.msra.mxu0 0
    %1107 = vmatprep.subr.bf16.mxu0 0
    %1108 = vmatpush2.bf16.msra.mxu0 0
    %1109 = vmatprep.subr.bf16.mxu0 0
    %1110 = vmatpush2.bf16.msra.mxu0 0
    %1111 = vmatprep.subr.bf16.mxu0 0
    %1112 = vmatpush2.bf16.msra.mxu0 0
    %1113 = vmatprep.subr.bf16.mxu0 0
    %1114 = vmatpush2.bf16.msra.mxu0 0
    %1115 = vmatprep.subr.bf16.mxu0 0
    %1116 = vmatpush2.bf16.msra.mxu0 0
    %1117 = vmatprep.subr.bf16.mxu0 0
    %1118 = vmatpush2.bf16.msra.mxu0 0
    %1119 = vmatprep.subr.bf16.mxu0 0
    %1120 = vmatpush2.bf16.msra.mxu0 0
    %1121 = vmatprep.mubr.bf16.mxu0 0
    %1122 = vmatmul.mubr.bf16.gmra.mxu0 %v1022
    %v1123 = vpop.f32.mrf.mxu0
    %v1124 = vadd.f32 0.0, %v1123
    %v1125 = vpop.f32.mrf.mxu0
    %v1126 = vpop.f32.mrf.mxu0
    %v1127 = vadd.f32 0.0, %v1126
    %v1128 = vpop.f32.mrf.mxu0
    %1129 = vmatprep.mubr.bf16.mxu0 0
    %1130 = vmatmul.mubr.bf16.gmra.mxu0 %v1023
    %v1131 = vpop.f32.mrf.mxu0
    %v1132 = vadd.f32 0.0, %v1131
    %v1133 = vpop.f32.mrf.mxu0
    %v1134 = vpop.f32.mrf.mxu0
    %v1135 = vpop.f32.mrf.mxu0
    %1136 = vdwg.mxu0
    %v1153 = vunpack.c.l.b16 %v1003
    %v1154 = vunpack.c.l.b16 %v1004
    %v1155 = vunpack.c.l.b16 %v1005
    %v1156 = vunpack.c.l.b16 %v1006
    %v1157 = vunpack.c.l.b16 %v1007
    %v1158 = vunpack.c.l.b16 %v1008
    %v1159 = vunpack.c.l.b16 %v1009
    %v1160 = vunpack.c.l.b16 %v1010
    %v1161 = vunpack.c.l.b16 %v1011
    %v1162 = vunpack.c.l.b16 %v1012
    %v1163 = vunpack.c.l.b16 %v1013
    %v1164 = vunpack.c.l.b16 %v1014
    %v1165 = vunpack.c.l.b16 %v1015
    %v1166 = vunpack.c.l.b16 %v1016
    %v1167 = vunpack.c.l.b16 %v1017
    %v1168 = vunpack.c.l.b16 %v1018
    %v1169 = vpack.c.b16 %v1154, %v1153
    %v1170 = vpack.c.b16 %v1156, %v1155
    %v1171 = vpack.c.b16 %v1158, %v1157
    %v1172 = vpack.c.b16 %v1160, %v1159
    %v1173 = vpack.c.b16 %v1162, %v1161
    %v1174 = vpack.c.b16 %v1164, %v1163
    %v1175 = vpack.c.b16 %v1166, %v1165
    %v1176 = vpack.c.b16 %v1168, %v1167
    %1185 = vmatprep.subr.bf16.mxu0 0
    %1186 = vmatpush1.bf16.msra.mxu0 %v1176
    %1187 = vmatprep.subr.bf16.mxu0 0
    %1188 = vmatpush1.bf16.msra.mxu0 %v1175
    %1189 = vmatprep.subr.bf16.mxu0 0
    %1190 = vmatpush1.bf16.msra.mxu0 %v1174
    %1191 = vmatprep.subr.bf16.mxu0 0
    %1192 = vmatpush1.bf16.msra.mxu0 %v1173
    %1193 = vmatprep.subr.bf16.mxu0 0
    %1194 = vmatpush1.bf16.msra.mxu0 %v1172
    %1195 = vmatprep.subr.bf16.mxu0 0
    %1196 = vmatpush1.bf16.msra.mxu0 %v1171
    %1197 = vmatprep.subr.bf16.mxu0 0
    %1198 = vmatpush1.bf16.msra.mxu0 %v1170
    %1199 = vmatprep.subr.bf16.mxu0 0
    %1200 = vmatpush1.bf16.msra.mxu0 %v1169
    %1201 = vmatprep.subr.bf16.mxu0 0
    %1202 = vmatpush2.bf16.msra.mxu0 0
    %1203 = vmatprep.subr.bf16.mxu0 0
    %1204 = vmatpush2.bf16.msra.mxu0 0
    %1205 = vmatprep.subr.bf16.mxu0 0
    %1206 = vmatpush2.bf16.msra.mxu0 0
    %1207 = vmatprep.subr.bf16.mxu0 0
    %1208 = vmatpush2.bf16.msra.mxu0 0
    %1209 = vmatprep.subr.bf16.mxu0 0
    %1210 = vmatpush2.bf16.msra.mxu0 0
    %1211 = vmatprep.subr.bf16.mxu0 0
    %1212 = vmatpush2.bf16.msra.mxu0 0
    %1213 = vmatprep.subr.bf16.mxu0 0
    %1214 = vmatpush2.bf16.msra.mxu0 0
    %1215 = vmatprep.subr.bf16.mxu0 0
    %1216 = vmatpush2.bf16.msra.mxu0 0
    %1217 = vmatprep.mubr.bf16.mxu0 0
    %1218 = vmatmul.mubr.bf16.gmra.mxu0 %v1001
    %v1219 = vpop.f32.mrf.mxu0
    %v1220 = vadd.f32 %v1124, %v1219
    %v1221 = vpop.f32.mrf.mxu0
    %v1222 = vpop.f32.mrf.mxu0
    %v1223 = vadd.f32 %v1127, %v1222
    %v1224 = vpop.f32.mrf.mxu0
    %1225 = vmatprep.mubr.bf16.mxu0 0
    %1226 = vmatmul.mubr.bf16.gmra.mxu0 %v1002
    %v1227 = vpop.f32.mrf.mxu0
    %v1228 = vadd.f32 %v1132, %v1227
    %v1229 = vpop.f32.mrf.mxu0
    %v1230 = vpop.f32.mrf.mxu0
    %v1231 = vpop.f32.mrf.mxu0
    %1232 = vdwg.mxu0
    %v1233 = vld [vmem:[#allocation3 + $0x4] sm:$0xff]
    %v1234 = vld [vmem:[#allocation3 + $0xc] sm:$0xff]
    %v1235 = vld [vmem:[#allocation3 + $0x14] sm:$0xf]
    %v1236 = vpack.c.bf16 %v1234, %v1233
    %v1237 = vpack.c.bf16 %v1235, %v1235
    %s1238 = scalar_lea.vmem %s3, 128
    %v1239 = vld [vmem:[%s1238] sm:$0xf]
    %v1240 = vld [vmem:[%s1238 + $0x4] sm:$0xf]
    %v1241 = vld [vmem:[%s1238 + $0x8] sm:$0xf]
    %v1242 = vld [vmem:[%s1238 + $0xc] sm:$0xf]
    %v1243 = vld [vmem:[%s1238 + $0x10] sm:$0xf]
    %v1244 = vld [vmem:[%s1238 + $0x14] sm:$0xf]
    %v1245 = vld [vmem:[%s1238 + $0x18] sm:$0xf]
    %v1246 = vld [vmem:[%s1238 + $0x1c] sm:$0xf]
    %v1247 = vld [vmem:[%s1238 + $0x20] sm:$0xf]
    %v1248 = vld [vmem:[%s1238 + $0x24] sm:$0xf]
    %v1249 = vld [vmem:[%s1238 + $0x28] sm:$0xf]
    %v1250 = vld [vmem:[%s1238 + $0x2c] sm:$0xf]
    %v1251 = vld [vmem:[%s1238 + $0x30] sm:$0xf]
    %v1252 = vld [vmem:[%s1238 + $0x34] sm:$0xf]
    %v1253 = vld [vmem:[%s1238 + $0x38] sm:$0xf]
    %v1254 = vld [vmem:[%s1238 + $0x3c] sm:$0xf]
    %v1271 = vunpack.c.l.b16 %v1239
    %v1272 = vunpack.c.l.b16 %v1240
    %v1273 = vunpack.c.l.b16 %v1241
    %v1274 = vunpack.c.l.b16 %v1242
    %v1275 = vunpack.c.l.b16 %v1243
    %v1276 = vunpack.c.l.b16 %v1244
    %v1277 = vunpack.c.l.b16 %v1245
    %v1278 = vunpack.c.l.b16 %v1246
    %v1279 = vunpack.c.l.b16 %v1247
    %v1280 = vunpack.c.l.b16 %v1248
    %v1281 = vunpack.c.l.b16 %v1249
    %v1282 = vunpack.c.l.b16 %v1250
    %v1283 = vunpack.c.l.b16 %v1251
    %v1284 = vunpack.c.l.b16 %v1252
    %v1285 = vunpack.c.l.b16 %v1253
    %v1286 = vunpack.c.l.b16 %v1254
    %v1287 = vpack.c.b16 %v1272, %v1271
    %v1288 = vpack.c.b16 %v1274, %v1273
    %v1289 = vpack.c.b16 %v1276, %v1275
    %v1290 = vpack.c.b16 %v1278, %v1277
    %v1291 = vpack.c.b16 %v1280, %v1279
    %v1292 = vpack.c.b16 %v1282, %v1281
    %v1293 = vpack.c.b16 %v1284, %v1283
    %v1294 = vpack.c.b16 %v1286, %v1285
    %1303 = vmatprep.subr.bf16.mxu0 0
    %1304 = vmatpush1.bf16.msra.mxu0 %v1294
    %1305 = vmatprep.subr.bf16.mxu0 0
    %1306 = vmatpush1.bf16.msra.mxu0 %v1293
    %1307 = vmatprep.subr.bf16.mxu0 0
    %1308 = vmatpush1.bf16.msra.mxu0 %v1292
    %1309 = vmatprep.subr.bf16.mxu0 0
    %1310 = vmatpush1.bf16.msra.mxu0 %v1291
    %1311 = vmatprep.subr.bf16.mxu0 0
    %1312 = vmatpush1.bf16.msra.mxu0 %v1290
    %1313 = vmatprep.subr.bf16.mxu0 0
    %1314 = vmatpush1.bf16.msra.mxu0 %v1289
    %1315 = vmatprep.subr.bf16.mxu0 0
    %1316 = vmatpush1.bf16.msra.mxu0 %v1288
    %1317 = vmatprep.subr.bf16.mxu0 0
    %1318 = vmatpush1.bf16.msra.mxu0 %v1287
    %1319 = vmatprep.subr.bf16.mxu0 0
    %1320 = vmatpush2.bf16.msra.mxu0 0
    %1321 = vmatprep.subr.bf16.mxu0 0
    %1322 = vmatpush2.bf16.msra.mxu0 0
    %1323 = vmatprep.subr.bf16.mxu0 0
    %1324 = vmatpush2.bf16.msra.mxu0 0
    %1325 = vmatprep.subr.bf16.mxu0 0
    %1326 = vmatpush2.bf16.msra.mxu0 0
    %1327 = vmatprep.subr.bf16.mxu0 0
    %1328 = vmatpush2.bf16.msra.mxu0 0
    %1329 = vmatprep.subr.bf16.mxu0 0
    %1330 = vmatpush2.bf16.msra.mxu0 0
    %1331 = vmatprep.subr.bf16.mxu0 0
    %1332 = vmatpush2.bf16.msra.mxu0 0
    %1333 = vmatprep.subr.bf16.mxu0 0
    %1334 = vmatpush2.bf16.msra.mxu0 0
    %1335 = vmatprep.mubr.bf16.mxu0 0
    %1336 = vmatmul.mubr.bf16.gmra.mxu0 %v1236
    %v1337 = vpop.f32.mrf.mxu0
    %v1338 = vadd.f32 0.0, %v1337
    %v1339 = vpop.f32.mrf.mxu0
    %v1340 = vpop.f32.mrf.mxu0
    %v1341 = vadd.f32 0.0, %v1340
    %v1342 = vpop.f32.mrf.mxu0
    %1343 = vmatprep.mubr.bf16.mxu0 0
    %1344 = vmatmul.mubr.bf16.gmra.mxu0 %v1237
    %v1345 = vpop.f32.mrf.mxu0
    %v1346 = vadd.f32 0.0, %v1345
    %v1347 = vpop.f32.mrf.mxu0
    %v1348 = vpop.f32.mrf.mxu0
    %v1349 = vpop.f32.mrf.mxu0
    %1350 = vdwg.mxu0
    %v1351 = vadd.f32 %v1220, %v1338
    %v1352 = vadd.f32 %v1223, %v1341
    %v1353 = vadd.f32 %v1228, %v1346
    %v1354 = vld [vmem:[#allocation3 + $0x6] sm:$0xff]
    %v1355 = vld [vmem:[#allocation3 + $0xe] sm:$0xff]
    %v1356 = vld [vmem:[#allocation3 + $0x16] sm:$0xf]
    %v1357 = vpack.c.bf16 %v1355, %v1354
    %v1358 = vpack.c.bf16 %v1356, %v1356
    %s1359 = scalar_lea.vmem %s3, 192
    %v1360 = vld [vmem:[%s1359] sm:$0xf]
    %v1361 = vld [vmem:[%s1359 + $0x4] sm:$0xf]
    %v1362 = vld [vmem:[%s1359 + $0x8] sm:$0xf]
    %v1363 = vld [vmem:[%s1359 + $0xc] sm:$0xf]
    %v1364 = vld [vmem:[%s1359 + $0x10] sm:$0xf]
    %v1365 = vld [vmem:[%s1359 + $0x14] sm:$0xf]
    %v1366 = vld [vmem:[%s1359 + $0x18] sm:$0xf]
    %v1367 = vld [vmem:[%s1359 + $0x1c] sm:$0xf]
    %v1368 = vld [vmem:[%s1359 + $0x20] sm:$0xf]
    %v1369 = vld [vmem:[%s1359 + $0x24] sm:$0xf]
    %v1370 = vld [vmem:[%s1359 + $0x28] sm:$0xf]
    %v1371 = vld [vmem:[%s1359 + $0x2c] sm:$0xf]
    %v1372 = vld [vmem:[%s1359 + $0x30] sm:$0xf]
    %v1373 = vld [vmem:[%s1359 + $0x34] sm:$0xf]
    %v1374 = vld [vmem:[%s1359 + $0x38] sm:$0xf]
    %v1375 = vld [vmem:[%s1359 + $0x3c] sm:$0xf]
    %v1392 = vunpack.c.l.b16 %v1360
    %v1393 = vunpack.c.l.b16 %v1361
    %v1394 = vunpack.c.l.b16 %v1362
    %v1395 = vunpack.c.l.b16 %v1363
    %v1396 = vunpack.c.l.b16 %v1364
    %v1397 = vunpack.c.l.b16 %v1365
    %v1398 = vunpack.c.l.b16 %v1366
    %v1399 = vunpack.c.l.b16 %v1367
    %v1400 = vunpack.c.l.b16 %v1368
    %v1401 = vunpack.c.l.b16 %v1369
    %v1402 = vunpack.c.l.b16 %v1370
    %v1403 = vunpack.c.l.b16 %v1371
    %v1404 = vunpack.c.l.b16 %v1372
    %v1405 = vunpack.c.l.b16 %v1373
    %v1406 = vunpack.c.l.b16 %v1374
    %v1407 = vunpack.c.l.b16 %v1375
    %v1408 = vpack.c.b16 %v1393, %v1392
    %v1409 = vpack.c.b16 %v1395, %v1394
    %v1410 = vpack.c.b16 %v1397, %v1396
    %v1411 = vpack.c.b16 %v1399, %v1398
    %v1412 = vpack.c.b16 %v1401, %v1400
    %v1413 = vpack.c.b16 %v1403, %v1402
    %v1414 = vpack.c.b16 %v1405, %v1404
    %v1415 = vpack.c.b16 %v1407, %v1406
    %1424 = vmatprep.subr.bf16.mxu0 0
    %1425 = vmatpush1.bf16.msra.mxu0 %v1415
    %1426 = vmatprep.subr.bf16.mxu0 0
    %1427 = vmatpush1.bf16.msra.mxu0 %v1414
    %1428 = vmatprep.subr.bf16.mxu0 0
    %1429 = vmatpush1.bf16.msra.mxu0 %v1413
    %1430 = vmatprep.subr.bf16.mxu0 0
    %1431 = vmatpush1.bf16.msra.mxu0 %v1412
    %1432 = vmatprep.subr.bf16.mxu0 0
    %1433 = vmatpush1.bf16.msra.mxu0 %v1411
    %1434 = vmatprep.subr.bf16.mxu0 0
    %1435 = vmatpush1.bf16.msra.mxu0 %v1410
    %1436 = vmatprep.subr.bf16.mxu0 0
    %1437 = vmatpush1.bf16.msra.mxu0 %v1409
    %1438 = vmatprep.subr.bf16.mxu0 0
    %1439 = vmatpush1.bf16.msra.mxu0 %v1408
    %1440 = vmatprep.subr.bf16.mxu0 0
    %1441 = vmatpush2.bf16.msra.mxu0 0
    %1442 = vmatprep.subr.bf16.mxu0 0
    %1443 = vmatpush2.bf16.msra.mxu0 0
    %1444 = vmatprep.subr.bf16.mxu0 0
    %1445 = vmatpush2.bf16.msra.mxu0 0
    %1446 = vmatprep.subr.bf16.mxu0 0
    %1447 = vmatpush2.bf16.msra.mxu0 0
    %1448 = vmatprep.subr.bf16.mxu0 0
    %1449 = vmatpush2.bf16.msra.mxu0 0
    %1450 = vmatprep.subr.bf16.mxu0 0
    %1451 = vmatpush2.bf16.msra.mxu0 0
    %1452 = vmatprep.subr.bf16.mxu0 0
    %1453 = vmatpush2.bf16.msra.mxu0 0
    %1454 = vmatprep.subr.bf16.mxu0 0
    %1455 = vmatpush2.bf16.msra.mxu0 0
    %1456 = vmatprep.mubr.bf16.mxu0 0
    %1457 = vmatmul.mubr.bf16.gmra.mxu0 %v1357
    %v1458 = vpop.f32.mrf.mxu0
    %v1459 = vadd.f32 0.0, %v1458
    %v1460 = vpop.f32.mrf.mxu0
    %v1461 = vpop.f32.mrf.mxu0
    %v1462 = vadd.f32 0.0, %v1461
    %v1463 = vpop.f32.mrf.mxu0
    %1464 = vmatprep.mubr.bf16.mxu0 0
    %1465 = vmatmul.mubr.bf16.gmra.mxu0 %v1358
    %v1466 = vpop.f32.mrf.mxu0
    %v1467 = vadd.f32 0.0, %v1466
    %v1468 = vpop.f32.mrf.mxu0
    %v1469 = vpop.f32.mrf.mxu0
    %v1470 = vpop.f32.mrf.mxu0
    %1471 = vdwg.mxu0
    %v1472 = vadd.f32 %v1351, %v1459
    %v1473 = vadd.f32 %v1352, %v1462
    %v1474 = vadd.f32 %v1353, %v1467
    %v1475 = vld [vmem:[#allocation3 + $0x8] sm:$0xff]
    %v1476 = vld [vmem:[#allocation3 + $0x10] sm:$0xff]
    %v1477 = vld [vmem:[#allocation3 + $0x18] sm:$0xf]
    %v1478 = vpack.c.bf16 %v1476, %v1475
    %v1479 = vpack.c.bf16 %v1477, %v1477
    %s1480 = scalar_lea.vmem %s3, 256
    %v1481 = vld [vmem:[%s1480] sm:$0xf]
    %v1482 = vld [vmem:[%s1480 + $0x4] sm:$0xf]
    %v1483 = vld [vmem:[%s1480 + $0x8] sm:$0xf]
    %v1484 = vld [vmem:[%s1480 + $0xc] sm:$0xf]
    %v1485 = vld [vmem:[%s1480 + $0x10] sm:$0xf]
    %v1486 = vld [vmem:[%s1480 + $0x14] sm:$0xf]
    %v1487 = vld [vmem:[%s1480 + $0x18] sm:$0xf]
    %v1488 = vld [vmem:[%s1480 + $0x1c] sm:$0xf]
    %v1489 = vld [vmem:[%s1480 + $0x20] sm:$0xf]
    %v1490 = vld [vmem:[%s1480 + $0x24] sm:$0xf]
    %v1491 = vld [vmem:[%s1480 + $0x28] sm:$0xf]
    %v1492 = vld [vmem:[%s1480 + $0x2c] sm:$0xf]
    %v1493 = vld [vmem:[%s1480 + $0x30] sm:$0xf]
    %v1494 = vld [vmem:[%s1480 + $0x34] sm:$0xf]
    %v1495 = vld [vmem:[%s1480 + $0x38] sm:$0xf]
    %v1496 = vld [vmem:[%s1480 + $0x3c] sm:$0xf]
    %v1513 = vunpack.c.l.b16 %v1481
    %v1514 = vunpack.c.l.b16 %v1482
    %v1515 = vunpack.c.l.b16 %v1483
    %v1516 = vunpack.c.l.b16 %v1484
    %v1517 = vunpack.c.l.b16 %v1485
    %v1518 = vunpack.c.l.b16 %v1486
    %v1519 = vunpack.c.l.b16 %v1487
    %v1520 = vunpack.c.l.b16 %v1488
    %v1521 = vunpack.c.l.b16 %v1489
    %v1522 = vunpack.c.l.b16 %v1490
    %v1523 = vunpack.c.l.b16 %v1491
    %v1524 = vunpack.c.l.b16 %v1492
    %v1525 = vunpack.c.l.b16 %v1493
    %v1526 = vunpack.c.l.b16 %v1494
    %v1527 = vunpack.c.l.b16 %v1495
    %v1528 = vunpack.c.l.b16 %v1496
    %v1529 = vpack.c.b16 %v1514, %v1513
    %v1530 = vpack.c.b16 %v1516, %v1515
    %v1531 = vpack.c.b16 %v1518, %v1517
    %v1532 = vpack.c.b16 %v1520, %v1519
    %v1533 = vpack.c.b16 %v1522, %v1521
    %v1534 = vpack.c.b16 %v1524, %v1523
    %v1535 = vpack.c.b16 %v1526, %v1525
    %v1536 = vpack.c.b16 %v1528, %v1527
    %1545 = vmatprep.subr.bf16.mxu0 0
    %1546 = vmatpush1.bf16.msra.mxu0 %v1536
    %1547 = vmatprep.subr.bf16.mxu0 0
    %1548 = vmatpush1.bf16.msra.mxu0 %v1535
    %1549 = vmatprep.subr.bf16.mxu0 0
    %1550 = vmatpush1.bf16.msra.mxu0 %v1534
    %1551 = vmatprep.subr.bf16.mxu0 0
    %1552 = vmatpush1.bf16.msra.mxu0 %v1533
    %1553 = vmatprep.subr.bf16.mxu0 0
    %1554 = vmatpush1.bf16.msra.mxu0 %v1532
    %1555 = vmatprep.subr.bf16.mxu0 0
    %1556 = vmatpush1.bf16.msra.mxu0 %v1531
    %1557 = vmatprep.subr.bf16.mxu0 0
    %1558 = vmatpush1.bf16.msra.mxu0 %v1530
    %1559 = vmatprep.subr.bf16.mxu0 0
    %1560 = vmatpush1.bf16.msra.mxu0 %v1529
    %1561 = vmatprep.subr.bf16.mxu0 0
    %1562 = vmatpush2.bf16.msra.mxu0 0
    %1563 = vmatprep.subr.bf16.mxu0 0
    %1564 = vmatpush2.bf16.msra.mxu0 0
    %1565 = vmatprep.subr.bf16.mxu0 0
    %1566 = vmatpush2.bf16.msra.mxu0 0
    %1567 = vmatprep.subr.bf16.mxu0 0
    %1568 = vmatpush2.bf16.msra.mxu0 0
    %1569 = vmatprep.subr.bf16.mxu0 0
    %1570 = vmatpush2.bf16.msra.mxu0 0
    %1571 = vmatprep.subr.bf16.mxu0 0
    %1572 = vmatpush2.bf16.msra.mxu0 0
    %1573 = vmatprep.subr.bf16.mxu0 0
    %1574 = vmatpush2.bf16.msra.mxu0 0
    %1575 = vmatprep.subr.bf16.mxu0 0
    %1576 = vmatpush2.bf16.msra.mxu0 0
    %1577 = vmatprep.mubr.bf16.mxu0 0
    %1578 = vmatmul.mubr.bf16.gmra.mxu0 %v1478
    %v1579 = vpop.f32.mrf.mxu0
    %v1580 = vadd.f32 0.0, %v1579
    %v1581 = vpop.f32.mrf.mxu0
    %v1582 = vpop.f32.mrf.mxu0
    %v1583 = vadd.f32 0.0, %v1582
    %v1584 = vpop.f32.mrf.mxu0
    %1585 = vmatprep.mubr.bf16.mxu0 0
    %1586 = vmatmul.mubr.bf16.gmra.mxu0 %v1479
    %v1587 = vpop.f32.mrf.mxu0
    %v1588 = vadd.f32 0.0, %v1587
    %v1589 = vpop.f32.mrf.mxu0
    %v1590 = vpop.f32.mrf.mxu0
    %v1591 = vpop.f32.mrf.mxu0
    %1592 = vdwg.mxu0
    %v1593 = vadd.f32 %v1472, %v1580
    %v1594 = vadd.f32 %v1473, %v1583
    %v1595 = vadd.f32 %v1474, %v1588
    %1596 = vst [vmem:[#allocation4] sm:$0xff] %v1593
    %1597 = vst [vmem:[#allocation4 + $0x8] sm:$0xff] %v1594
    %1598 = vst [vmem:[#allocation4 + $0x10] sm:$0xf] %v1595
    %v1599 = vld [vmem:[#allocation4] sm:$0x3]
    %v1600 = vld [vmem:[#allocation4 + $0x2] sm:$0x3]
    %v1601 = vadd.f32 %v1599, %v1600
    %v1602 = vmul.f32 %v1601, 0.5
    %v1603 = vld [vmem:[%s4] sm:$0x1]
    %v1605 = vlaneseq
    %v1606 = vshrl.u32 %v1605, 7
    %v1607 = vsub.s32 0, %v1606
    %v1608 = vrot.slane %v1603, %v1607
    %v1610 = vadd.f32 %v1602, %v1608
    %1611 = vst [vmem:[#allocation5] sm:$0x3] %v1610
    %v1612 = vld [vmem:[#allocation4 + $0x4] sm:$0x3]
    %v1613 = vld [vmem:[#allocation4 + $0x6] sm:$0x3]
    %v1614 = vadd.f32 %v1612, %v1613
    %v1615 = vmul.f32 %v1614, 0.5
    %v1616 = vld [vmem:[%s4] sm:$0x1]
    %v1618 = vlaneseq
    %v1619 = vshrl.u32 %v1618, 7
    %v1620 = vsub.s32 0, %v1619
    %v1621 = vrot.slane %v1616, %v1620
    %v1623 = vadd.f32 %v1615, %v1621
    %1624 = vst [vmem:[#allocation5 + $0x2] sm:$0x3] %v1623
    %v1625 = vld [vmem:[#allocation4 + $0x8] sm:$0x3]
    %v1626 = vld [vmem:[#allocation4 + $0xa] sm:$0x3]
    %v1627 = vadd.f32 %v1625, %v1626
    %v1628 = vmul.f32 %v1627, 0.5
    %v1629 = vld [vmem:[%s4] sm:$0x1]
    %v1631 = vlaneseq
    %v1632 = vshrl.u32 %v1631, 7
    %v1633 = vsub.s32 0, %v1632
    %v1634 = vrot.slane %v1629, %v1633
    %v1636 = vadd.f32 %v1628, %v1634
    %1637 = vst [vmem:[#allocation5 + $0x4] sm:$0x3] %v1636
    %v1638 = vld [vmem:[#allocation4 + $0xc] sm:$0x3]
    %v1639 = vld [vmem:[#allocation4 + $0xe] sm:$0x3]
    %v1640 = vadd.f32 %v1638, %v1639
    %v1641 = vmul.f32 %v1640, 0.5
    %v1642 = vld [vmem:[%s4] sm:$0x1]
    %v1644 = vlaneseq
    %v1645 = vshrl.u32 %v1644, 7
    %v1646 = vsub.s32 0, %v1645
    %v1647 = vrot.slane %v1642, %v1646
    %v1649 = vadd.f32 %v1641, %v1647
    %1650 = vst [vmem:[#allocation5 + $0x6] sm:$0x3] %v1649
    %v1651 = vld [vmem:[#allocation4 + $0x10] sm:$0x3]
    %v1652 = vld [vmem:[#allocation4 + $0x12] sm:$0x3]
    %v1653 = vadd.f32 %v1651, %v1652
    %v1654 = vmul.f32 %v1653, 0.5
    %v1655 = vld [vmem:[%s4] sm:$0x1]
    %v1657 = vlaneseq
    %v1658 = vshrl.u32 %v1657, 7
    %v1659 = vsub.s32 0, %v1658
    %v1660 = vrot.slane %v1655, %v1659
    %v1662 = vadd.f32 %v1654, %v1660
    %1663 = vst [vmem:[#allocation5 + $0x8] sm:$0x3] %v1662
    %v1664 = vld [vmem:[#allocation5] sm:$0x3]
    %v1665 = vpack.c.bf16 %v1664, %v1664
    %v1666 = vld [vmem:[%s5] sm:$0xf]
    %v1667 = vld [vmem:[%s5 + $0x4] sm:$0xf]
    %v1668 = vld [vmem:[%s5 + $0x8] sm:$0xf]
    %v1669 = vld [vmem:[%s5 + $0xc] sm:$0xf]
    %v1670 = vld [vmem:[%s5 + $0x10] sm:$0xf]
    %v1671 = vld [vmem:[%s5 + $0x14] sm:$0xf]
    %v1672 = vld [vmem:[%s5 + $0x18] sm:$0xf]
    %v1673 = vld [vmem:[%s5 + $0x1c] sm:$0xf]
    %v1674 = vld [vmem:[%s5 + $0x20] sm:$0xf]
    %v1675 = vld [vmem:[%s5 + $0x24] sm:$0xf]
    %v1676 = vld [vmem:[%s5 + $0x28] sm:$0xf]
    %v1677 = vld [vmem:[%s5 + $0x2c] sm:$0xf]
    %v1678 = vld [vmem:[%s5 + $0x30] sm:$0xf]
    %v1679 = vld [vmem:[%s5 + $0x34] sm:$0xf]
    %v1680 = vld [vmem:[%s5 + $0x38] sm:$0xf]
    %v1681 = vld [vmem:[%s5 + $0x3c] sm:$0xf]
    %v1682 = vld [vmem:[#allocation5 + $0x2] sm:$0x3]
    %v1683 = vpack.c.bf16 %v1682, %v1682
    %s1684 = scalar_lea.vmem %s5, 64
    %v1685 = vld [vmem:[%s1684] sm:$0xf]
    %v1686 = vld [vmem:[%s1684 + $0x4] sm:$0xf]
    %v1687 = vld [vmem:[%s1684 + $0x8] sm:$0xf]
    %v1688 = vld [vmem:[%s1684 + $0xc] sm:$0xf]
    %v1689 = vld [vmem:[%s1684 + $0x10] sm:$0xf]
    %v1690 = vld [vmem:[%s1684 + $0x14] sm:$0xf]
    %v1691 = vld [vmem:[%s1684 + $0x18] sm:$0xf]
    %v1692 = vld [vmem:[%s1684 + $0x1c] sm:$0xf]
    %v1693 = vld [vmem:[%s1684 + $0x20] sm:$0xf]
    %v1694 = vld [vmem:[%s1684 + $0x24] sm:$0xf]
    %v1695 = vld [vmem:[%s1684 + $0x28] sm:$0xf]
    %v1696 = vld [vmem:[%s1684 + $0x2c] sm:$0xf]
    %v1697 = vld [vmem:[%s1684 + $0x30] sm:$0xf]
    %v1698 = vld [vmem:[%s1684 + $0x34] sm:$0xf]
    %v1699 = vld [vmem:[%s1684 + $0x38] sm:$0xf]
    %v1700 = vld [vmem:[%s1684 + $0x3c] sm:$0xf]
    %v1717 = vunpack.c.l.b16 %v1685
    %v1718 = vunpack.c.l.b16 %v1686
    %v1719 = vunpack.c.l.b16 %v1687
    %v1720 = vunpack.c.l.b16 %v1688
    %v1721 = vunpack.c.l.b16 %v1689
    %v1722 = vunpack.c.l.b16 %v1690
    %v1723 = vunpack.c.l.b16 %v1691
    %v1724 = vunpack.c.l.b16 %v1692
    %v1725 = vunpack.c.l.b16 %v1693
    %v1726 = vunpack.c.l.b16 %v1694
    %v1727 = vunpack.c.l.b16 %v1695
    %v1728 = vunpack.c.l.b16 %v1696
    %v1729 = vunpack.c.l.b16 %v1697
    %v1730 = vunpack.c.l.b16 %v1698
    %v1731 = vunpack.c.l.b16 %v1699
    %v1732 = vunpack.c.l.b16 %v1700
    %v1733 = vpack.c.b16 %v1718, %v1717
    %v1734 = vpack.c.b16 %v1720, %v1719
    %v1735 = vpack.c.b16 %v1722, %v1721
    %v1736 = vpack.c.b16 %v1724, %v1723
    %v1737 = vpack.c.b16 %v1726, %v1725
    %v1738 = vpack.c.b16 %v1728, %v1727
    %v1739 = vpack.c.b16 %v1730, %v1729
    %v1740 = vpack.c.b16 %v1732, %v1731
    %1749 = vmatprep.subr.bf16.mxu0 0
    %1750 = vmatpush1.bf16.msra.mxu0 %v1740
    %1751 = vmatprep.subr.bf16.mxu0 0
    %1752 = vmatpush1.bf16.msra.mxu0 %v1739
    %1753 = vmatprep.subr.bf16.mxu0 0
    %1754 = vmatpush1.bf16.msra.mxu0 %v1738
    %1755 = vmatprep.subr.bf16.mxu0 0
    %1756 = vmatpush1.bf16.msra.mxu0 %v1737
    %1757 = vmatprep.subr.bf16.mxu0 0
    %1758 = vmatpush1.bf16.msra.mxu0 %v1736
    %1759 = vmatprep.subr.bf16.mxu0 0
    %1760 = vmatpush1.bf16.msra.mxu0 %v1735
    %1761 = vmatprep.subr.bf16.mxu0 0
    %1762 = vmatpush1.bf16.msra.mxu0 %v1734
    %1763 = vmatprep.subr.bf16.mxu0 0
    %1764 = vmatpush1.bf16.msra.mxu0 %v1733
    %1765 = vmatprep.subr.bf16.mxu0 0
    %1766 = vmatpush2.bf16.msra.mxu0 0
    %1767 = vmatprep.subr.bf16.mxu0 0
    %1768 = vmatpush2.bf16.msra.mxu0 0
    %1769 = vmatprep.subr.bf16.mxu0 0
    %1770 = vmatpush2.bf16.msra.mxu0 0
    %1771 = vmatprep.subr.bf16.mxu0 0
    %1772 = vmatpush2.bf16.msra.mxu0 0
    %1773 = vmatprep.subr.bf16.mxu0 0
    %1774 = vmatpush2.bf16.msra.mxu0 0
    %1775 = vmatprep.subr.bf16.mxu0 0
    %1776 = vmatpush2.bf16.msra.mxu0 0
    %1777 = vmatprep.subr.bf16.mxu0 0
    %1778 = vmatpush2.bf16.msra.mxu0 0
    %1779 = vmatprep.subr.bf16.mxu0 0
    %1780 = vmatpush2.bf16.msra.mxu0 0
    %1781 = vmatprep.mubr.bf16.mxu0 0
    %1782 = vmatmul.mubr.bf16.gmra.mxu0 %v1683
    %v1783 = vpop.f32.mrf.mxu0
    %v1784 = vadd.f32 0.0, %v1783
    %v1785 = vpop.f32.mrf.mxu0
    %v1786 = vpop.f32.mrf.mxu0
    %v1787 = vpop.f32.mrf.mxu0
    %1788 = vdwg.mxu0
    %v1805 = vunpack.c.l.b16 %v1666
    %v1806 = vunpack.c.l.b16 %v1667
    %v1807 = vunpack.c.l.b16 %v1668
    %v1808 = vunpack.c.l.b16 %v1669
    %v1809 = vunpack.c.l.b16 %v1670
    %v1810 = vunpack.c.l.b16 %v1671
    %v1811 = vunpack.c.l.b16 %v1672
    %v1812 = vunpack.c.l.b16 %v1673
    %v1813 = vunpack.c.l.b16 %v1674
    %v1814 = vunpack.c.l.b16 %v1675
    %v1815 = vunpack.c.l.b16 %v1676
    %v1816 = vunpack.c.l.b16 %v1677
    %v1817 = vunpack.c.l.b16 %v1678
    %v1818 = vunpack.c.l.b16 %v1679
    %v1819 = vunpack.c.l.b16 %v1680
    %v1820 = vunpack.c.l.b16 %v1681
    %v1821 = vpack.c.b16 %v1806, %v1805
    %v1822 = vpack.c.b16 %v1808, %v1807
    %v1823 = vpack.c.b16 %v1810, %v1809
    %v1824 = vpack.c.b16 %v1812, %v1811
    %v1825 = vpack.c.b16 %v1814, %v1813
    %v1826 = vpack.c.b16 %v1816, %v1815
    %v1827 = vpack.c.b16 %v1818, %v1817
    %v1828 = vpack.c.b16 %v1820, %v1819
    %1837 = vmatprep.subr.bf16.mxu0 0
    %1838 = vmatpush1.bf16.msra.mxu0 %v1828
    %1839 = vmatprep.subr.bf16.mxu0 0
    %1840 = vmatpush1.bf16.msra.mxu0 %v1827
    %1841 = vmatprep.subr.bf16.mxu0 0
    %1842 = vmatpush1.bf16.msra.mxu0 %v1826
    %1843 = vmatprep.subr.bf16.mxu0 0
    %1844 = vmatpush1.bf16.msra.mxu0 %v1825
    %1845 = vmatprep.subr.bf16.mxu0 0
    %1846 = vmatpush1.bf16.msra.mxu0 %v1824
    %1847 = vmatprep.subr.bf16.mxu0 0
    %1848 = vmatpush1.bf16.msra.mxu0 %v1823
    %1849 = vmatprep.subr.bf16.mxu0 0
    %1850 = vmatpush1.bf16.msra.mxu0 %v1822
    %1851 = vmatprep.subr.bf16.mxu0 0
    %1852 = vmatpush1.bf16.msra.mxu0 %v1821
    %1853 = vmatprep.subr.bf16.mxu0 0
    %1854 = vmatpush2.bf16.msra.mxu0 0
    %1855 = vmatprep.subr.bf16.mxu0 0
    %1856 = vmatpush2.bf16.msra.mxu0 0
    %1857 = vmatprep.subr.bf16.mxu0 0
    %1858 = vmatpush2.bf16.msra.mxu0 0
    %1859 = vmatprep.subr.bf16.mxu0 0
    %1860 = vmatpush2.bf16.msra.mxu0 0
    %1861 = vmatprep.subr.bf16.mxu0 0
    %1862 = vmatpush2.bf16.msra.mxu0 0
    %1863 = vmatprep.subr.bf16.mxu0 0
    %1864 = vmatpush2.bf16.msra.mxu0 0
    %1865 = vmatprep.subr.bf16.mxu0 0
    %1866 = vmatpush2.bf16.msra.mxu0 0
    %1867 = vmatprep.subr.bf16.mxu0 0
    %1868 = vmatpush2.bf16.msra.mxu0 0
    %1869 = vmatprep.mubr.bf16.mxu0 0
    %1870 = vmatmul.mubr.bf16.gmra.mxu0 %v1665
    %v1871 = vpop.f32.mrf.mxu0
    %v1872 = vadd.f32 %v1784, %v1871
    %v1873 = vpop.f32.mrf.mxu0
    %v1874 = vpop.f32.mrf.mxu0
    %v1875 = vpop.f32.mrf.mxu0
    %1876 = vdwg.mxu0
    %v1877 = vld [vmem:[#allocation5 + $0x4] sm:$0x3]
    %v1878 = vpack.c.bf16 %v1877, %v1877
    %s1879 = scalar_lea.vmem %s5, 128
    %v1880 = vld [vmem:[%s1879] sm:$0xf]
    %v1881 = vld [vmem:[%s1879 + $0x4] sm:$0xf]
    %v1882 = vld [vmem:[%s1879 + $0x8] sm:$0xf]
    %v1883 = vld [vmem:[%s1879 + $0xc] sm:$0xf]
    %v1884 = vld [vmem:[%s1879 + $0x10] sm:$0xf]
    %v1885 = vld [vmem:[%s1879 + $0x14] sm:$0xf]
    %v1886 = vld [vmem:[%s1879 + $0x18] sm:$0xf]
    %v1887 = vld [vmem:[%s1879 + $0x1c] sm:$0xf]
    %v1888 = vld [vmem:[%s1879 + $0x20] sm:$0xf]
    %v1889 = vld [vmem:[%s1879 + $0x24] sm:$0xf]
    %v1890 = vld [vmem:[%s1879 + $0x28] sm:$0xf]
    %v1891 = vld [vmem:[%s1879 + $0x2c] sm:$0xf]
    %v1892 = vld [vmem:[%s1879 + $0x30] sm:$0xf]
    %v1893 = vld [vmem:[%s1879 + $0x34] sm:$0xf]
    %v1894 = vld [vmem:[%s1879 + $0x38] sm:$0xf]
    %v1895 = vld [vmem:[%s1879 + $0x3c] sm:$0xf]
    %v1912 = vunpack.c.l.b16 %v1880
    %v1913 = vunpack.c.l.b16 %v1881
    %v1914 = vunpack.c.l.b16 %v1882
    %v1915 = vunpack.c.l.b16 %v1883
    %v1916 = vunpack.c.l.b16 %v1884
    %v1917 = vunpack.c.l.b16 %v1885
    %v1918 = vunpack.c.l.b16 %v1886
    %v1919 = vunpack.c.l.b16 %v1887
    %v1920 = vunpack.c.l.b16 %v1888
    %v1921 = vunpack.c.l.b16 %v1889
    %v1922 = vunpack.c.l.b16 %v1890
    %v1923 = vunpack.c.l.b16 %v1891
    %v1924 = vunpack.c.l.b16 %v1892
    %v1925 = vunpack.c.l.b16 %v1893
    %v1926 = vunpack.c.l.b16 %v1894
    %v1927 = vunpack.c.l.b16 %v1895
    %v1928 = vpack.c.b16 %v1913, %v1912
    %v1929 = vpack.c.b16 %v1915, %v1914
    %v1930 = vpack.c.b16 %v1917, %v1916
    %v1931 = vpack.c.b16 %v1919, %v1918
    %v1932 = vpack.c.b16 %v1921, %v1920
    %v1933 = vpack.c.b16 %v1923, %v1922
    %v1934 = vpack.c.b16 %v1925, %v1924
    %v1935 = vpack.c.b16 %v1927, %v1926
    %1944 = vmatprep.subr.bf16.mxu0 0
    %1945 = vmatpush1.bf16.msra.mxu0 %v1935
    %1946 = vmatprep.subr.bf16.mxu0 0
    %1947 = vmatpush1.bf16.msra.mxu0 %v1934
    %1948 = vmatprep.subr.bf16.mxu0 0
    %1949 = vmatpush1.bf16.msra.mxu0 %v1933
    %1950 = vmatprep.subr.bf16.mxu0 0
    %1951 = vmatpush1.bf16.msra.mxu0 %v1932
    %1952 = vmatprep.subr.bf16.mxu0 0
    %1953 = vmatpush1.bf16.msra.mxu0 %v1931
    %1954 = vmatprep.subr.bf16.mxu0 0
    %1955 = vmatpush1.bf16.msra.mxu0 %v1930
    %1956 = vmatprep.subr.bf16.mxu0 0
    %1957 = vmatpush1.bf16.msra.mxu0 %v1929
    %1958 = vmatprep.subr.bf16.mxu0 0
    %1959 = vmatpush1.bf16.msra.mxu0 %v1928
    %1960 = vmatprep.subr.bf16.mxu0 0
    %1961 = vmatpush2.bf16.msra.mxu0 0
    %1962 = vmatprep.subr.bf16.mxu0 0
    %1963 = vmatpush2.bf16.msra.mxu0 0
    %1964 = vmatprep.subr.bf16.mxu0 0
    %1965 = vmatpush2.bf16.msra.mxu0 0
    %1966 = vmatprep.subr.bf16.mxu0 0
    %1967 = vmatpush2.bf16.msra.mxu0 0
    %1968 = vmatprep.subr.bf16.mxu0 0
    %1969 = vmatpush2.bf16.msra.mxu0 0
    %1970 = vmatprep.subr.bf16.mxu0 0
    %1971 = vmatpush2.bf16.msra.mxu0 0
    %1972 = vmatprep.subr.bf16.mxu0 0
    %1973 = vmatpush2.bf16.msra.mxu0 0
    %1974 = vmatprep.subr.bf16.mxu0 0
    %1975 = vmatpush2.bf16.msra.mxu0 0
    %1976 = vmatprep.mubr.bf16.mxu0 0
    %1977 = vmatmul.mubr.bf16.gmra.mxu0 %v1878
    %v1978 = vpop.f32.mrf.mxu0
    %v1979 = vadd.f32 0.0, %v1978
    %v1980 = vpop.f32.mrf.mxu0
    %v1981 = vpop.f32.mrf.mxu0
    %v1982 = vpop.f32.mrf.mxu0
    %1983 = vdwg.mxu0
    %v1984 = vadd.f32 %v1872, %v1979
    %v1985 = vld [vmem:[#allocation5 + $0x6] sm:$0x3]
    %v1986 = vpack.c.bf16 %v1985, %v1985
    %s1987 = scalar_lea.vmem %s5, 192
    %v1988 = vld [vmem:[%s1987] sm:$0xf]
    %v1989 = vld [vmem:[%s1987 + $0x4] sm:$0xf]
    %v1990 = vld [vmem:[%s1987 + $0x8] sm:$0xf]
    %v1991 = vld [vmem:[%s1987 + $0xc] sm:$0xf]
    %v1992 = vld [vmem:[%s1987 + $0x10] sm:$0xf]
    %v1993 = vld [vmem:[%s1987 + $0x14] sm:$0xf]
    %v1994 = vld [vmem:[%s1987 + $0x18] sm:$0xf]
    %v1995 = vld [vmem:[%s1987 + $0x1c] sm:$0xf]
    %v1996 = vld [vmem:[%s1987 + $0x20] sm:$0xf]
    %v1997 = vld [vmem:[%s1987 + $0x24] sm:$0xf]
    %v1998 = vld [vmem:[%s1987 + $0x28] sm:$0xf]
    %v1999 = vld [vmem:[%s1987 + $0x2c] sm:$0xf]
    %v2000 = vld [vmem:[%s1987 + $0x30] sm:$0xf]
    %v2001 = vld [vmem:[%s1987 + $0x34] sm:$0xf]
    %v2002 = vld [vmem:[%s1987 + $0x38] sm:$0xf]
    %v2003 = vld [vmem:[%s1987 + $0x3c] sm:$0xf]
    %v2020 = vunpack.c.l.b16 %v1988
    %v2021 = vunpack.c.l.b16 %v1989
    %v2022 = vunpack.c.l.b16 %v1990
    %v2023 = vunpack.c.l.b16 %v1991
    %v2024 = vunpack.c.l.b16 %v1992
    %v2025 = vunpack.c.l.b16 %v1993
    %v2026 = vunpack.c.l.b16 %v1994
    %v2027 = vunpack.c.l.b16 %v1995
    %v2028 = vunpack.c.l.b16 %v1996
    %v2029 = vunpack.c.l.b16 %v1997
    %v2030 = vunpack.c.l.b16 %v1998
    %v2031 = vunpack.c.l.b16 %v1999
    %v2032 = vunpack.c.l.b16 %v2000
    %v2033 = vunpack.c.l.b16 %v2001
    %v2034 = vunpack.c.l.b16 %v2002
    %v2035 = vunpack.c.l.b16 %v2003
    %v2036 = vpack.c.b16 %v2021, %v2020
    %v2037 = vpack.c.b16 %v2023, %v2022
    %v2038 = vpack.c.b16 %v2025, %v2024
    %v2039 = vpack.c.b16 %v2027, %v2026
    %v2040 = vpack.c.b16 %v2029, %v2028
    %v2041 = vpack.c.b16 %v2031, %v2030
    %v2042 = vpack.c.b16 %v2033, %v2032
    %v2043 = vpack.c.b16 %v2035, %v2034
    %2052 = vmatprep.subr.bf16.mxu0 0
    %2053 = vmatpush1.bf16.msra.mxu0 %v2043
    %2054 = vmatprep.subr.bf16.mxu0 0
    %2055 = vmatpush1.bf16.msra.mxu0 %v2042
    %2056 = vmatprep.subr.bf16.mxu0 0
    %2057 = vmatpush1.bf16.msra.mxu0 %v2041
    %2058 = vmatprep.subr.bf16.mxu0 0
    %2059 = vmatpush1.bf16.msra.mxu0 %v2040
    %2060 = vmatprep.subr.bf16.mxu0 0
    %2061 = vmatpush1.bf16.msra.mxu0 %v2039
    %2062 = vmatprep.subr.bf16.mxu0 0
    %2063 = vmatpush1.bf16.msra.mxu0 %v2038
    %2064 = vmatprep.subr.bf16.mxu0 0
    %2065 = vmatpush1.bf16.msra.mxu0 %v2037
    %2066 = vmatprep.subr.bf16.mxu0 0
    %2067 = vmatpush1.bf16.msra.mxu0 %v2036
    %2068 = vmatprep.subr.bf16.mxu0 0
    %2069 = vmatpush2.bf16.msra.mxu0 0
    %2070 = vmatprep.subr.bf16.mxu0 0
    %2071 = vmatpush2.bf16.msra.mxu0 0
    %2072 = vmatprep.subr.bf16.mxu0 0
    %2073 = vmatpush2.bf16.msra.mxu0 0
    %2074 = vmatprep.subr.bf16.mxu0 0
    %2075 = vmatpush2.bf16.msra.mxu0 0
    %2076 = vmatprep.subr.bf16.mxu0 0
    %2077 = vmatpush2.bf16.msra.mxu0 0
    %2078 = vmatprep.subr.bf16.mxu0 0
    %2079 = vmatpush2.bf16.msra.mxu0 0
    %2080 = vmatprep.subr.bf16.mxu0 0
    %2081 = vmatpush2.bf16.msra.mxu0 0
    %2082 = vmatprep.subr.bf16.mxu0 0
    %2083 = vmatpush2.bf16.msra.mxu0 0
    %2084 = vmatprep.mubr.bf16.mxu0 0
    %2085 = vmatmul.mubr.bf16.gmra.mxu0 %v1986
    %v2086 = vpop.f32.mrf.mxu0
    %v2087 = vadd.f32 0.0, %v2086
    %v2088 = vpop.f32.mrf.mxu0
    %v2089 = vpop.f32.mrf.mxu0
    %v2090 = vpop.f32.mrf.mxu0
    %2091 = vdwg.mxu0
    %v2092 = vadd.f32 %v1984, %v2087
    %v2093 = vld [vmem:[#allocation5 + $0x8] sm:$0x3]
    %v2094 = vpack.c.bf16 %v2093, %v2093
    %s2095 = scalar_lea.vmem %s5, 256
    %v2096 = vld [vmem:[%s2095] sm:$0xf]
    %v2097 = vld [vmem:[%s2095 + $0x4] sm:$0xf]
    %v2098 = vld [vmem:[%s2095 + $0x8] sm:$0xf]
    %v2099 = vld [vmem:[%s2095 + $0xc] sm:$0xf]
    %v2100 = vld [vmem:[%s2095 + $0x10] sm:$0xf]
    %v2101 = vld [vmem:[%s2095 + $0x14] sm:$0xf]
    %v2102 = vld [vmem:[%s2095 + $0x18] sm:$0xf]
    %v2103 = vld [vmem:[%s2095 + $0x1c] sm:$0xf]
    %v2104 = vld [vmem:[%s2095 + $0x20] sm:$0xf]
    %v2105 = vld [vmem:[%s2095 + $0x24] sm:$0xf]
    %v2106 = vld [vmem:[%s2095 + $0x28] sm:$0xf]
    %v2107 = vld [vmem:[%s2095 + $0x2c] sm:$0xf]
    %v2108 = vld [vmem:[%s2095 + $0x30] sm:$0xf]
    %v2109 = vld [vmem:[%s2095 + $0x34] sm:$0xf]
    %v2110 = vld [vmem:[%s2095 + $0x38] sm:$0xf]
    %v2111 = vld [vmem:[%s2095 + $0x3c] sm:$0xf]
    %v2128 = vunpack.c.l.b16 %v2096
    %v2129 = vunpack.c.l.b16 %v2097
    %v2130 = vunpack.c.l.b16 %v2098
    %v2131 = vunpack.c.l.b16 %v2099
    %v2132 = vunpack.c.l.b16 %v2100
    %v2133 = vunpack.c.l.b16 %v2101
    %v2134 = vunpack.c.l.b16 %v2102
    %v2135 = vunpack.c.l.b16 %v2103
    %v2136 = vunpack.c.l.b16 %v2104
    %v2137 = vunpack.c.l.b16 %v2105
    %v2138 = vunpack.c.l.b16 %v2106
    %v2139 = vunpack.c.l.b16 %v2107
    %v2140 = vunpack.c.l.b16 %v2108
    %v2141 = vunpack.c.l.b16 %v2109
    %v2142 = vunpack.c.l.b16 %v2110
    %v2143 = vunpack.c.l.b16 %v2111
    %v2144 = vpack.c.b16 %v2129, %v2128
    %v2145 = vpack.c.b16 %v2131, %v2130
    %v2146 = vpack.c.b16 %v2133, %v2132
    %v2147 = vpack.c.b16 %v2135, %v2134
    %v2148 = vpack.c.b16 %v2137, %v2136
    %v2149 = vpack.c.b16 %v2139, %v2138
    %v2150 = vpack.c.b16 %v2141, %v2140
    %v2151 = vpack.c.b16 %v2143, %v2142
    %2160 = vmatprep.subr.bf16.mxu0 0
    %2161 = vmatpush1.bf16.msra.mxu0 %v2151
    %2162 = vmatprep.subr.bf16.mxu0 0
    %2163 = vmatpush1.bf16.msra.mxu0 %v2150
    %2164 = vmatprep.subr.bf16.mxu0 0
    %2165 = vmatpush1.bf16.msra.mxu0 %v2149
    %2166 = vmatprep.subr.bf16.mxu0 0
    %2167 = vmatpush1.bf16.msra.mxu0 %v2148
    %2168 = vmatprep.subr.bf16.mxu0 0
    %2169 = vmatpush1.bf16.msra.mxu0 %v2147
    %2170 = vmatprep.subr.bf16.mxu0 0
    %2171 = vmatpush1.bf16.msra.mxu0 %v2146
    %2172 = vmatprep.subr.bf16.mxu0 0
    %2173 = vmatpush1.bf16.msra.mxu0 %v2145
    %2174 = vmatprep.subr.bf16.mxu0 0
    %2175 = vmatpush1.bf16.msra.mxu0 %v2144
    %2176 = vmatprep.subr.bf16.mxu0 0
    %2177 = vmatpush2.bf16.msra.mxu0 0
    %2178 = vmatprep.subr.bf16.mxu0 0
    %2179 = vmatpush2.bf16.msra.mxu0 0
    %2180 = vmatprep.subr.bf16.mxu0 0
    %2181 = vmatpush2.bf16.msra.mxu0 0
    %2182 = vmatprep.subr.bf16.mxu0 0
    %2183 = vmatpush2.bf16.msra.mxu0 0
    %2184 = vmatprep.subr.bf16.mxu0 0
    %2185 = vmatpush2.bf16.msra.mxu0 0
    %2186 = vmatprep.subr.bf16.mxu0 0
    %2187 = vmatpush2.bf16.msra.mxu0 0
    %2188 = vmatprep.subr.bf16.mxu0 0
    %2189 = vmatpush2.bf16.msra.mxu0 0
    %2190 = vmatprep.subr.bf16.mxu0 0
    %2191 = vmatpush2.bf16.msra.mxu0 0
    %2192 = vmatprep.mubr.bf16.mxu0 0
    %2193 = vmatmul.mubr.bf16.gmra.mxu0 %v2094
    %v2194 = vpop.f32.mrf.mxu0
    %v2195 = vadd.f32 0.0, %v2194
    %v2196 = vpop.f32.mrf.mxu0
    %v2197 = vpop.f32.mrf.mxu0
    %v2198 = vpop.f32.mrf.mxu0
    %2199 = vdwg.mxu0
    %v2200 = vadd.f32 %v2092, %v2195
    %v2201 = vld [vmem:[#allocation6] sm:$0x1]
    %v2203 = vlaneseq
    %v2204 = vshrl.u32 %v2203, 7
    %v2205 = vsub.s32 0, %v2204
    %v2206 = vrot.slane %v2201, %v2205
    %v2208 = vadd.f32 %v2200, %v2206
    %v2209 = vmax.f32 %v2208, 0.0
    %v2210 = vpack.c.bf16 %v2209, %v2209
    %v2211 = vld [vmem:[#allocation9] sm:$0xf]
    %v2212 = vld [vmem:[#allocation9 + $0x4] sm:$0xf]
    %v2213 = vld [vmem:[#allocation9 + $0x8] sm:$0xf]
    %v2214 = vld [vmem:[#allocation9 + $0xc] sm:$0xf]
    %v2215 = vld [vmem:[#allocation9 + $0x10] sm:$0xf]
    %v2216 = vld [vmem:[#allocation9 + $0x14] sm:$0xf]
    %v2217 = vld [vmem:[#allocation9 + $0x18] sm:$0xf]
    %v2218 = vld [vmem:[#allocation9 + $0x1c] sm:$0xf]
    %v2219 = vld [vmem:[#allocation9 + $0x20] sm:$0xf]
    %v2220 = vld [vmem:[#allocation9 + $0x24] sm:$0xf]
    %v2221 = vld [vmem:[#allocation9 + $0x28] sm:$0xf]
    %v2222 = vld [vmem:[#allocation9 + $0x2c] sm:$0xf]
    %v2223 = vld [vmem:[#allocation9 + $0x30] sm:$0xf]
    %v2224 = vld [vmem:[#allocation9 + $0x34] sm:$0xf]
    %v2225 = vld [vmem:[#allocation9 + $0x38] sm:$0xf]
    %v2226 = vld [vmem:[#allocation9 + $0x3c] sm:$0xf]
    %v2227 = vld [vmem:[#allocation11] sm:$0x1]
    %v2229 = vlaneseq
    %v2230 = vshrl.u32 %v2229, 7
    %v2231 = vsub.s32 0, %v2230
    %v2232 = vrot.slane %v2227, %v2231
    %v2250 = vunpack.c.l.b16 %v2211
    %v2251 = vunpack.c.l.b16 %v2212
    %v2252 = vunpack.c.l.b16 %v2213
    %v2253 = vunpack.c.l.b16 %v2214
    %v2254 = vunpack.c.l.b16 %v2215
    %v2255 = vunpack.c.l.b16 %v2216
    %v2256 = vunpack.c.l.b16 %v2217
    %v2257 = vunpack.c.l.b16 %v2218
    %v2258 = vunpack.c.l.b16 %v2219
    %v2259 = vunpack.c.l.b16 %v2220
    %v2260 = vunpack.c.l.b16 %v2221
    %v2261 = vunpack.c.l.b16 %v2222
    %v2262 = vunpack.c.l.b16 %v2223
    %v2263 = vunpack.c.l.b16 %v2224
    %v2264 = vunpack.c.l.b16 %v2225
    %v2265 = vunpack.c.l.b16 %v2226
    %v2266 = vpack.c.b16 %v2251, %v2250
    %v2267 = vpack.c.b16 %v2253, %v2252
    %v2268 = vpack.c.b16 %v2255, %v2254
    %v2269 = vpack.c.b16 %v2257, %v2256
    %v2270 = vpack.c.b16 %v2259, %v2258
    %v2271 = vpack.c.b16 %v2261, %v2260
    %v2272 = vpack.c.b16 %v2263, %v2262
    %v2273 = vpack.c.b16 %v2265, %v2264
    %2282 = vmatprep.subr.bf16.mxu0 0
    %2283 = vmatpush1.bf16.msra.mxu0 %v2273
    %2284 = vmatprep.subr.bf16.mxu0 0
    %2285 = vmatpush1.bf16.msra.mxu0 %v2272
    %2286 = vmatprep.subr.bf16.mxu0 0
    %2287 = vmatpush1.bf16.msra.mxu0 %v2271
    %2288 = vmatprep.subr.bf16.mxu0 0
    %2289 = vmatpush1.bf16.msra.mxu0 %v2270
    %2290 = vmatprep.subr.bf16.mxu0 0
    %2291 = vmatpush1.bf16.msra.mxu0 %v2269
    %2292 = vmatprep.subr.bf16.mxu0 0
    %2293 = vmatpush1.bf16.msra.mxu0 %v2268
    %2294 = vmatprep.subr.bf16.mxu0 0
    %2295 = vmatpush1.bf16.msra.mxu0 %v2267
    %2296 = vmatprep.subr.bf16.mxu0 0
    %2297 = vmatpush1.bf16.msra.mxu0 %v2266
    %2298 = vmatprep.subr.bf16.mxu0 0
    %2299 = vmatpush2.bf16.msra.mxu0 0
    %2300 = vmatprep.subr.bf16.mxu0 0
    %2301 = vmatpush2.bf16.msra.mxu0 0
    %2302 = vmatprep.subr.bf16.mxu0 0
    %2303 = vmatpush2.bf16.msra.mxu0 0
    %2304 = vmatprep.subr.bf16.mxu0 0
    %2305 = vmatpush2.bf16.msra.mxu0 0
    %2306 = vmatprep.subr.bf16.mxu0 0
    %2307 = vmatpush2.bf16.msra.mxu0 0
    %2308 = vmatprep.subr.bf16.mxu0 0
    %2309 = vmatpush2.bf16.msra.mxu0 0
    %2310 = vmatprep.subr.bf16.mxu0 0
    %2311 = vmatpush2.bf16.msra.mxu0 0
    %2312 = vmatprep.subr.bf16.mxu0 0
    %2313 = vmatpush2.bf16.msra.mxu0 0
    %2314 = vmatprep.mubr.bf16.mxu0 0
    %2315 = vmatmul.mubr.bf16.gmra.mxu0 %v2210
    %v2316 = vpop.f32.mrf.mxu0
    %v2317 = vadd.f32 %v2232, %v2316
    %v2318 = vpop.f32.mrf.mxu0
    %v2319 = vpop.f32.mrf.mxu0
    %v2320 = vpop.f32.mrf.mxu0
    %2321 = vdwg.mxu0
    %v2322 = vmax.f32 %v2317, 0.0
    %v2323 = vpack.c.bf16 %v2322, %v2322
    %v2324 = vld [vmem:[%s9] sm:$0xf]
    %v2325 = vld [vmem:[%s9 + $0x4] sm:$0xf]
    %v2326 = vld [vmem:[%s9 + $0x8] sm:$0xf]
    %v2327 = vld [vmem:[%s9 + $0xc] sm:$0xf]
    %v2328 = vld [vmem:[%s9 + $0x10] sm:$0xf]
    %v2329 = vld [vmem:[%s9 + $0x14] sm:$0xf]
    %v2330 = vld [vmem:[%s9 + $0x18] sm:$0xf]
    %v2331 = vld [vmem:[%s9 + $0x1c] sm:$0xf]
    %v2332 = vld [vmem:[%s9 + $0x20] sm:$0xf]
    %v2333 = vld [vmem:[%s9 + $0x24] sm:$0xf]
    %v2334 = vld [vmem:[%s9 + $0x28] sm:$0xf]
    %v2335 = vld [vmem:[%s9 + $0x2c] sm:$0xf]
    %v2336 = vld [vmem:[%s9 + $0x30] sm:$0xf]
    %v2337 = vld [vmem:[%s9 + $0x34] sm:$0xf]
    %v2338 = vld [vmem:[%s9 + $0x38] sm:$0xf]
    %v2339 = vld [vmem:[%s9 + $0x3c] sm:$0xf]
    %v2340 = vld [vmem:[#allocation12] sm:$0x1]
    %v2342 = vlaneseq
    %v2343 = vshrl.u32 %v2342, 7
    %v2344 = vsub.s32 0, %v2343
    %v2345 = vrot.slane %v2340, %v2344
    %v2363 = vunpack.c.l.b16 %v2324
    %v2364 = vunpack.c.l.b16 %v2325
    %v2365 = vunpack.c.l.b16 %v2326
    %v2366 = vunpack.c.l.b16 %v2327
    %v2367 = vunpack.c.l.b16 %v2328
    %v2368 = vunpack.c.l.b16 %v2329
    %v2369 = vunpack.c.l.b16 %v2330
    %v2370 = vunpack.c.l.b16 %v2331
    %v2371 = vunpack.c.l.b16 %v2332
    %v2372 = vunpack.c.l.b16 %v2333
    %v2373 = vunpack.c.l.b16 %v2334
    %v2374 = vunpack.c.l.b16 %v2335
    %v2375 = vunpack.c.l.b16 %v2336
    %v2376 = vunpack.c.l.b16 %v2337
    %v2377 = vunpack.c.l.b16 %v2338
    %v2378 = vunpack.c.l.b16 %v2339
    %v2379 = vpack.c.b16 %v2364, %v2363
    %v2380 = vpack.c.b16 %v2366, %v2365
    %v2381 = vpack.c.b16 %v2368, %v2367
    %v2382 = vpack.c.b16 %v2370, %v2369
    %v2383 = vpack.c.b16 %v2372, %v2371
    %v2384 = vpack.c.b16 %v2374, %v2373
    %v2385 = vpack.c.b16 %v2376, %v2375
    %v2386 = vpack.c.b16 %v2378, %v2377
    %2395 = vmatprep.subr.bf16.mxu0 0
    %2396 = vmatpush1.bf16.msra.mxu0 %v2386
    %2397 = vmatprep.subr.bf16.mxu0 0
    %2398 = vmatpush1.bf16.msra.mxu0 %v2385
    %2399 = vmatprep.subr.bf16.mxu0 0
    %2400 = vmatpush1.bf16.msra.mxu0 %v2384
    %2401 = vmatprep.subr.bf16.mxu0 0
    %2402 = vmatpush1.bf16.msra.mxu0 %v2383
    %2403 = vmatprep.subr.bf16.mxu0 0
    %2404 = vmatpush1.bf16.msra.mxu0 %v2382
    %2405 = vmatprep.subr.bf16.mxu0 0
    %2406 = vmatpush1.bf16.msra.mxu0 %v2381
    %2407 = vmatprep.subr.bf16.mxu0 0
    %2408 = vmatpush1.bf16.msra.mxu0 %v2380
    %2409 = vmatprep.subr.bf16.mxu0 0
    %2410 = vmatpush1.bf16.msra.mxu0 %v2379
    %2411 = vmatprep.subr.bf16.mxu0 0
    %2412 = vmatpush2.bf16.msra.mxu0 0
    %2413 = vmatprep.subr.bf16.mxu0 0
    %2414 = vmatpush2.bf16.msra.mxu0 0
    %2415 = vmatprep.subr.bf16.mxu0 0
    %2416 = vmatpush2.bf16.msra.mxu0 0
    %2417 = vmatprep.subr.bf16.mxu0 0
    %2418 = vmatpush2.bf16.msra.mxu0 0
    %2419 = vmatprep.subr.bf16.mxu0 0
    %2420 = vmatpush2.bf16.msra.mxu0 0
    %2421 = vmatprep.subr.bf16.mxu0 0
    %2422 = vmatpush2.bf16.msra.mxu0 0
    %2423 = vmatprep.subr.bf16.mxu0 0
    %2424 = vmatpush2.bf16.msra.mxu0 0
    %2425 = vmatprep.subr.bf16.mxu0 0
    %2426 = vmatpush2.bf16.msra.mxu0 0
    %2427 = vmatprep.mubr.bf16.mxu0 0
    %2428 = vmatmul.mubr.bf16.gmra.mxu0 %v2323
    %v2429 = vpop.f32.mrf.mxu0
    %v2430 = vadd.f32 %v2345, %v2429
    %v2431 = vpop.f32.mrf.mxu0
    %v2432 = vpop.f32.mrf.mxu0
    %v2433 = vpop.f32.mrf.mxu0
    %2434 = vdwg.mxu0
    %vm2435 = vcmask 74752
    %2436 = vst.msk [vmem:[#allocation14] sm:$0x3] %vm2435, %v2430
    // Predicated region
    $region62: #{lenet5_forward.1} parent=1 // pred_check
      _
    $region63: #{lenet5_forward.1} parent=1 // pred_check_branch
      %2438 = sbr.rel (0) target = $region65
    $region64: #{lenet5_forward.1} parent=1 // pred_region
      %s2440 = ssub.s32 32, 32
      %2441 = vsyncadd [#allocation8], %s2440
      %s2443 = sshll.u32 [#allocation14], 4
      %s2444 = int_to_ptr.vmem [resolvable:$true] %s2443
      %2446 = dma.vmem_to_hbm [thread:$0]  %s2444, 32, %s11, [#allocation8]
    $region65: #{lenet5_forward.1} parent=1 // pred_fallthru
      _
    // Predicated region
    $region66: #{lenet5_forward.1} parent=1 // pred_check
      _
    $region67: #{lenet5_forward.1} parent=1 // pred_check_branch
      %2448 = sbr.rel (0) target = $region69
    $region68: #{lenet5_forward.1} parent=1 // pred_region
      %2449 = dma.done [#allocation8], 32
    $region69: #{lenet5_forward.1} parent=1 // pred_fallthru
      _
    %2450 = vsyncpa [#allocation7], 1
    %2451 = vsyncpa [#allocation10], 1
    %2452 = vsyncpa [#allocation13], 1
    %2453 = vsyncpa [#allocation8], 1

</llo_original>
